<compile_context>
chip_gen: v7x
topology: tpu7x:2x2x1
jax: 0.10.0
libtpu: 0.0.40
codegen_flags: <defaults>
</compile_context>

<pallas_src>
import functools

import jax
import jax.numpy as jnp
from jax import lax
from jax.experimental import pallas as pl
from jax.experimental.pallas import tpu as pltpu


# ----------------------------- kernels ----------------------------------------


def _layernorm(x, gamma, beta, eps=1e-5):
    mean = jnp.mean(x, axis=-1, keepdims=True)
    var = jnp.mean((x - mean) ** 2, axis=-1, keepdims=True)
    return (x - mean) * lax.rsqrt(var + eps) * gamma + beta


def fused_encoder_kernel(
    x_ref, bias_ref,
    wqkv_ref, wo_ref, w1_ref, w2_ref, vecs_ref,
    out_ref,
    x_sc,
    *, num_heads,
):
    """Grid axis = encoder layer.  Activation stays resident in x_sc across layers."""
    layer = pl.program_id(0)

    @pl.when(layer == 0)
    def _():
        x_sc[...] = x_ref[...]

    x = x_sc[...]                                   # (N, D) f32, N = B*S
    N, D = x.shape
    H = num_heads
    dh = D // H
    G, S = bias_ref.shape                           # G = H*B
    B = N // S
    d_ff = w1_ref.shape[-1]
    scale = 1.0 / (dh ** 0.5)

    # ---- packed per-layer bias / LayerNorm vectors (one sublane-dense (8, Vmax) block)
    vecs = vecs_ref[0]
    b_qkv = vecs[0:1, :3 * D]
    b_o   = vecs[1:2, :D]
    g1    = vecs[2:3, :D]
    be1   = vecs[3:4, :D]
    b_1   = vecs[4:5, :d_ff]
    b_2   = vecs[5:6, :D]
    g2    = vecs[6:7, :D]
    be2   = vecs[7:8, :D]

    # ---- fused QKV projection on all B*S rows (bf16 MXU, f32 accumulation) -----------
    xb = x.astype(jnp.bfloat16)
    qkv = jnp.dot(xb, wqkv_ref[0], preferred_element_type=jnp.float32) + b_qkv
    q = qkv[:, :D] * scale                          # fold 1/sqrt(dh) into Q once
    k = qkv[:, D:2 * D]
    v = qkv[:, 2 * D:]

    # ---- head-major batched views (register ops only, no VMEM scratch copies) --------
    # Row order of the G axis is (head, batch); only leading-dim reshapes + a leading
    # axis concat are used (layout-free / tile-aligned for S multiple of 8).
    def split_heads(t):
        parts = [t[:, h * dh:(h + 1) * dh].reshape(B, S, dh) for h in range(H)]
        return jnp.concatenate(parts, axis=0).astype(jnp.bfloat16)   # (G, S, dh)

    qh, kh, vh = split_heads(q), split_heads(k), split_heads(v)

    # ---- batched attention: (G, S, S) scores, softmax in f32, P@V ---------------------
    s = jnp.einsum("gqd,gkd->gqk", qh, kh, preferred_element_type=jnp.float32)
    s = s + bias_ref[...][:, None, :]               # additive key-padding bias (0 / -1e9)
    s = s - jnp.max(s, axis=-1, keepdims=True)
    p = jnp.exp(s)
    p = p * pl.reciprocal(jnp.sum(p, axis=-1, keepdims=True), approx=True)
    ctx = jnp.einsum("gqk,gkd->gqd", p.astype(jnp.bfloat16), vh,
                     preferred_element_type=jnp.float32)              # (G, S, dh)

    # ---- head recombination: lane concat feeding one (N, D) x (D, D) matmul ----------
    ctx_parts = [ctx[h * B:(h + 1) * B].reshape(N, dh) for h in range(H)]
    ctx_cat = jnp.concatenate(ctx_parts, axis=-1).astype(jnp.bfloat16)  # (N, D)
    attn_out = jnp.dot(ctx_cat, wo_ref[0], preferred_element_type=jnp.float32) + b_o

    x1 = _layernorm(x + attn_out, g1, be1)

    # ---- FFN ---------------------------------------------------------------------------
    h1 = jnp.maximum(
        jnp.dot(x1.astype(jnp.bfloat16), w1_ref[0],
                preferred_element_type=jnp.float32) + b_1, 0.0)
    h2 = jnp.dot(h1.astype(jnp.bfloat16), w2_ref[0],
                 preferred_element_type=jnp.float32) + b_2
    x2 = _layernorm(x1 + h2, g2, be2)

    x_sc[...] = x2                                  # carry activation to next layer

    @pl.when(layer == pl.num_programs(0) - 1)
    def _():
        out_ref[...] = x2


def fc1_relu_kernel(x_ref, w_ref, b_ref, o_ref):
    """fc1 + ReLU epilogue (separate call -> fc1 weights not VMEM-resident across layers)."""
    y = jnp.dot(x_ref[...].astype(jnp.bfloat16), w_ref[...],
                preferred_element_type=jnp.float32) + b_ref[...]
    o_ref[...] = jnp.maximum(y, 0.0)


# ----------------------------- wrapper ----------------------------------------


def brain_translator_forward(params, input_embeddings_batch, input_masks_batch,
                             input_masks_invert, target_ids_batch_converted, *, num_heads):
    """Mirrors BrainTranslator.forward semantics (eval mode, encoder + fc1 + ReLU)."""
    B, S, D = input_embeddings_batch.shape
    N = B * S
    H = num_heads
    G = H * B
    L = params["wqkv"].shape[0]
    D_DEC = params["fc1_w"].shape[-1]

    # Tiny (H*B, S) additive key-padding bias (invert: 1 means masked), (head, batch) order.
    key_bias = jnp.where(input_masks_invert == 0, 0.0, -1e9).astype(jnp.float32)   # (B, S)
    attn_bias = jnp.tile(key_bias, (H, 1))                                         # (G, S)

    x2d = input_embeddings_batch.reshape(N, D).astype(jnp.float32)

    def layer_spec(arr):
        _, a, b = arr.shape
        return pl.BlockSpec((1, a, b), lambda l: (l, 0, 0))

    in_specs = [
        pl.BlockSpec((N, D), lambda l: (0, 0)),         # activations (loaded on layer 0)
        pl.BlockSpec((G, S), lambda l: (0, 0)),         # key-padding bias
        layer_spec(params["wqkv"]),
        layer_spec(params["wo"]),
        layer_spec(params["w1"]),
        layer_spec(params["w2"]),
        layer_spec(params["vecs"]),
    ]

    kernel = functools.partial(fused_encoder_kernel, num_heads=num_heads)
    enc = pl.pallas_call(
        kernel,
        grid=(L,),
        in_specs=in_specs,
        out_specs=pl.BlockSpec((N, D), lambda l: (0, 0)),
        out_shape=jax.ShapeDtypeStruct((N, D), jnp.float32),
        scratch_shapes=[pltpu.VMEM((N, D), jnp.float32)],   # resident activation
        compiler_params=pltpu.CompilerParams(
            dimension_semantics=("arbitrary",),             # layers are sequential
            vmem_limit_bytes=48 * 1024 * 1024,              # re-derive per generation (<=~56 MiB on v7x)
        ),
    )(x2d, attn_bias, params["wqkv"], params["wo"], params["w1"], params["w2"],
      params["vecs"])

    dec = pl.pallas_call(
        fc1_relu_kernel,
        grid=(1,),
        in_specs=[pl.BlockSpec((N, D), lambda i: (0, 0)),
                  pl.BlockSpec(params["fc1_w"].shape, lambda i: (0, 0)),
                  pl.BlockSpec(params["fc1_b"].shape, lambda i: (0, 0))],
        out_specs=pl.BlockSpec((N, D_DEC), lambda i: (0, 0)),
        out_shape=jax.ShapeDtypeStruct((N, D_DEC), jnp.float32),
    )(enc, params["fc1_w"], params["fc1_b"])

    # TODO(synk): self.pretrained(inputs_embeds=..., attention_mask=..., labels=...)
    # (pretrained seq2seq LM forward + loss) is not implemented; returning the encoded
    # embeddings it would receive.
    del input_masks_batch, target_ids_batch_converted
    return dec.reshape(B, S, D_DEC)


# ----------------------------- params -----------------------------------------


def init_params(key, d_model, d_ff, d_dec, n_layers):
    """Per-layer weights stacked along a leading layer axis; matmul weights in bf16.
    All per-layer bias/LayerNorm vectors are packed into one (L, 8, Vmax) f32 array."""
    def nrm(k, shape):
        return (jax.random.normal(k, shape, jnp.float32) * 0.02).astype(jnp.bfloat16)

    L, D = n_layers, d_model
    vmax = max(3 * D, d_ff, D)
    k = jax.random.split(key, 5)

    # rows: 0 bqkv(3D) | 1 bo(D) | 2 g1(D) | 3 be1(D) | 4 b1(d_ff) | 5 b2(D) | 6 g2(D) | 7 be2(D)
    vecs = jnp.zeros((L, 8, vmax), jnp.float32)
    vecs = vecs.at[:, 2, :D].set(1.0)   # LayerNorm1 gamma
    vecs = vecs.at[:, 6, :D].set(1.0)   # LayerNorm2 gamma

    return dict(
        wqkv=nrm(k[0], (L, D, 3 * D)),
        wo=nrm(k[1], (L, D, D)),
        w1=nrm(k[2], (L, D, d_ff)),
        w2=nrm(k[3], (L, d_ff, D)),
        vecs=vecs,
        fc1_w=nrm(k[4], (D, d_dec)),
        fc1_b=jnp.zeros((1, d_dec), jnp.float32),
    )


# ----------------------------- main --------------------------------------------


if __name__ == "__main__":
    # Small shapes consistent with the module: in_feature (d_model) -> 128, nhead -> 8,
    # dim_feedforward -> 256, decoder_embedding_size -> 128, 6 encoder layers.
    B, S, D = 2, 8, 128
    NUM_HEADS, D_FF, D_DEC, N_LAYERS = 8, 256, 128, 6

    key = jax.random.PRNGKey(0)
    k_emb, k_params = jax.random.split(key)

    input_embeddings = jax.random.normal(k_emb, (B, S, D), jnp.float32)
    # 1 = not masked, 0 = masked (second sequence has 2 padded positions).
    input_masks = jnp.array([[1] * S, [1] * (S - 2) + [0] * 2], dtype=jnp.float32)
    input_masks_invert = 1.0 - input_masks
    target_ids = jnp.zeros((B, S), jnp.int32)

    params = init_params(k_params, D, D_FF, D_DEC, N_LAYERS)

    out = brain_translator_forward(
        params, input_embeddings, input_masks, input_masks_invert, target_ids,
        num_heads=NUM_HEADS,
    )
    out = jax.block_until_ready(out)
    assert out.shape == (B, S, D_DEC)
    assert bool(jnp.all(jnp.isfinite(out)))
    print("KERNEL_OK")
</pallas_src>

<mosaic_0001>
module attributes {stable_mosaic.version = 11 : i64} {
  func.func @fused_encoder_kernel(%arg0: i32, %arg1: memref<16x128xf32, #tpu.memory_space<vmem>>, %arg2: memref<16x8xf32, #tpu.memory_space<vmem>>, %arg3: memref<1x128x384xbf16, #tpu.memory_space<vmem>>, %arg4: memref<1x128x128xbf16, #tpu.memory_space<vmem>>, %arg5: memref<1x128x256xbf16, #tpu.memory_space<vmem>>, %arg6: memref<1x256x128xbf16, #tpu.memory_space<vmem>>, %arg7: memref<1x8x384xf32, #tpu.memory_space<vmem>>, %arg8: memref<16x128xf32, #tpu.memory_space<vmem>>, %arg9: memref<16x128xf32, #tpu.memory_space<vmem>>) attributes {dimension_semantics = [#tpu.dimension_semantics<arbitrary>], iteration_bounds = array<i64: 6>, scalar_prefetch = 0 : i64, scratch_operands = 1 : i64, tpu.core_type = #tpu.core_type<tc>, window_params = [{pipeline_mode = #tpu.pipeline_mode<synchronous>, transform_indices = @transform_0, window_bounds = array<i64: 16, 128>}, {pipeline_mode = #tpu.pipeline_mode<synchronous>, transform_indices = @transform_1, window_bounds = array<i64: 16, 8>}, {transform_indices = @transform_2, window_bounds = array<i64: 1, 128, 384>}, {transform_indices = @transform_3, window_bounds = array<i64: 1, 128, 128>}, {transform_indices = @transform_4, window_bounds = array<i64: 1, 128, 256>}, {transform_indices = @transform_5, window_bounds = array<i64: 1, 256, 128>}, {transform_indices = @transform_6, window_bounds = array<i64: 1, 8, 384>}, {pipeline_mode = #tpu.pipeline_mode<synchronous>, transform_indices = @transform_7, window_bounds = array<i64: 16, 128>}]} {
    %c0_i32 = arith.constant 0 : i32
    %0 = arith.cmpi eq, %arg0, %c0_i32 : i32
    %1 = arith.extui %0 : i1 to i32
    %c0_i32_0 = arith.constant 0 : i32
    %2 = arith.cmpi ne, %1, %c0_i32_0 : i32
    scf.if %2 {
      %c0_41 = arith.constant 0 : index
      %c0_42 = arith.constant 0 : index
      %183 = vector.load %arg1[%c0_41, %c0_42] : memref<16x128xf32, #tpu.memory_space<vmem>>, vector<16x128xf32>
      %c0_43 = arith.constant 0 : index
      %c0_44 = arith.constant 0 : index
      %184 = vector.load %arg9[%c0_43, %c0_44] : memref<16x128xf32, #tpu.memory_space<vmem>>, vector<16x128xf32>
      tpu.vector_store %arg9[%c0_43, %c0_44], %183 {strides = array<i32>} : memref<16x128xf32, #tpu.memory_space<vmem>>, vector<16x128xf32>,
    } else {
    }
    %c0 = arith.constant 0 : index
    %c0_1 = arith.constant 0 : index
    %3 = vector.load %arg9[%c0, %c0_1] : memref<16x128xf32, #tpu.memory_space<vmem>>, vector<16x128xf32>
    %c0_2 = arith.constant 0 : index
    %c0_3 = arith.constant 0 : index
    %c0_4 = arith.constant 0 : index
    %4 = vector.load %arg7[%c0_2, %c0_3, %c0_4] : memref<1x8x384xf32, #tpu.memory_space<vmem>>, vector<1x8x384xf32>
    %5 = vector.shape_cast %4 : vector<1x8x384xf32> to vector<8x384xf32>
    %6 = vector.extract_strided_slice %5 {offsets = [0, 0], sizes = [1, 384], strides = [1, 1]} : vector<8x384xf32> to vector<1x384xf32>
    %7 = vector.extract_strided_slice %5 {offsets = [1, 0], sizes = [1, 128], strides = [1, 1]} : vector<8x384xf32> to vector<1x128xf32>
    %8 = vector.extract_strided_slice %5 {offsets = [2, 0], sizes = [1, 128], strides = [1, 1]} : vector<8x384xf32> to vector<1x128xf32>
    %9 = vector.extract_strided_slice %5 {offsets = [3, 0], sizes = [1, 128], strides = [1, 1]} : vector<8x384xf32> to vector<1x128xf32>
    %10 = vector.extract_strided_slice %5 {offsets = [4, 0], sizes = [1, 256], strides = [1, 1]} : vector<8x384xf32> to vector<1x256xf32>
    %11 = vector.extract_strided_slice %5 {offsets = [5, 0], sizes = [1, 128], strides = [1, 1]} : vector<8x384xf32> to vector<1x128xf32>
    %12 = vector.extract_strided_slice %5 {offsets = [6, 0], sizes = [1, 128], strides = [1, 1]} : vector<8x384xf32> to vector<1x128xf32>
    %13 = vector.extract_strided_slice %5 {offsets = [7, 0], sizes = [1, 128], strides = [1, 1]} : vector<8x384xf32> to vector<1x128xf32>
    %14 = arith.truncf %3 : vector<16x128xf32> to vector<16x128xbf16>
    %c0_5 = arith.constant 0 : index
    %c0_6 = arith.constant 0 : index
    %c0_7 = arith.constant 0 : index
    %15 = vector.load %arg3[%c0_5, %c0_6, %c0_7] : memref<1x128x384xbf16, #tpu.memory_space<vmem>>, vector<1x128x384xbf16>
    %16 = vector.shape_cast %15 : vector<1x128x384xbf16> to vector<128x384xbf16>
    %cst = arith.constant dense<0.000000e+00> : vector<16x384xf32>
    %17 = tpu.matmul %14, %16, %cst {dimension_numbers = #tpu.dot_dimension_numbers<[1], [0], [0], [1], [0, 0, 1, 1], [], []>} : vector<16x128xbf16>, vector<128x384xbf16>, vector<16x384xf32> -> vector<16x384xf32>
    %18 = vector.broadcast %6 : vector<1x384xf32> to vector<16x384xf32>
    %19 = arith.addf %17, %18 : vector<16x384xf32>
    %20 = vector.extract_strided_slice %19 {offsets = [0, 0], sizes = [16, 128], strides = [1, 1]} : vector<16x384xf32> to vector<16x128xf32>
    %cst_8 = arith.constant 2.500000e-01 : f32
    %21 = vector.broadcast %cst_8 : f32 to vector<16x128xf32>
    %22 = arith.mulf %20, %21 : vector<16x128xf32>
    %23 = vector.extract_strided_slice %19 {offsets = [0, 128], sizes = [16, 128], strides = [1, 1]} : vector<16x384xf32> to vector<16x128xf32>
    %24 = vector.extract_strided_slice %19 {offsets = [0, 256], sizes = [16, 128], strides = [1, 1]} : vector<16x384xf32> to vector<16x128xf32>
    %25 = vector.extract_strided_slice %22 {offsets = [0, 0], sizes = [16, 16], strides = [1, 1]} : vector<16x128xf32> to vector<16x16xf32>
    %26 = vector.shape_cast %25 : vector<16x16xf32> to vector<2x8x16xf32>
    %27 = vector.extract_strided_slice %22 {offsets = [0, 16], sizes = [16, 16], strides = [1, 1]} : vector<16x128xf32> to vector<16x16xf32>
    %28 = vector.shape_cast %27 : vector<16x16xf32> to vector<2x8x16xf32>
    %29 = vector.extract_strided_slice %22 {offsets = [0, 32], sizes = [16, 16], strides = [1, 1]} : vector<16x128xf32> to vector<16x16xf32>
    %30 = vector.shape_cast %29 : vector<16x16xf32> to vector<2x8x16xf32>
    %31 = vector.extract_strided_slice %22 {offsets = [0, 48], sizes = [16, 16], strides = [1, 1]} : vector<16x128xf32> to vector<16x16xf32>
    %32 = vector.shape_cast %31 : vector<16x16xf32> to vector<2x8x16xf32>
    %33 = vector.extract_strided_slice %22 {offsets = [0, 64], sizes = [16, 16], strides = [1, 1]} : vector<16x128xf32> to vector<16x16xf32>
    %34 = vector.shape_cast %33 : vector<16x16xf32> to vector<2x8x16xf32>
    %35 = vector.extract_strided_slice %22 {offsets = [0, 80], sizes = [16, 16], strides = [1, 1]} : vector<16x128xf32> to vector<16x16xf32>
    %36 = vector.shape_cast %35 : vector<16x16xf32> to vector<2x8x16xf32>
    %37 = vector.extract_strided_slice %22 {offsets = [0, 96], sizes = [16, 16], strides = [1, 1]} : vector<16x128xf32> to vector<16x16xf32>
    %38 = vector.shape_cast %37 : vector<16x16xf32> to vector<2x8x16xf32>
    %39 = vector.extract_strided_slice %22 {offsets = [0, 112], sizes = [16, 16], strides = [1, 1]} : vector<16x128xf32> to vector<16x16xf32>
    %40 = vector.shape_cast %39 : vector<16x16xf32> to vector<2x8x16xf32>
    %41 = tpu.concatenate %26, %28, %30, %32, %34, %36, %38, %40 in 0 : vector<2x8x16xf32>, vector<2x8x16xf32>, vector<2x8x16xf32>, vector<2x8x16xf32>, vector<2x8x16xf32>, vector<2x8x16xf32>, vector<2x8x16xf32>, vector<2x8x16xf32> -> vector<16x8x16xf32>
    %42 = arith.truncf %41 : vector<16x8x16xf32> to vector<16x8x16xbf16>
    %43 = vector.extract_strided_slice %23 {offsets = [0, 0], sizes = [16, 16], strides = [1, 1]} : vector<16x128xf32> to vector<16x16xf32>
    %44 = vector.shape_cast %43 : vector<16x16xf32> to vector<2x8x16xf32>
    %45 = vector.extract_strided_slice %23 {offsets = [0, 16], sizes = [16, 16], strides = [1, 1]} : vector<16x128xf32> to vector<16x16xf32>
    %46 = vector.shape_cast %45 : vector<16x16xf32> to vector<2x8x16xf32>
    %47 = vector.extract_strided_slice %23 {offsets = [0, 32], sizes = [16, 16], strides = [1, 1]} : vector<16x128xf32> to vector<16x16xf32>
    %48 = vector.shape_cast %47 : vector<16x16xf32> to vector<2x8x16xf32>
    %49 = vector.extract_strided_slice %23 {offsets = [0, 48], sizes = [16, 16], strides = [1, 1]} : vector<16x128xf32> to vector<16x16xf32>
    %50 = vector.shape_cast %49 : vector<16x16xf32> to vector<2x8x16xf32>
    %51 = vector.extract_strided_slice %23 {offsets = [0, 64], sizes = [16, 16], strides = [1, 1]} : vector<16x128xf32> to vector<16x16xf32>
    %52 = vector.shape_cast %51 : vector<16x16xf32> to vector<2x8x16xf32>
    %53 = vector.extract_strided_slice %23 {offsets = [0, 80], sizes = [16, 16], strides = [1, 1]} : vector<16x128xf32> to vector<16x16xf32>
    %54 = vector.shape_cast %53 : vector<16x16xf32> to vector<2x8x16xf32>
    %55 = vector.extract_strided_slice %23 {offsets = [0, 96], sizes = [16, 16], strides = [1, 1]} : vector<16x128xf32> to vector<16x16xf32>
    %56 = vector.shape_cast %55 : vector<16x16xf32> to vector<2x8x16xf32>
    %57 = vector.extract_strided_slice %23 {offsets = [0, 112], sizes = [16, 16], strides = [1, 1]} : vector<16x128xf32> to vector<16x16xf32>
    %58 = vector.shape_cast %57 : vector<16x16xf32> to vector<2x8x16xf32>
    %59 = tpu.concatenate %44, %46, %48, %50, %52, %54, %56, %58 in 0 : vector<2x8x16xf32>, vector<2x8x16xf32>, vector<2x8x16xf32>, vector<2x8x16xf32>, vector<2x8x16xf32>, vector<2x8x16xf32>, vector<2x8x16xf32>, vector<2x8x16xf32> -> vector<16x8x16xf32>
    %60 = arith.truncf %59 : vector<16x8x16xf32> to vector<16x8x16xbf16>
    %61 = vector.extract_strided_slice %24 {offsets = [0, 0], sizes = [16, 16], strides = [1, 1]} : vector<16x128xf32> to vector<16x16xf32>
    %62 = vector.shape_cast %61 : vector<16x16xf32> to vector<2x8x16xf32>
    %63 = vector.extract_strided_slice %24 {offsets = [0, 16], sizes = [16, 16], strides = [1, 1]} : vector<16x128xf32> to vector<16x16xf32>
    %64 = vector.shape_cast %63 : vector<16x16xf32> to vector<2x8x16xf32>
    %65 = vector.extract_strided_slice %24 {offsets = [0, 32], sizes = [16, 16], strides = [1, 1]} : vector<16x128xf32> to vector<16x16xf32>
    %66 = vector.shape_cast %65 : vector<16x16xf32> to vector<2x8x16xf32>
    %67 = vector.extract_strided_slice %24 {offsets = [0, 48], sizes = [16, 16], strides = [1, 1]} : vector<16x128xf32> to vector<16x16xf32>
    %68 = vector.shape_cast %67 : vector<16x16xf32> to vector<2x8x16xf32>
    %69 = vector.extract_strided_slice %24 {offsets = [0, 64], sizes = [16, 16], strides = [1, 1]} : vector<16x128xf32> to vector<16x16xf32>
    %70 = vector.shape_cast %69 : vector<16x16xf32> to vector<2x8x16xf32>
    %71 = vector.extract_strided_slice %24 {offsets = [0, 80], sizes = [16, 16], strides = [1, 1]} : vector<16x128xf32> to vector<16x16xf32>
    %72 = vector.shape_cast %71 : vector<16x16xf32> to vector<2x8x16xf32>
    %73 = vector.extract_strided_slice %24 {offsets = [0, 96], sizes = [16, 16], strides = [1, 1]} : vector<16x128xf32> to vector<16x16xf32>
    %74 = vector.shape_cast %73 : vector<16x16xf32> to vector<2x8x16xf32>
    %75 = vector.extract_strided_slice %24 {offsets = [0, 112], sizes = [16, 16], strides = [1, 1]} : vector<16x128xf32> to vector<16x16xf32>
    %76 = vector.shape_cast %75 : vector<16x16xf32> to vector<2x8x16xf32>
    %77 = tpu.concatenate %62, %64, %66, %68, %70, %72, %74, %76 in 0 : vector<2x8x16xf32>, vector<2x8x16xf32>, vector<2x8x16xf32>, vector<2x8x16xf32>, vector<2x8x16xf32>, vector<2x8x16xf32>, vector<2x8x16xf32>, vector<2x8x16xf32> -> vector<16x8x16xf32>
    %78 = arith.truncf %77 : vector<16x8x16xf32> to vector<16x8x16xbf16>
    "tpu.trace_start"() <{level = 10 : i32, message = "gqd,gkd->gqk"}> : () -> ()
    %cst_9 = arith.constant dense<0.000000e+00> : vector<16x8x8xf32>
    %79 = tpu.matmul %42, %60, %cst_9 {dimension_numbers = #tpu.dot_dimension_numbers<[2], [2], [1], [1], [0, 0, 0, 1, 1, 1], [0], [0]>} : vector<16x8x16xbf16>, vector<16x8x16xbf16>, vector<16x8x8xf32> -> vector<16x8x8xf32>
    "tpu.trace_stop"() : () -> ()
    %c0_10 = arith.constant 0 : index
    %c0_11 = arith.constant 0 : index
    %80 = vector.load %arg2[%c0_10, %c0_11] : memref<16x8xf32, #tpu.memory_space<vmem>>, vector<16x8xf32>
    %81 = vector.shape_cast %80 : vector<16x8xf32> to vector<16x1x8xf32>
    %82 = vector.broadcast %81 : vector<16x1x8xf32> to vector<16x8x8xf32>
    %83 = arith.addf %79, %82 : vector<16x8x8xf32>
    %cst_12 = arith.constant dense<0xFF800000> : vector<16x8xf32>
    %84 = vector.multi_reduction <maximumf>, %83, %cst_12 [2] : vector<16x8x8xf32> to vector<16x8xf32>
    %85 = vector.shape_cast %84 : vector<16x8xf32> to vector<16x8x1xf32>
    %86 = vector.broadcast %85 : vector<16x8x1xf32> to vector<16x8x8xf32>
    %87 = arith.subf %83, %86 : vector<16x8x8xf32>
    %88 = math.exp %87 : vector<16x8x8xf32>
    %cst_13 = arith.constant dense<0.000000e+00> : vector<16x8xf32>
    %89 = vector.multi_reduction <add>, %88, %cst_13 [2] : vector<16x8x8xf32> to vector<16x8xf32>
    %90 = vector.shape_cast %89 : vector<16x8xf32> to vector<16x8x1xf32>
    %91 = tpu.reciprocal %90 {approx = true} : vector<16x8x1xf32> -> vector<16x8x1xf32>
    %92 = vector.broadcast %91 : vector<16x8x1xf32> to vector<16x8x8xf32>
    %93 = arith.mulf %88, %92 : vector<16x8x8xf32>
    %94 = arith.truncf %93 : vector<16x8x8xf32> to vector<16x8x8xbf16>
    "tpu.trace_start"() <{level = 10 : i32, message = "gqk,gkd->gqd"}> : () -> ()
    %cst_14 = arith.constant dense<0.000000e+00> : vector<16x8x16xf32>
    %95 = tpu.matmul %94, %78, %cst_14 {dimension_numbers = #tpu.dot_dimension_numbers<[2], [1], [1], [2], [0, 0, 0, 1, 1, 2], [0], [0]>} : vector<16x8x8xbf16>, vector<16x8x16xbf16>, vector<16x8x16xf32> -> vector<16x8x16xf32>
    "tpu.trace_stop"() : () -> ()
    %96 = vector.extract_strided_slice %95 {offsets = [0, 0, 0], sizes = [2, 8, 16], strides = [1, 1, 1]} : vector<16x8x16xf32> to vector<2x8x16xf32>
    %97 = vector.shape_cast %96 : vector<2x8x16xf32> to vector<16x16xf32>
    %98 = vector.extract_strided_slice %95 {offsets = [2, 0, 0], sizes = [2, 8, 16], strides = [1, 1, 1]} : vector<16x8x16xf32> to vector<2x8x16xf32>
    %99 = vector.shape_cast %98 : vector<2x8x16xf32> to vector<16x16xf32>
    %100 = vector.extract_strided_slice %95 {offsets = [4, 0, 0], sizes = [2, 8, 16], strides = [1, 1, 1]} : vector<16x8x16xf32> to vector<2x8x16xf32>
    %101 = vector.shape_cast %100 : vector<2x8x16xf32> to vector<16x16xf32>
    %102 = vector.extract_strided_slice %95 {offsets = [6, 0, 0], sizes = [2, 8, 16], strides = [1, 1, 1]} : vector<16x8x16xf32> to vector<2x8x16xf32>
    %103 = vector.shape_cast %102 : vector<2x8x16xf32> to vector<16x16xf32>
    %104 = vector.extract_strided_slice %95 {offsets = [8, 0, 0], sizes = [2, 8, 16], strides = [1, 1, 1]} : vector<16x8x16xf32> to vector<2x8x16xf32>
    %105 = vector.shape_cast %104 : vector<2x8x16xf32> to vector<16x16xf32>
    %106 = vector.extract_strided_slice %95 {offsets = [10, 0, 0], sizes = [2, 8, 16], strides = [1, 1, 1]} : vector<16x8x16xf32> to vector<2x8x16xf32>
    %107 = vector.shape_cast %106 : vector<2x8x16xf32> to vector<16x16xf32>
    %108 = vector.extract_strided_slice %95 {offsets = [12, 0, 0], sizes = [2, 8, 16], strides = [1, 1, 1]} : vector<16x8x16xf32> to vector<2x8x16xf32>
    %109 = vector.shape_cast %108 : vector<2x8x16xf32> to vector<16x16xf32>
    %110 = vector.extract_strided_slice %95 {offsets = [14, 0, 0], sizes = [2, 8, 16], strides = [1, 1, 1]} : vector<16x8x16xf32> to vector<2x8x16xf32>
    %111 = vector.shape_cast %110 : vector<2x8x16xf32> to vector<16x16xf32>
    %112 = tpu.concatenate %97, %99, %101, %103, %105, %107, %109, %111 in 1 : vector<16x16xf32>, vector<16x16xf32>, vector<16x16xf32>, vector<16x16xf32>, vector<16x16xf32>, vector<16x16xf32>, vector<16x16xf32>, vector<16x16xf32> -> vector<16x128xf32>
    %113 = arith.truncf %112 : vector<16x128xf32> to vector<16x128xbf16>
    %c0_15 = arith.constant 0 : index
    %c0_16 = arith.constant 0 : index
    %c0_17 = arith.constant 0 : index
    %114 = vector.load %arg4[%c0_15, %c0_16, %c0_17] : memref<1x128x128xbf16, #tpu.memory_space<vmem>>, vector<1x128x128xbf16>
    %115 = vector.shape_cast %114 : vector<1x128x128xbf16> to vector<128x128xbf16>
    %cst_18 = arith.constant dense<0.000000e+00> : vector<16x128xf32>
    %116 = tpu.matmul %113, %115, %cst_18 {dimension_numbers = #tpu.dot_dimension_numbers<[1], [0], [0], [1], [0, 0, 1, 1], [], []>} : vector<16x128xbf16>, vector<128x128xbf16>, vector<16x128xf32> -> vector<16x128xf32>
    %117 = vector.broadcast %7 : vector<1x128xf32> to vector<16x128xf32>
    %118 = arith.addf %116, %117 : vector<16x128xf32>
    %119 = arith.addf %3, %118 : vector<16x128xf32>
    %cst_19 = arith.constant dense<0.000000e+00> : vector<16xf32>
    %120 = vector.multi_reduction <add>, %119, %cst_19 [1] : vector<16x128xf32> to vector<16xf32>
    %121 = vector.shape_cast %120 : vector<16xf32> to vector<16x1xf32>
    %cst_20 = arith.constant 1.280000e+02 : f32
    %122 = vector.broadcast %cst_20 : f32 to vector<16x1xf32>
    %123 = arith.divf %121, %122 : vector<16x1xf32>
    %124 = vector.broadcast %123 : vector<16x1xf32> to vector<16x128xf32>
    %125 = arith.subf %119, %124 : vector<16x128xf32>
    %126 = arith.mulf %125, %125 : vector<16x128xf32>
    %cst_21 = arith.constant dense<0.000000e+00> : vector<16xf32>
    %127 = vector.multi_reduction <add>, %126, %cst_21 [1] : vector<16x128xf32> to vector<16xf32>
    %128 = vector.shape_cast %127 : vector<16xf32> to vector<16x1xf32>
    %cst_22 = arith.constant 1.280000e+02 : f32
    %129 = vector.broadcast %cst_22 : f32 to vector<16x1xf32>
    %130 = arith.divf %128, %129 : vector<16x1xf32>
    %131 = vector.broadcast %123 : vector<16x1xf32> to vector<16x128xf32>
    %132 = arith.subf %119, %131 : vector<16x128xf32>
    %cst_23 = arith.constant 9.99999974E-6 : f32
    %133 = vector.broadcast %cst_23 : f32 to vector<16x1xf32>
    %134 = arith.addf %130, %133 : vector<16x1xf32>
    %135 = math.rsqrt %134 : vector<16x1xf32>
    %136 = vector.broadcast %135 : vector<16x1xf32> to vector<16x128xf32>
    %137 = arith.mulf %132, %136 : vector<16x128xf32>
    %138 = vector.broadcast %8 : vector<1x128xf32> to vector<16x128xf32>
    %139 = arith.mulf %137, %138 : vector<16x128xf32>
    %140 = vector.broadcast %9 : vector<1x128xf32> to vector<16x128xf32>
    %141 = arith.addf %139, %140 : vector<16x128xf32>
    %142 = arith.truncf %141 : vector<16x128xf32> to vector<16x128xbf16>
    %c0_24 = arith.constant 0 : index
    %c0_25 = arith.constant 0 : index
    %c0_26 = arith.constant 0 : index
    %143 = vector.load %arg5[%c0_24, %c0_25, %c0_26] : memref<1x128x256xbf16, #tpu.memory_space<vmem>>, vector<1x128x256xbf16>
    %144 = vector.shape_cast %143 : vector<1x128x256xbf16> to vector<128x256xbf16>
    %cst_27 = arith.constant dense<0.000000e+00> : vector<16x256xf32>
    %145 = tpu.matmul %142, %144, %cst_27 {dimension_numbers = #tpu.dot_dimension_numbers<[1], [0], [0], [1], [0, 0, 1, 1], [], []>} : vector<16x128xbf16>, vector<128x256xbf16>, vector<16x256xf32> -> vector<16x256xf32>
    %146 = vector.broadcast %10 : vector<1x256xf32> to vector<16x256xf32>
    %147 = arith.addf %145, %146 : vector<16x256xf32>
    %cst_28 = arith.constant 0.000000e+00 : f32
    %148 = vector.broadcast %cst_28 : f32 to vector<16x256xf32>
    %149 = arith.maximumf %147, %148 : vector<16x256xf32>
    %150 = arith.truncf %149 : vector<16x256xf32> to vector<16x256xbf16>
    %c0_29 = arith.constant 0 : index
    %c0_30 = arith.constant 0 : index
    %c0_31 = arith.constant 0 : index
    %151 = vector.load %arg6[%c0_29, %c0_30, %c0_31] : memref<1x256x128xbf16, #tpu.memory_space<vmem>>, vector<1x256x128xbf16>
    %152 = vector.shape_cast %151 : vector<1x256x128xbf16> to vector<256x128xbf16>
    %cst_32 = arith.constant dense<0.000000e+00> : vector<16x128xf32>
    %153 = tpu.matmul %150, %152, %cst_32 {dimension_numbers = #tpu.dot_dimension_numbers<[1], [0], [0], [1], [0, 0, 1, 1], [], []>} : vector<16x256xbf16>, vector<256x128xbf16>, vector<16x128xf32> -> vector<16x128xf32>
    %154 = vector.broadcast %11 : vector<1x128xf32> to vector<16x128xf32>
    %155 = arith.addf %153, %154 : vector<16x128xf32>
    %156 = arith.addf %141, %155 : vector<16x128xf32>
    %cst_33 = arith.constant dense<0.000000e+00> : vector<16xf32>
    %157 = vector.multi_reduction <add>, %156, %cst_33 [1] : vector<16x128xf32> to vector<16xf32>
    %158 = vector.shape_cast %157 : vector<16xf32> to vector<16x1xf32>
    %cst_34 = arith.constant 1.280000e+02 : f32
    %159 = vector.broadcast %cst_34 : f32 to vector<16x1xf32>
    %160 = arith.divf %158, %159 : vector<16x1xf32>
    %161 = vector.broadcast %160 : vector<16x1xf32> to vector<16x128xf32>
    %162 = arith.subf %156, %161 : vector<16x128xf32>
    %163 = arith.mulf %162, %162 : vector<16x128xf32>
    %cst_35 = arith.constant dense<0.000000e+00> : vector<16xf32>
    %164 = vector.multi_reduction <add>, %163, %cst_35 [1] : vector<16x128xf32> to vector<16xf32>
    %165 = vector.shape_cast %164 : vector<16xf32> to vector<16x1xf32>
    %cst_36 = arith.constant 1.280000e+02 : f32
    %166 = vector.broadcast %cst_36 : f32 to vector<16x1xf32>
    %167 = arith.divf %165, %166 : vector<16x1xf32>
    %168 = vector.broadcast %160 : vector<16x1xf32> to vector<16x128xf32>
    %169 = arith.subf %156, %168 : vector<16x128xf32>
    %cst_37 = arith.constant 9.99999974E-6 : f32
    %170 = vector.broadcast %cst_37 : f32 to vector<16x1xf32>
    %171 = arith.addf %167, %170 : vector<16x1xf32>
    %172 = math.rsqrt %171 : vector<16x1xf32>
    %173 = vector.broadcast %172 : vector<16x1xf32> to vector<16x128xf32>
    %174 = arith.mulf %169, %173 : vector<16x128xf32>
    %175 = vector.broadcast %12 : vector<1x128xf32> to vector<16x128xf32>
    %176 = arith.mulf %174, %175 : vector<16x128xf32>
    %177 = vector.broadcast %13 : vector<1x128xf32> to vector<16x128xf32>
    %178 = arith.addf %176, %177 : vector<16x128xf32>
    %c0_38 = arith.constant 0 : index
    %c0_39 = arith.constant 0 : index
    %179 = vector.load %arg9[%c0_38, %c0_39] : memref<16x128xf32, #tpu.memory_space<vmem>>, vector<16x128xf32>
    tpu.vector_store %arg9[%c0_38, %c0_39], %178 {strides = array<i32>} : memref<16x128xf32, #tpu.memory_space<vmem>>, vector<16x128xf32>,
    %c5_i32 = arith.constant 5 : i32
    %180 = arith.cmpi eq, %arg0, %c5_i32 : i32
    %181 = arith.extui %180 : i1 to i32
    %c0_i32_40 = arith.constant 0 : i32
    %182 = arith.cmpi ne, %181, %c0_i32_40 : i32
    scf.if %182 {
      %c0_41 = arith.constant 0 : index
      %c0_42 = arith.constant 0 : index
      %183 = vector.load %arg8[%c0_41, %c0_42] : memref<16x128xf32, #tpu.memory_space<vmem>>, vector<16x128xf32>
      tpu.vector_store %arg8[%c0_41, %c0_42], %178 {strides = array<i32>} : memref<16x128xf32, #tpu.memory_space<vmem>>, vector<16x128xf32>,
    } else {
    }
    return
  }
  func.func @transform_0(%arg0: i32) -> (i32, i32) {
    %c0_i32 = arith.constant 0 : i32
    %c0_i32_0 = arith.constant 0 : i32
    %c0_i32_1 = arith.constant 0 : i32
    return %c0_i32, %c0_i32_0 : i32, i32
  }
  func.func @transform_1(%arg0: i32) -> (i32, i32) {
    %c0_i32 = arith.constant 0 : i32
    %c0_i32_0 = arith.constant 0 : i32
    %c0_i32_1 = arith.constant 0 : i32
    return %c0_i32, %c0_i32_0 : i32, i32
  }
  func.func @transform_2(%arg0: i32) -> (i32, i32, i32) {
    %c0_i32 = arith.constant 0 : i32
    %c0_i32_0 = arith.constant 0 : i32
    %c0_i32_1 = arith.constant 0 : i32
    return %arg0, %c0_i32, %c0_i32_0 : i32, i32, i32
  }
  func.func @transform_3(%arg0: i32) -> (i32, i32, i32) {
    %c0_i32 = arith.constant 0 : i32
    %c0_i32_0 = arith.constant 0 : i32
    %c0_i32_1 = arith.constant 0 : i32
    return %arg0, %c0_i32, %c0_i32_0 : i32, i32, i32
  }
  func.func @transform_4(%arg0: i32) -> (i32, i32, i32) {
    %c0_i32 = arith.constant 0 : i32
    %c0_i32_0 = arith.constant 0 : i32
    %c0_i32_1 = arith.constant 0 : i32
    return %arg0, %c0_i32, %c0_i32_0 : i32, i32, i32
  }
  func.func @transform_5(%arg0: i32) -> (i32, i32, i32) {
    %c0_i32 = arith.constant 0 : i32
    %c0_i32_0 = arith.constant 0 : i32
    %c0_i32_1 = arith.constant 0 : i32
    return %arg0, %c0_i32, %c0_i32_0 : i32, i32, i32
  }
  func.func @transform_6(%arg0: i32) -> (i32, i32, i32) {
    %c0_i32 = arith.constant 0 : i32
    %c0_i32_0 = arith.constant 0 : i32
    %c0_i32_1 = arith.constant 0 : i32
    return %arg0, %c0_i32, %c0_i32_0 : i32, i32, i32
  }
  func.func @transform_7(%arg0: i32) -> (i32, i32) {
    %c0_i32 = arith.constant 0 : i32
    %c0_i32_0 = arith.constant 0 : i32
    %c0_i32_1 = arith.constant 0 : i32
    return %c0_i32, %c0_i32_0 : i32, i32
  }
}

</mosaic_0001>

<llo_original>
// kernel: tpu_custom_call.1
$region0: #{tpu_custom_call.1}
  #allocation0 [shape = 'u32[]', space=smem, size = 0x4, offset = 0x4, fixed_abs, tag = 'smem constant byte address 0x4 - core index']
  #allocation1 [shape = 'u32[144,128]{1,0:T(1,128)}', space=vmem, size = 0x12000, scoped, tag = 'internal scratch']
  #allocation2 [shape = 'f32[16,128]{1,0:T(8,128)}', space=vmem, size = 0x2000, scoped, tag = 'scratch operand']
  %s0 = inlined_call_operand.vmem [shape: f32[16,128], index: 0, kind: input, shape index: {}]
  %s1 = inlined_call_operand.vmem [shape: f32[16,8], index: 1, kind: input, shape index: {}]
  %s2 = inlined_call_operand.hbm [shape: bf16[6,128,384], index: 2, kind: input, shape index: {}]
  %s3 = inlined_call_operand.hbm [shape: bf16[6,128,128], index: 3, kind: input, shape index: {}]
  %s4 = inlined_call_operand.hbm [shape: bf16[6,128,256], index: 4, kind: input, shape index: {}]
  %s5 = inlined_call_operand.hbm [shape: bf16[6,256,128], index: 5, kind: input, shape index: {}]
  %s6 = inlined_call_operand.hbm [shape: f32[6,8,384], index: 6, kind: input, shape index: {}]
  %s7 = inlined_call_operand.hbm [shape: f32[16,128], index: 7, kind: output, shape index: {}]
  %s8 = sld [smem:[#allocation0]]
  $region89: #{tpu_custom_call.1} parent=0
    _
  %s10 = ssub.s32 1, %s8
  %s11 = scalar_select 0, %s10, %s8
  $region1: #{tpu_custom_call.1} parent=0
    #allocation3 [shape = 'u8[196608]{0}', space=vmem, size = 0x30000, scoped, tag = 'input window, operand 2']
    #allocation4 [shape = 's32[2]{0}', space=sflag, size = 0x8, scoped, tag = 'scoped memory for tpu_custom_call.1']
    #allocation5 [shape = 's32[2]{0}', space=sflag, size = 0x8, scoped, tag = 'scoped memory for tpu_custom_call.1']
    #allocation6 [shape = 'u8[65536]{0}', space=vmem, size = 0x10000, scoped, tag = 'input window, operand 3']
    #allocation7 [shape = 's32[2]{0}', space=sflag, size = 0x8, scoped, tag = 'scoped memory for tpu_custom_call.1']
    #allocation8 [shape = 'u8[131072]{0}', space=vmem, size = 0x20000, scoped, tag = 'input window, operand 4']
    #allocation9 [shape = 'u8[131072]{0}', space=vmem, size = 0x20000, scoped, tag = 'input window, operand 5']
    #allocation10 [shape = 's32[2]{0}', space=sflag, size = 0x8, scoped, tag = 'scoped memory for tpu_custom_call.1']
    #allocation11 [shape = 'u8[24576]{0}', space=vmem, size = 0x6000, scoped, tag = 'input window, operand 6']
    #allocation12 [shape = 'u8[8192]{0}', space=vmem, size = 0x2000, scoped, tag = 'output window, operand 0, single buffered']
    %12 = vsyncpa [#allocation4], 0
    %s13 = scalar_lea.sflag [#allocation4], 1
    %14 = vsyncpa %s13, 0
    %15 = vsyncpa [#allocation7], 0
    %s16 = scalar_lea.sflag [#allocation7], 1
    %17 = vsyncpa %s16, 0
    %18 = vsyncpa [#allocation10], 0
    %s19 = scalar_lea.sflag [#allocation10], 1
    %20 = vsyncpa %s19, 0
    %21 = vsyncpa [#allocation5], 0
    loop: start=0, step=1, limit=8
    $region2: #{tpu_custom_call.1} parent=1 // loop_pre_header
      _
    $region3: #{tpu_custom_call.1} parent=1 // loop_header
      %s23 = sphi 0, %s27
      %p24 = scmp.ge.s32.totalorder %s23, 8
      %s31 = sphi 0, %s31
      %s33 = sphi 0, %s31
      %s34 = sphi 0, %s33
      %s48 = sphi 0, %s34
      %s52 = sphi 0, %s52
      %s54 = sphi 0, %s52
      %s55 = sphi 0, %s54
      %s69 = sphi 0, %s55
      %s75 = sphi 0, %s77
      %s78 = sphi 0, %s75
      %s79 = sphi 0, %s78
      %s95 = sphi 0, %s79
      %s101 = sphi 0, %s103
      %s104 = sphi 0, %s101
      %s105 = sphi 0, %s104
      %s121 = sphi 0, %s105
      %s127 = sphi 0, %s129
      %s130 = sphi 0, %s127
      %s131 = sphi 0, %s130
      %s147 = sphi 0, %s131
      %s153 = sphi 0, %s155
      %s156 = sphi 0, %s153
      %s157 = sphi 0, %s156
      %s173 = sphi 0, %s157
      %s179 = sphi 0, %s181
      %s182 = sphi 0, %s179
      %s183 = sphi 0, %s182
      %s199 = sphi 0, %s183
      %s203 = sphi 0, %s203
      %s205 = sphi 0, %s203
      %s206 = sphi 0, %s205
      %s220 = sphi 0, %s206
    $region4: #{tpu_custom_call.1} parent=1 // loop_header_branch
      %26 = sbr.rel (%p24) target = $region8
    $region5: #{tpu_custom_call.1} parent=1 // loop_body
      %s28 = ssub.s32 %s23, 1
      %s29 = ssub.s32 %s23, 2
      %s30 = sadd.s32 %s23, 1
      %s32 = sadd.s32 %s31, 1
      %p35 = scmp.eq.s32.totalorder %s23, 5
      %p36 = scmp.ne.s32.totalorder %s31, %s33
      %p37 = scmp.eq.s32.totalorder %s23, 0
      %p38 = por %p36, %p37
      %p39 = scmp.ne.s32.totalorder %s31, %s33
      %p40 = scmp.eq.s32.totalorder %s28, 5
      %p41 = por %p39, %p40
      %p42 = scmp.ne.s32.totalorder %s33, %s34
      %p43 = scmp.eq.s32.totalorder %s28, 0
      %p44 = por %p42, %p43
      %p45 = scmp.ne.s32.totalorder %s33, %s34
      %p46 = scmp.eq.s32.totalorder %s29, 5
      %p47 = por %p45, %p46
      %p49 = scmp.ne.s32.totalorder %s34, %s48
      %p50 = scmp.eq.s32.totalorder %s29, 0
      %p51 = por %p49, %p50
      %s53 = sadd.s32 %s52, 1
      %p56 = scmp.eq.s32.totalorder %s23, 5
      %p57 = scmp.ne.s32.totalorder %s52, %s54
      %p58 = scmp.eq.s32.totalorder %s23, 0
      %p59 = por %p57, %p58
      %p60 = scmp.ne.s32.totalorder %s52, %s54
      %p61 = scmp.eq.s32.totalorder %s28, 5
      %p62 = por %p60, %p61
      %p63 = scmp.ne.s32.totalorder %s54, %s55
      %p64 = scmp.eq.s32.totalorder %s28, 0
      %p65 = por %p63, %p64
      %p66 = scmp.ne.s32.totalorder %s54, %s55
      %p67 = scmp.eq.s32.totalorder %s29, 5
      %p68 = por %p66, %p67
      %p70 = scmp.ne.s32.totalorder %s55, %s69
      %p71 = scmp.eq.s32.totalorder %s29, 0
      %p72 = por %p70, %p71
      %s73 = ssub.s32 %s23, %s30
      %p74 = scmp.eq.s32.totalorder %s73, 0
      %s76 = sadd.s32 %s75, 1
      %s77 = scalar_select %p74, %s75, %s76
      %p80 = pneg %p74
      %p81 = scmp.eq.s32.totalorder %s23, 5
      %p82 = por %p80, %p81
      %p83 = scmp.ne.s32.totalorder %s75, %s78
      %p84 = scmp.eq.s32.totalorder %s23, 0
      %p85 = por %p83, %p84
      %p86 = scmp.ne.s32.totalorder %s75, %s78
      %p87 = scmp.eq.s32.totalorder %s28, 5
      %p88 = por %p86, %p87
      %p89 = scmp.ne.s32.totalorder %s78, %s79
      %p90 = scmp.eq.s32.totalorder %s28, 0
      %p91 = por %p89, %p90
      %p92 = scmp.ne.s32.totalorder %s78, %s79
      %p93 = scmp.eq.s32.totalorder %s29, 5
      %p94 = por %p92, %p93
      %p96 = scmp.ne.s32.totalorder %s79, %s95
      %p97 = scmp.eq.s32.totalorder %s29, 0
      %p98 = por %p96, %p97
      %s99 = ssub.s32 %s23, %s30
      %p100 = scmp.eq.s32.totalorder %s99, 0
      %s102 = sadd.s32 %s101, 1
      %s103 = scalar_select %p100, %s101, %s102
      %p106 = pneg %p100
      %p107 = scmp.eq.s32.totalorder %s23, 5
      %p108 = por %p106, %p107
      %p109 = scmp.ne.s32.totalorder %s101, %s104
      %p110 = scmp.eq.s32.totalorder %s23, 0
      %p111 = por %p109, %p110
      %p112 = scmp.ne.s32.totalorder %s101, %s104
      %p113 = scmp.eq.s32.totalorder %s28, 5
      %p114 = por %p112, %p113
      %p115 = scmp.ne.s32.totalorder %s104, %s105
      %p116 = scmp.eq.s32.totalorder %s28, 0
      %p117 = por %p115, %p116
      %p118 = scmp.ne.s32.totalorder %s104, %s105
      %p119 = scmp.eq.s32.totalorder %s29, 5
      %p120 = por %p118, %p119
      %p122 = scmp.ne.s32.totalorder %s105, %s121
      %p123 = scmp.eq.s32.totalorder %s29, 0
      %p124 = por %p122, %p123
      %s125 = ssub.s32 %s23, %s30
      %p126 = scmp.eq.s32.totalorder %s125, 0
      %s128 = sadd.s32 %s127, 1
      %s129 = scalar_select %p126, %s127, %s128
      %p132 = pneg %p126
      %p133 = scmp.eq.s32.totalorder %s23, 5
      %p134 = por %p132, %p133
      %p135 = scmp.ne.s32.totalorder %s127, %s130
      %p136 = scmp.eq.s32.totalorder %s23, 0
      %p137 = por %p135, %p136
      %p138 = scmp.ne.s32.totalorder %s127, %s130
      %p139 = scmp.eq.s32.totalorder %s28, 5
      %p140 = por %p138, %p139
      %p141 = scmp.ne.s32.totalorder %s130, %s131
      %p142 = scmp.eq.s32.totalorder %s28, 0
      %p143 = por %p141, %p142
      %p144 = scmp.ne.s32.totalorder %s130, %s131
      %p145 = scmp.eq.s32.totalorder %s29, 5
      %p146 = por %p144, %p145
      %p148 = scmp.ne.s32.totalorder %s131, %s147
      %p149 = scmp.eq.s32.totalorder %s29, 0
      %p150 = por %p148, %p149
      %s151 = ssub.s32 %s23, %s30
      %p152 = scmp.eq.s32.totalorder %s151, 0
      %s154 = sadd.s32 %s153, 1
      %s155 = scalar_select %p152, %s153, %s154
      %p158 = pneg %p152
      %p159 = scmp.eq.s32.totalorder %s23, 5
      %p160 = por %p158, %p159
      %p161 = scmp.ne.s32.totalorder %s153, %s156
      %p162 = scmp.eq.s32.totalorder %s23, 0
      %p163 = por %p161, %p162
      %p164 = scmp.ne.s32.totalorder %s153, %s156
      %p165 = scmp.eq.s32.totalorder %s28, 5
      %p166 = por %p164, %p165
      %p167 = scmp.ne.s32.totalorder %s156, %s157
      %p168 = scmp.eq.s32.totalorder %s28, 0
      %p169 = por %p167, %p168
      %p170 = scmp.ne.s32.totalorder %s156, %s157
      %p171 = scmp.eq.s32.totalorder %s29, 5
      %p172 = por %p170, %p171
      %p174 = scmp.ne.s32.totalorder %s157, %s173
      %p175 = scmp.eq.s32.totalorder %s29, 0
      %p176 = por %p174, %p175
      %s177 = ssub.s32 %s23, %s30
      %p178 = scmp.eq.s32.totalorder %s177, 0
      %s180 = sadd.s32 %s179, 1
      %s181 = scalar_select %p178, %s179, %s180
      %p184 = pneg %p178
      %p185 = scmp.eq.s32.totalorder %s23, 5
      %p186 = por %p184, %p185
      %p187 = scmp.ne.s32.totalorder %s179, %s182
      %p188 = scmp.eq.s32.totalorder %s23, 0
      %p189 = por %p187, %p188
      %p190 = scmp.ne.s32.totalorder %s179, %s182
      %p191 = scmp.eq.s32.totalorder %s28, 5
      %p192 = por %p190, %p191
      %p193 = scmp.ne.s32.totalorder %s182, %s183
      %p194 = scmp.eq.s32.totalorder %s28, 0
      %p195 = por %p193, %p194
      %p196 = scmp.ne.s32.totalorder %s182, %s183
      %p197 = scmp.eq.s32.totalorder %s29, 5
      %p198 = por %p196, %p197
      %p200 = scmp.ne.s32.totalorder %s183, %s199
      %p201 = scmp.eq.s32.totalorder %s29, 0
      %p202 = por %p200, %p201
      %s204 = sadd.s32 %s203, 1
      %p207 = scmp.eq.s32.totalorder %s23, 5
      %p208 = scmp.ne.s32.totalorder %s203, %s205
      %p209 = scmp.eq.s32.totalorder %s23, 0
      %p210 = por %p208, %p209
      %p211 = scmp.ne.s32.totalorder %s203, %s205
      %p212 = scmp.eq.s32.totalorder %s28, 5
      %p213 = por %p211, %p212
      %p214 = scmp.ne.s32.totalorder %s205, %s206
      %p215 = scmp.eq.s32.totalorder %s28, 0
      %p216 = por %p214, %p215
      %p217 = scmp.ne.s32.totalorder %s205, %s206
      %p218 = scmp.eq.s32.totalorder %s29, 5
      %p219 = por %p217, %p218
      %p221 = scmp.ne.s32.totalorder %s206, %s220
      %p222 = scmp.eq.s32.totalorder %s29, 0
      %p223 = por %p221, %p222
      %p224 = scmp.le.s32.totalorder 1, %s23
      %p225 = scmp.lt.s32.totalorder %s23, 7
      %p226 = pnand %p224, %p225
      %p227 = pneg %p226
      // Predicated region
      $region9: #{tpu_custom_call.1} parent=5 // pred_check
        _
      $region10: #{tpu_custom_call.1} parent=5 // pred_check_branch
        %229 = sbr.rel (%p226) target = $region12
      $region11: #{tpu_custom_call.1} parent=5 // pred_region
        %s230 = ssub.s32 %s23, 1
        // Predicated region
        $region13: #{tpu_custom_call.1} parent=11 // pred_check
          %p231 = pneg %p44
        $region14: #{tpu_custom_call.1} parent=11 // pred_check_branch
          %233 = sbr.rel (%p231) target = $region16
        $region15: #{tpu_custom_call.1} parent=11 // pred_region
          _
        $region16: #{tpu_custom_call.1} parent=11 // pred_fallthru
          _
        // Predicated region
        $region17: #{tpu_custom_call.1} parent=11 // pred_check
          %p234 = pneg %p65
        $region18: #{tpu_custom_call.1} parent=11 // pred_check_branch
          %236 = sbr.rel (%p234) target = $region20
        $region19: #{tpu_custom_call.1} parent=11 // pred_region
          _
        $region20: #{tpu_custom_call.1} parent=11 // pred_fallthru
          _
      $region12: #{tpu_custom_call.1} parent=5 // pred_fallthru
        _
      %p237 = scmp.lt.s32.totalorder %s23, 6
      // Predicated region
      $region21: #{tpu_custom_call.1} parent=5 // pred_check
        %p238 = pneg %p237
      $region22: #{tpu_custom_call.1} parent=5 // pred_check_branch
        %240 = sbr.rel (%p238) target = $region24
      $region23: #{tpu_custom_call.1} parent=5 // pred_region
        // Predicated region
        $region25: #{tpu_custom_call.1} parent=23 // pred_check
          %p241 = pneg %p85
        $region26: #{tpu_custom_call.1} parent=23 // pred_check_branch
          %243 = sbr.rel (%p241) target = $region28
        $region27: #{tpu_custom_call.1} parent=23 // pred_region
          %s244 = sand.u32 %s75, 1
          %s245 = scalar_lea.sflag [#allocation4], %s244
          %s246 = sand.u32 %s75, 1
          %s247 = smul.addr %s246, 192
          %s248 = scalar_lea.vmem [#allocation3], %s247
          %s250 = ssub.s32 3072, 3072
          %251 = vsyncadd %s245, %s250
          %s252 = smul.addr %s23, 48
          %s253 = smul.addr %s252, 64
          %s254 = scalar_lea.hbm %s2, %s253
          %s255 = sshll.u32 %s248, 4
          %s256 = int_to_ptr.vmem [resolvable:$true] %s255
          %261 = dma.hbm_to_vmem [thread:$0]  %s254, 3072, %s256, %s245, 192, 192, 12
        $region28: #{tpu_custom_call.1} parent=23 // pred_fallthru
          _
        // Predicated region
        $region29: #{tpu_custom_call.1} parent=23 // pred_check
          %p262 = pneg %p111
        $region30: #{tpu_custom_call.1} parent=23 // pred_check_branch
          %264 = sbr.rel (%p262) target = $region32
        $region31: #{tpu_custom_call.1} parent=23 // pred_region
          %s265 = sand.u32 %s23, 1
          %s266 = scalar_lea.sflag [#allocation7], %s265
          %s267 = sand.u32 %s101, 1
          %s268 = smul.addr %s267, 64
          %s269 = scalar_lea.vmem [#allocation6], %s268
          %s271 = ssub.s32 1024, 1024
          %272 = vsyncadd %s266, %s271
          %s273 = smul.addr %s23, 16
          %s274 = smul.addr %s273, 64
          %s275 = scalar_lea.hbm %s3, %s274
          %s276 = sshll.u32 %s269, 4
          %s277 = int_to_ptr.vmem [resolvable:$true] %s276
          %282 = dma.hbm_to_vmem [thread:$0]  %s275, 1024, %s277, %s266, 64, 64, 4
        $region32: #{tpu_custom_call.1} parent=23 // pred_fallthru
          _
        // Predicated region
        $region33: #{tpu_custom_call.1} parent=23 // pred_check
          %p283 = pneg %p137
        $region34: #{tpu_custom_call.1} parent=23 // pred_check_branch
          %285 = sbr.rel (%p283) target = $region36
        $region35: #{tpu_custom_call.1} parent=23 // pred_region
          %s286 = sand.u32 %s23, 1
          %s287 = scalar_lea.sflag [#allocation7], %s286
          %s288 = sand.u32 %s127, 1
          %s289 = smul.addr %s288, 128
          %s290 = scalar_lea.vmem [#allocation8], %s289
          %s292 = ssub.s32 2048, 2048
          %293 = vsyncadd %s287, %s292
          %s294 = smul.addr %s23, 32
          %s295 = smul.addr %s294, 64
          %s296 = scalar_lea.hbm %s4, %s295
          %s297 = sshll.u32 %s290, 4
          %s298 = int_to_ptr.vmem [resolvable:$true] %s297
          %303 = dma.hbm_to_vmem [thread:$0]  %s296, 2048, %s298, %s287, 128, 128, 8
        $region36: #{tpu_custom_call.1} parent=23 // pred_fallthru
          _
        // Predicated region
        $region37: #{tpu_custom_call.1} parent=23 // pred_check
          %p304 = pneg %p163
        $region38: #{tpu_custom_call.1} parent=23 // pred_check_branch
          %306 = sbr.rel (%p304) target = $region40
        $region39: #{tpu_custom_call.1} parent=23 // pred_region
          %s307 = sand.u32 %s23, 1
          %s308 = scalar_lea.sflag [#allocation10], %s307
          %s309 = sand.u32 %s153, 1
          %s310 = smul.addr %s309, 128
          %s311 = scalar_lea.vmem [#allocation9], %s310
          %s313 = ssub.s32 2048, 2048
          %314 = vsyncadd %s308, %s313
          %s315 = smul.addr %s23, 32
          %s316 = smul.addr %s315, 64
          %s317 = scalar_lea.hbm %s5, %s316
          %s318 = sshll.u32 %s311, 4
          %s319 = int_to_ptr.vmem [resolvable:$true] %s318
          %324 = dma.hbm_to_vmem [thread:$0]  %s317, 2048, %s319, %s308, 64, 64, 4
        $region40: #{tpu_custom_call.1} parent=23 // pred_fallthru
          _
        // Predicated region
        $region41: #{tpu_custom_call.1} parent=23 // pred_check
          %p325 = pneg %p189
        $region42: #{tpu_custom_call.1} parent=23 // pred_check_branch
          %327 = sbr.rel (%p325) target = $region44
        $region43: #{tpu_custom_call.1} parent=23 // pred_region
          %s328 = sand.u32 %s23, 1
          %s329 = scalar_lea.sflag [#allocation10], %s328
          %s330 = sand.u32 %s179, 1
          %s331 = smul.addr %s330, 24
          %s332 = scalar_lea.vmem [#allocation11], %s331
          %s334 = ssub.s32 384, 384
          %335 = vsyncadd %s329, %s334
          %s336 = smul.addr %s23, 3
          %s337 = smul.addr %s336, 128
          %s338 = scalar_lea.hbm %s6, %s337
          %s340 = sshll.u32 %s332, 4
          %s341 = int_to_ptr.vmem [resolvable:$true] %s340
          %343 = dma.hbm_to_vmem [thread:$0]  %s338, 384, %s341, %s329
        $region44: #{tpu_custom_call.1} parent=23 // pred_fallthru
          _
      $region24: #{tpu_custom_call.1} parent=5 // pred_fallthru
        _
      %p344 = scmp.le.s32.totalorder 1, %s23
      %p345 = scmp.lt.s32.totalorder %s23, 7
      %p346 = pnand %p344, %p345
      %p347 = pneg %p346
      // Predicated region
      $region45: #{tpu_custom_call.1} parent=5 // pred_check
        _
      $region46: #{tpu_custom_call.1} parent=5 // pred_check_branch
        %349 = sbr.rel (%p346) target = $region48
      $region47: #{tpu_custom_call.1} parent=5 // pred_region
        %s350 = ssub.s32 %s23, 1
        %s351 = sand.u32 %s78, 1
        %s352 = scalar_lea.sflag [#allocation4], %s351
        %s353 = sand.u32 %s78, 1
        %s354 = smul.addr %s353, 192
        %s355 = scalar_lea.vmem [#allocation3], %s354
        // Predicated region
        $region49: #{tpu_custom_call.1} parent=47 // pred_check
          %p356 = pneg %p91
        $region50: #{tpu_custom_call.1} parent=47 // pred_check_branch
          %358 = sbr.rel (%p356) target = $region52
        $region51: #{tpu_custom_call.1} parent=47 // pred_region
          %359 = dma.done %s352, 3072
        $region52: #{tpu_custom_call.1} parent=47 // pred_fallthru
          _
        %s360 = sand.u32 %s28, 1
        %s361 = scalar_lea.sflag [#allocation7], %s360
        %s362 = sand.u32 %s104, 1
        %s363 = smul.addr %s362, 64
        %s364 = scalar_lea.vmem [#allocation6], %s363
        // Predicated region
        $region53: #{tpu_custom_call.1} parent=47 // pred_check
          %p365 = pneg %p117
        $region54: #{tpu_custom_call.1} parent=47 // pred_check_branch
          %367 = sbr.rel (%p365) target = $region56
        $region55: #{tpu_custom_call.1} parent=47 // pred_region
          %368 = dma.done %s361, 1024
        $region56: #{tpu_custom_call.1} parent=47 // pred_fallthru
          _
        %s369 = sand.u32 %s28, 1
        %s370 = scalar_lea.sflag [#allocation7], %s369
        %s371 = sand.u32 %s130, 1
        %s372 = smul.addr %s371, 128
        %s373 = scalar_lea.vmem [#allocation8], %s372
        // Predicated region
        $region57: #{tpu_custom_call.1} parent=47 // pred_check
          %p374 = pneg %p143
        $region58: #{tpu_custom_call.1} parent=47 // pred_check_branch
          %376 = sbr.rel (%p374) target = $region60
        $region59: #{tpu_custom_call.1} parent=47 // pred_region
          %377 = dma.done %s370, 2048
        $region60: #{tpu_custom_call.1} parent=47 // pred_fallthru
          _
        %s378 = sand.u32 %s28, 1
        %s379 = scalar_lea.sflag [#allocation10], %s378
        %s380 = sand.u32 %s156, 1
        %s381 = smul.addr %s380, 128
        %s382 = scalar_lea.vmem [#allocation9], %s381
        // Predicated region
        $region61: #{tpu_custom_call.1} parent=47 // pred_check
          %p383 = pneg %p169
        $region62: #{tpu_custom_call.1} parent=47 // pred_check_branch
          %385 = sbr.rel (%p383) target = $region64
        $region63: #{tpu_custom_call.1} parent=47 // pred_region
          %386 = dma.done %s379, 2048
        $region64: #{tpu_custom_call.1} parent=47 // pred_fallthru
          _
        %s387 = sand.u32 %s28, 1
        %s388 = scalar_lea.sflag [#allocation10], %s387
        %s389 = sand.u32 %s182, 1
        %s390 = smul.addr %s389, 24
        %s391 = scalar_lea.vmem [#allocation11], %s390
        // Predicated region
        $region65: #{tpu_custom_call.1} parent=47 // pred_check
          %p392 = pneg %p195
        $region66: #{tpu_custom_call.1} parent=47 // pred_check_branch
          %394 = sbr.rel (%p392) target = $region68
        $region67: #{tpu_custom_call.1} parent=47 // pred_region
          %395 = dma.done %s388, 384
        $region68: #{tpu_custom_call.1} parent=47 // pred_fallthru
          _
        %p396 = pneg %p44
        %p397 = pneg %p41
        %p398 = pneg %p65
        %p399 = pneg %p62
        %s400 = sand.u32 %s78, 1
        %s401 = scalar_lea.sflag [#allocation4], %s400
        %s402 = sand.u32 %s78, 1
        %s403 = smul.addr %s402, 192
        %s404 = scalar_lea.vmem [#allocation3], %s403
        %p405 = pneg %p91
        %p406 = pneg %p88
        %s407 = sand.u32 %s28, 1
        %s408 = scalar_lea.sflag [#allocation7], %s407
        %s409 = sand.u32 %s104, 1
        %s410 = smul.addr %s409, 64
        %s411 = scalar_lea.vmem [#allocation6], %s410
        %p412 = pneg %p117
        %p413 = pneg %p114
        %s414 = sand.u32 %s28, 1
        %s415 = scalar_lea.sflag [#allocation7], %s414
        %s416 = sand.u32 %s130, 1
        %s417 = smul.addr %s416, 128
        %s418 = scalar_lea.vmem [#allocation8], %s417
        %p419 = pneg %p143
        %p420 = pneg %p140
        %s421 = sand.u32 %s28, 1
        %s422 = scalar_lea.sflag [#allocation10], %s421
        %s423 = sand.u32 %s156, 1
        %s424 = smul.addr %s423, 128
        %s425 = scalar_lea.vmem [#allocation9], %s424
        %p426 = pneg %p169
        %p427 = pneg %p166
        %s428 = sand.u32 %s28, 1
        %s429 = scalar_lea.sflag [#allocation10], %s428
        %s430 = sand.u32 %s182, 1
        %s431 = smul.addr %s430, 24
        %s432 = scalar_lea.vmem [#allocation11], %s431
        %p433 = pneg %p195
        %p434 = pneg %p192
        %p435 = pneg %p216
        %p436 = pneg %p213
        %p438 = scmp.eq.s32.totalorder %s28, 0
        // Predicated region
        $region69: #{tpu_custom_call.1} parent=47 // pred_check
          %p439 = pneg %p438
        $region70: #{tpu_custom_call.1} parent=47 // pred_check_branch
          %441 = sbr.rel (%p439) target = $region72
        $region71: #{tpu_custom_call.1} parent=47 // pred_region
          %v442 = vld [vmem:[%s0] sm:$0xff]
          %v443 = vld [vmem:[%s0 + $0x8] sm:$0xff]
          %444 = vst [vmem:[#allocation2] sm:$0xff] %v442
          %445 = vst [vmem:[#allocation2 + $0x8] sm:$0xff] %v443
        $region72: #{tpu_custom_call.1} parent=47 // pred_fallthru
          _
        %v446 = vld [vmem:[#allocation2] sm:$0xff]
        %v447 = vld [vmem:[#allocation2 + $0x8] sm:$0xff]
        %v448 = vld [vmem:[%s391] sm:$0xff]
        %v449 = vld [vmem:[%s391 + $0x8] sm:$0xff]
        %v450 = vld [vmem:[%s391 + $0x10] sm:$0xff]
        %v451 = vpack.c.bf16 %v447, %v446
        %v452 = vld [vmem:[%s355] sm:$0xff]
        %v453 = vld [vmem:[%s355 + $0x8] sm:$0xf]
        %v454 = vld [vmem:[%s355 + $0xc] sm:$0xff]
        %v455 = vld [vmem:[%s355 + $0x14] sm:$0xf]
        %v456 = vld [vmem:[%s355 + $0x18] sm:$0xff]
        %v457 = vld [vmem:[%s355 + $0x20] sm:$0xf]
        %v458 = vld [vmem:[%s355 + $0x24] sm:$0xff]
        %v459 = vld [vmem:[%s355 + $0x2c] sm:$0xf]
        %v460 = vld [vmem:[%s355 + $0x30] sm:$0xff]
        %v461 = vld [vmem:[%s355 + $0x38] sm:$0xf]
        %v462 = vld [vmem:[%s355 + $0x3c] sm:$0xff]
        %v463 = vld [vmem:[%s355 + $0x44] sm:$0xf]
        %v464 = vld [vmem:[%s355 + $0x48] sm:$0xff]
        %v465 = vld [vmem:[%s355 + $0x50] sm:$0xf]
        %v466 = vld [vmem:[%s355 + $0x54] sm:$0xff]
        %v467 = vld [vmem:[%s355 + $0x5c] sm:$0xf]
        %v468 = vld [vmem:[%s355 + $0x60] sm:$0xff]
        %v469 = vld [vmem:[%s355 + $0x68] sm:$0xf]
        %v470 = vld [vmem:[%s355 + $0x6c] sm:$0xff]
        %v471 = vld [vmem:[%s355 + $0x74] sm:$0xf]
        %v472 = vld [vmem:[%s355 + $0x78] sm:$0xff]
        %v473 = vld [vmem:[%s355 + $0x80] sm:$0xf]
        %v474 = vld [vmem:[%s355 + $0x84] sm:$0xff]
        %v475 = vld [vmem:[%s355 + $0x8c] sm:$0xf]
        %v476 = vld [vmem:[%s355 + $0x90] sm:$0xff]
        %v477 = vld [vmem:[%s355 + $0x98] sm:$0xf]
        %v478 = vld [vmem:[%s355 + $0x9c] sm:$0xff]
        %v479 = vld [vmem:[%s355 + $0xa4] sm:$0xf]
        %v480 = vld [vmem:[%s355 + $0xa8] sm:$0xff]
        %v481 = vld [vmem:[%s355 + $0xb0] sm:$0xf]
        %v482 = vld [vmem:[%s355 + $0xb4] sm:$0xff]
        %v483 = vld [vmem:[%s355 + $0xbc] sm:$0xf]
        %v484 = vlaneseq
        %v485 = vshrl.u32 %v484, 7
        %v486 = vsub.s32 0, %v485
        %v487 = vrot.slane %v448, %v486
        %v488 = vlaneseq
        %v489 = vshrl.u32 %v488, 7
        %v490 = vsub.s32 0, %v489
        %v491 = vrot.slane %v449, %v490
        %v492 = vlaneseq
        %v493 = vshrl.u32 %v492, 7
        %v494 = vsub.s32 0, %v493
        %v495 = vrot.slane %v450, %v494
        %v528 = vunpack.c.l.b16 %v452
        %v529 = vunpack.c.h.b16 %v452
        %v530 = vunpack.c.l.b16 %v453
        %v531 = vunpack.c.l.b16 %v454
        %v532 = vunpack.c.h.b16 %v454
        %v533 = vunpack.c.l.b16 %v455
        %v534 = vunpack.c.l.b16 %v456
        %v535 = vunpack.c.h.b16 %v456
        %v536 = vunpack.c.l.b16 %v457
        %v537 = vunpack.c.l.b16 %v458
        %v538 = vunpack.c.h.b16 %v458
        %v539 = vunpack.c.l.b16 %v459
        %v540 = vunpack.c.l.b16 %v460
        %v541 = vunpack.c.h.b16 %v460
        %v542 = vunpack.c.l.b16 %v461
        %v543 = vunpack.c.l.b16 %v462
        %v544 = vunpack.c.h.b16 %v462
        %v545 = vunpack.c.l.b16 %v463
        %v546 = vunpack.c.l.b16 %v464
        %v547 = vunpack.c.h.b16 %v464
        %v548 = vunpack.c.l.b16 %v465
        %v549 = vunpack.c.l.b16 %v466
        %v550 = vunpack.c.h.b16 %v466
        %v551 = vunpack.c.l.b16 %v467
        %v552 = vunpack.c.l.b16 %v468
        %v553 = vunpack.c.h.b16 %v468
        %v554 = vunpack.c.l.b16 %v469
        %v555 = vunpack.c.l.b16 %v470
        %v556 = vunpack.c.h.b16 %v470
        %v557 = vunpack.c.l.b16 %v471
        %v558 = vunpack.c.l.b16 %v472
        %v559 = vunpack.c.h.b16 %v472
        %v560 = vunpack.c.l.b16 %v473
        %v561 = vunpack.c.l.b16 %v474
        %v562 = vunpack.c.h.b16 %v474
        %v563 = vunpack.c.l.b16 %v475
        %v564 = vunpack.c.l.b16 %v476
        %v565 = vunpack.c.h.b16 %v476
        %v566 = vunpack.c.l.b16 %v477
        %v567 = vunpack.c.l.b16 %v478
        %v568 = vunpack.c.h.b16 %v478
        %v569 = vunpack.c.l.b16 %v479
        %v570 = vunpack.c.l.b16 %v480
        %v571 = vunpack.c.h.b16 %v480
        %v572 = vunpack.c.l.b16 %v481
        %v573 = vunpack.c.l.b16 %v482
        %v574 = vunpack.c.h.b16 %v482
        %v575 = vunpack.c.l.b16 %v483
        %v576 = vpack.c.b16 %v531, %v528
        %v577 = vpack.c.b16 %v532, %v529
        %v578 = vpack.c.b16 %v533, %v530
        %v579 = vpack.c.b16 %v537, %v534
        %v580 = vpack.c.b16 %v538, %v535
        %v581 = vpack.c.b16 %v539, %v536
        %v582 = vpack.c.b16 %v543, %v540
        %v583 = vpack.c.b16 %v544, %v541
        %v584 = vpack.c.b16 %v545, %v542
        %v585 = vpack.c.b16 %v549, %v546
        %v586 = vpack.c.b16 %v550, %v547
        %v587 = vpack.c.b16 %v551, %v548
        %v588 = vpack.c.b16 %v555, %v552
        %v589 = vpack.c.b16 %v556, %v553
        %v590 = vpack.c.b16 %v557, %v554
        %v591 = vpack.c.b16 %v561, %v558
        %v592 = vpack.c.b16 %v562, %v559
        %v593 = vpack.c.b16 %v563, %v560
        %v594 = vpack.c.b16 %v567, %v564
        %v595 = vpack.c.b16 %v568, %v565
        %v596 = vpack.c.b16 %v569, %v566
        %v597 = vpack.c.b16 %v573, %v570
        %v598 = vpack.c.b16 %v574, %v571
        %v599 = vpack.c.b16 %v575, %v572
        %624 = vmatprep.subr.bf16.mxu0 %v577
        %625 = vmatpush1.bf16.msra.mxu0 %v576
        %626 = vmatprep.subr.bf16.mxu0 %v580
        %627 = vmatpush1.bf16.msra.mxu0 %v579
        %628 = vmatprep.subr.bf16.mxu0 %v583
        %629 = vmatpush1.bf16.msra.mxu0 %v582
        %630 = vmatprep.subr.bf16.mxu0 %v586
        %631 = vmatpush1.bf16.msra.mxu0 %v585
        %632 = vmatprep.subr.bf16.mxu0 %v589
        %633 = vmatpush1.bf16.msra.mxu0 %v588
        %634 = vmatprep.subr.bf16.mxu0 %v592
        %635 = vmatpush1.bf16.msra.mxu0 %v591
        %636 = vmatprep.subr.bf16.mxu0 %v595
        %637 = vmatpush1.bf16.msra.mxu0 %v594
        %638 = vmatprep.subr.bf16.mxu0 %v598
        %639 = vmatpush1.bf16.msra.mxu0 %v597
        %640 = vmatprep.subr.bf16.mxu0 0
        %641 = vmatpush1.bf16.msra.mxu0 0
        %642 = vmatprep.subr.bf16.mxu0 0
        %643 = vmatpush1.bf16.msra.mxu0 0
        %644 = vmatprep.subr.bf16.mxu0 0
        %645 = vmatpush1.bf16.msra.mxu0 0
        %646 = vmatprep.subr.bf16.mxu0 0
        %647 = vmatpush1.bf16.msra.mxu0 0
        %648 = vmatprep.subr.bf16.mxu0 0
        %649 = vmatpush1.bf16.msra.mxu0 0
        %650 = vmatprep.subr.bf16.mxu0 0
        %651 = vmatpush1.bf16.msra.mxu0 0
        %652 = vmatprep.subr.bf16.mxu0 0
        %653 = vmatpush1.bf16.msra.mxu0 0
        %654 = vmatprep.subr.bf16.mxu0 0
        %655 = vmatpush1.bf16.msra.mxu0 0
        %656 = vmatprep.mubr.bf16.mxu0 0
        %657 = vmatmul.mubr.bf16.gmra.mrb[0].mxu0 %v451
        %v658 = vpop.f32.mrb[0].mxu0
        %v659 = vadd.f32 %v487, %v658
        %v660 = vpop.f32.mrb[0].mxu0
        %v661 = vadd.f32 %v491, %v660
        %v662 = vpop.f32.mrb[0].mxu0
        %v663 = vadd.f32 %v487, %v662
        %v664 = vpop.f32.mrb[0].mxu0
        %v665 = vadd.f32 %v491, %v664
        %666 = vdwg.mxu0
        %667 = vmatprep.subr.bf16.mxu0 0
        %668 = vmatpush1.bf16.msra.mxu0 %v578
        %669 = vmatprep.subr.bf16.mxu0 0
        %670 = vmatpush1.bf16.msra.mxu0 %v581
        %671 = vmatprep.subr.bf16.mxu0 0
        %672 = vmatpush1.bf16.msra.mxu0 %v584
        %673 = vmatprep.subr.bf16.mxu0 0
        %674 = vmatpush1.bf16.msra.mxu0 %v587
        %675 = vmatprep.subr.bf16.mxu0 0
        %676 = vmatpush1.bf16.msra.mxu0 %v590
        %677 = vmatprep.subr.bf16.mxu0 0
        %678 = vmatpush1.bf16.msra.mxu0 %v593
        %679 = vmatprep.subr.bf16.mxu0 0
        %680 = vmatpush1.bf16.msra.mxu0 %v596
        %681 = vmatprep.subr.bf16.mxu0 0
        %682 = vmatpush1.bf16.msra.mxu0 %v599
        %683 = vmatprep.subr.bf16.mxu0 0
        %684 = vmatpush1.bf16.msra.mxu0 0
        %685 = vmatprep.subr.bf16.mxu0 0
        %686 = vmatpush1.bf16.msra.mxu0 0
        %687 = vmatprep.subr.bf16.mxu0 0
        %688 = vmatpush1.bf16.msra.mxu0 0
        %689 = vmatprep.subr.bf16.mxu0 0
        %690 = vmatpush1.bf16.msra.mxu0 0
        %691 = vmatprep.subr.bf16.mxu0 0
        %692 = vmatpush1.bf16.msra.mxu0 0
        %693 = vmatprep.subr.bf16.mxu0 0
        %694 = vmatpush1.bf16.msra.mxu0 0
        %695 = vmatprep.subr.bf16.mxu0 0
        %696 = vmatpush1.bf16.msra.mxu0 0
        %697 = vmatprep.subr.bf16.mxu0 0
        %698 = vmatpush1.bf16.msra.mxu0 0
        %699 = vmatprep.mubr.bf16.mxu0 0
        %700 = vmatmul.mubr.bf16.gmra.mrb[0].mxu0 %v451
        %v701 = vpop.f32.mrb[0].mxu0
        %v702 = vadd.f32 %v495, %v701
        %v703 = vpop.f32.mrb[0].mxu0
        %v704 = vpop.f32.mrb[0].mxu0
        %v705 = vadd.f32 %v495, %v704
        %v706 = vpop.f32.mrb[0].mxu0
        %707 = vdwg.mxu0
        %v708 = vmul.f32 %v659, 0.25
        %v709 = vmul.f32 %v663, 0.25
        %712 = vrot.lane.b32.xlu0 %v708, 112
        %v713 = vpop.permute.xlu0 %712
        %714 = vrot.lane.b32.xlu0 %v709, 112
        %v715 = vpop.permute.xlu0 %714
        %718 = vrot.lane.b32.xlu0 %v708, 96
        %v719 = vpop.permute.xlu0 %718
        %720 = vrot.lane.b32.xlu0 %v709, 96
        %v721 = vpop.permute.xlu0 %720
        %724 = vrot.lane.b32.xlu0 %v708, 80
        %v725 = vpop.permute.xlu0 %724
        %726 = vrot.lane.b32.xlu0 %v709, 80
        %v727 = vpop.permute.xlu0 %726
        %730 = vrot.lane.b32.xlu0 %v708, 64
        %v731 = vpop.permute.xlu0 %730
        %732 = vrot.lane.b32.xlu0 %v709, 64
        %v733 = vpop.permute.xlu0 %732
        %736 = vrot.lane.b32.xlu0 %v708, 48
        %v737 = vpop.permute.xlu0 %736
        %738 = vrot.lane.b32.xlu0 %v709, 48
        %v739 = vpop.permute.xlu0 %738
        %742 = vrot.lane.b32.xlu0 %v708, 32
        %v743 = vpop.permute.xlu0 %742
        %744 = vrot.lane.b32.xlu0 %v709, 32
        %v745 = vpop.permute.xlu0 %744
        %748 = vrot.lane.b32.xlu0 %v708, 16
        %v749 = vpop.permute.xlu0 %748
        %750 = vrot.lane.b32.xlu0 %v709, 16
        %v751 = vpop.permute.xlu0 %750
        %v754 = vpack.c.bf16 %v708, %v708
        %v755 = vpack.c.bf16 %v709, %v709
        %v756 = vpack.c.bf16 %v713, %v713
        %v757 = vpack.c.bf16 %v715, %v715
        %v758 = vpack.c.bf16 %v719, %v719
        %v759 = vpack.c.bf16 %v721, %v721
        %v760 = vpack.c.bf16 %v725, %v725
        %v761 = vpack.c.bf16 %v727, %v727
        %v762 = vpack.c.bf16 %v731, %v731
        %v763 = vpack.c.bf16 %v733, %v733
        %v764 = vpack.c.bf16 %v737, %v737
        %v765 = vpack.c.bf16 %v739, %v739
        %v766 = vpack.c.bf16 %v743, %v743
        %v767 = vpack.c.bf16 %v745, %v745
        %v768 = vpack.c.bf16 %v749, %v749
        %v769 = vpack.c.bf16 %v751, %v751
        %772 = vrot.lane.b32.xlu0 %v661, 112
        %v773 = vpop.permute.xlu0 %772
        %774 = vrot.lane.b32.xlu0 %v665, 112
        %v775 = vpop.permute.xlu0 %774
        %778 = vrot.lane.b32.xlu0 %v661, 96
        %v779 = vpop.permute.xlu0 %778
        %780 = vrot.lane.b32.xlu0 %v665, 96
        %v781 = vpop.permute.xlu0 %780
        %784 = vrot.lane.b32.xlu0 %v661, 80
        %v785 = vpop.permute.xlu0 %784
        %786 = vrot.lane.b32.xlu0 %v665, 80
        %v787 = vpop.permute.xlu0 %786
        %790 = vrot.lane.b32.xlu0 %v661, 64
        %v791 = vpop.permute.xlu0 %790
        %792 = vrot.lane.b32.xlu0 %v665, 64
        %v793 = vpop.permute.xlu0 %792
        %796 = vrot.lane.b32.xlu0 %v661, 48
        %v797 = vpop.permute.xlu0 %796
        %798 = vrot.lane.b32.xlu0 %v665, 48
        %v799 = vpop.permute.xlu0 %798
        %802 = vrot.lane.b32.xlu0 %v661, 32
        %v803 = vpop.permute.xlu0 %802
        %804 = vrot.lane.b32.xlu0 %v665, 32
        %v805 = vpop.permute.xlu0 %804
        %808 = vrot.lane.b32.xlu0 %v661, 16
        %v809 = vpop.permute.xlu0 %808
        %810 = vrot.lane.b32.xlu0 %v665, 16
        %v811 = vpop.permute.xlu0 %810
        %v814 = vpack.c.bf16 %v661, %v661
        %v815 = vpack.c.bf16 %v665, %v665
        %v816 = vpack.c.bf16 %v773, %v773
        %v817 = vpack.c.bf16 %v775, %v775
        %v818 = vpack.c.bf16 %v779, %v779
        %v819 = vpack.c.bf16 %v781, %v781
        %v820 = vpack.c.bf16 %v785, %v785
        %v821 = vpack.c.bf16 %v787, %v787
        %v822 = vpack.c.bf16 %v791, %v791
        %v823 = vpack.c.bf16 %v793, %v793
        %v824 = vpack.c.bf16 %v797, %v797
        %v825 = vpack.c.bf16 %v799, %v799
        %v826 = vpack.c.bf16 %v803, %v803
        %v827 = vpack.c.bf16 %v805, %v805
        %v828 = vpack.c.bf16 %v809, %v809
        %v829 = vpack.c.bf16 %v811, %v811
        %832 = vrot.lane.b32.xlu0 %v702, 112
        %v833 = vpop.permute.xlu0 %832
        %834 = vrot.lane.b32.xlu0 %v705, 112
        %v835 = vpop.permute.xlu0 %834
        %838 = vrot.lane.b32.xlu0 %v702, 96
        %v839 = vpop.permute.xlu0 %838
        %840 = vrot.lane.b32.xlu0 %v705, 96
        %v841 = vpop.permute.xlu0 %840
        %844 = vrot.lane.b32.xlu0 %v702, 80
        %v845 = vpop.permute.xlu0 %844
        %846 = vrot.lane.b32.xlu0 %v705, 80
        %v847 = vpop.permute.xlu0 %846
        %850 = vrot.lane.b32.xlu0 %v702, 64
        %v851 = vpop.permute.xlu0 %850
        %852 = vrot.lane.b32.xlu0 %v705, 64
        %v853 = vpop.permute.xlu0 %852
        %856 = vrot.lane.b32.xlu0 %v702, 48
        %v857 = vpop.permute.xlu0 %856
        %858 = vrot.lane.b32.xlu0 %v705, 48
        %v859 = vpop.permute.xlu0 %858
        %862 = vrot.lane.b32.xlu0 %v702, 32
        %v863 = vpop.permute.xlu0 %862
        %864 = vrot.lane.b32.xlu0 %v705, 32
        %v865 = vpop.permute.xlu0 %864
        %868 = vrot.lane.b32.xlu0 %v702, 16
        %v869 = vpop.permute.xlu0 %868
        %870 = vrot.lane.b32.xlu0 %v705, 16
        %v871 = vpop.permute.xlu0 %870
        %v874 = vpack.c.bf16 %v702, %v702
        %v875 = vpack.c.bf16 %v705, %v705
        %v876 = vpack.c.bf16 %v833, %v833
        %v877 = vpack.c.bf16 %v835, %v835
        %v878 = vpack.c.bf16 %v839, %v839
        %v879 = vpack.c.bf16 %v841, %v841
        %v880 = vpack.c.bf16 %v845, %v845
        %v881 = vpack.c.bf16 %v847, %v847
        %v882 = vpack.c.bf16 %v851, %v851
        %v883 = vpack.c.bf16 %v853, %v853
        %v884 = vpack.c.bf16 %v857, %v857
        %v885 = vpack.c.bf16 %v859, %v859
        %v886 = vpack.c.bf16 %v863, %v863
        %v887 = vpack.c.bf16 %v865, %v865
        %v888 = vpack.c.bf16 %v869, %v869
        %v889 = vpack.c.bf16 %v871, %v871
        %v890 = vld [vmem:[%s1] sm:$0xff]
        %v891 = vld [vmem:[%s1 + $0x8] sm:$0xff]
        %v894 = vcombine.high %v890, %v890
        %v896 = vunpack.c.l.s4 1966171168
        %v897 = vunpack.c.0.s8 %v896
        %v898 = vlaneseq
        %v899 = vshrl.u32 %v898, 7
        %v900 = vsub.s32 %v897, %v899
        %v901 = vrot.slane %v890, %v900
        %v903 = vunpack.c.l.s4 1966171168
        %v904 = vunpack.c.0.s8 %v903
        %v905 = vlaneseq
        %v906 = vshrl.u32 %v905, 7
        %v907 = vsub.s32 %v904, %v906
        %v908 = vrot.slane %v894, %v907
        %v909 = vcombine.high %v901, %v901
        %v910 = vcombine.high %v908, %v908
        %v912 = vunpack.c.l.s4 1966171168
        %v913 = vunpack.c.0.s8 %v912
        %v914 = vlaneseq
        %v915 = vshrl.u32 %v914, 7
        %v916 = vsub.s32 %v913, %v915
        %v917 = vrot.slane %v901, %v916
        %v919 = vunpack.c.l.s4 1966171168
        %v920 = vunpack.c.0.s8 %v919
        %v921 = vlaneseq
        %v922 = vshrl.u32 %v921, 7
        %v923 = vsub.s32 %v920, %v922
        %v924 = vrot.slane %v908, %v923
        %v926 = vunpack.c.l.s4 1966171168
        %v927 = vunpack.c.0.s8 %v926
        %v928 = vlaneseq
        %v929 = vshrl.u32 %v928, 7
        %v930 = vsub.s32 %v927, %v929
        %v931 = vrot.slane %v909, %v930
        %v933 = vunpack.c.l.s4 1966171168
        %v934 = vunpack.c.0.s8 %v933
        %v935 = vlaneseq
        %v936 = vshrl.u32 %v935, 7
        %v937 = vsub.s32 %v934, %v936
        %v938 = vrot.slane %v910, %v937
        %v939 = vcombine.high %v917, %v917
        %v940 = vcombine.high %v924, %v924
        %v941 = vcombine.high %v931, %v931
        %v942 = vcombine.high %v938, %v938
        %v943 = vcombine.high %v891, %v891
        %v945 = vunpack.c.l.s4 1966171168
        %v946 = vunpack.c.0.s8 %v945
        %v947 = vlaneseq
        %v948 = vshrl.u32 %v947, 7
        %v949 = vsub.s32 %v946, %v948
        %v950 = vrot.slane %v891, %v949
        %v952 = vunpack.c.l.s4 1966171168
        %v953 = vunpack.c.0.s8 %v952
        %v954 = vlaneseq
        %v955 = vshrl.u32 %v954, 7
        %v956 = vsub.s32 %v953, %v955
        %v957 = vrot.slane %v943, %v956
        %v958 = vcombine.high %v950, %v950
        %v959 = vcombine.high %v957, %v957
        %v961 = vunpack.c.l.s4 1966171168
        %v962 = vunpack.c.0.s8 %v961
        %v963 = vlaneseq
        %v964 = vshrl.u32 %v963, 7
        %v965 = vsub.s32 %v962, %v964
        %v966 = vrot.slane %v950, %v965
        %v968 = vunpack.c.l.s4 1966171168
        %v969 = vunpack.c.0.s8 %v968
        %v970 = vlaneseq
        %v971 = vshrl.u32 %v970, 7
        %v972 = vsub.s32 %v969, %v971
        %v973 = vrot.slane %v957, %v972
        %v975 = vunpack.c.l.s4 1966171168
        %v976 = vunpack.c.0.s8 %v975
        %v977 = vlaneseq
        %v978 = vshrl.u32 %v977, 7
        %v979 = vsub.s32 %v976, %v978
        %v980 = vrot.slane %v958, %v979
        %v982 = vunpack.c.l.s4 1966171168
        %v983 = vunpack.c.0.s8 %v982
        %v984 = vlaneseq
        %v985 = vshrl.u32 %v984, 7
        %v986 = vsub.s32 %v983, %v985
        %v987 = vrot.slane %v959, %v986
        %v988 = vcombine.high %v966, %v966
        %v989 = vcombine.high %v973, %v973
        %v990 = vcombine.high %v980, %v980
        %v991 = vcombine.high %v987, %v987
        %v992 = vlaneseq
        %v993 = vshrl.u32 %v992, 7
        %v994 = vsub.s32 0, %v993
        %v995 = vrot.slane %v917, %v994
        %v996 = vlaneseq
        %v997 = vshrl.u32 %v996, 7
        %v998 = vsub.s32 0, %v997
        %v999 = vrot.slane %v931, %v998
        %v1000 = vlaneseq
        %v1001 = vshrl.u32 %v1000, 7
        %v1002 = vsub.s32 0, %v1001
        %v1003 = vrot.slane %v939, %v1002
        %v1004 = vlaneseq
        %v1005 = vshrl.u32 %v1004, 7
        %v1006 = vsub.s32 0, %v1005
        %v1007 = vrot.slane %v941, %v1006
        %v1008 = vlaneseq
        %v1009 = vshrl.u32 %v1008, 7
        %v1010 = vsub.s32 0, %v1009
        %v1011 = vrot.slane %v924, %v1010
        %v1012 = vlaneseq
        %v1013 = vshrl.u32 %v1012, 7
        %v1014 = vsub.s32 0, %v1013
        %v1015 = vrot.slane %v938, %v1014
        %v1016 = vlaneseq
        %v1017 = vshrl.u32 %v1016, 7
        %v1018 = vsub.s32 0, %v1017
        %v1019 = vrot.slane %v940, %v1018
        %v1020 = vlaneseq
        %v1021 = vshrl.u32 %v1020, 7
        %v1022 = vsub.s32 0, %v1021
        %v1023 = vrot.slane %v942, %v1022
        %v1024 = vlaneseq
        %v1025 = vshrl.u32 %v1024, 7
        %v1026 = vsub.s32 0, %v1025
        %v1027 = vrot.slane %v966, %v1026
        %v1028 = vlaneseq
        %v1029 = vshrl.u32 %v1028, 7
        %v1030 = vsub.s32 0, %v1029
        %v1031 = vrot.slane %v980, %v1030
        %v1032 = vlaneseq
        %v1033 = vshrl.u32 %v1032, 7
        %v1034 = vsub.s32 0, %v1033
        %v1035 = vrot.slane %v988, %v1034
        %v1036 = vlaneseq
        %v1037 = vshrl.u32 %v1036, 7
        %v1038 = vsub.s32 0, %v1037
        %v1039 = vrot.slane %v990, %v1038
        %v1040 = vlaneseq
        %v1041 = vshrl.u32 %v1040, 7
        %v1042 = vsub.s32 0, %v1041
        %v1043 = vrot.slane %v973, %v1042
        %v1044 = vlaneseq
        %v1045 = vshrl.u32 %v1044, 7
        %v1046 = vsub.s32 0, %v1045
        %v1047 = vrot.slane %v987, %v1046
        %v1048 = vlaneseq
        %v1049 = vshrl.u32 %v1048, 7
        %v1050 = vsub.s32 0, %v1049
        %v1051 = vrot.slane %v989, %v1050
        %v1052 = vlaneseq
        %v1053 = vshrl.u32 %v1052, 7
        %v1054 = vsub.s32 0, %v1053
        %v1055 = vrot.slane %v991, %v1054
        %vm1072 = vcmask 130048
        %v1074 = vsel %vm1072, %v754, 0
        %v1077 = vsel %vm1072, %v814, 0
        %1079 = vmatprep.subr.bf16.mxu0 0
        %1080 = vmatpush1.bf16.xpose.msra.mxu0 %v1077
        %1081 = vmatprep.subr.bf16.mxu0 0
        %1082 = vmatpush1.bf16.xpose.msra.mxu0 0
        %1083 = vmatprep.subr.bf16.mxu0 0
        %1084 = vmatpush1.bf16.xpose.msra.mxu0 0
        %1085 = vmatprep.subr.bf16.mxu0 0
        %1086 = vmatpush1.bf16.xpose.msra.mxu0 0
        %1087 = vmatprep.subr.bf16.mxu0 0
        %1088 = vmatpush1.bf16.xpose.msra.mxu0 0
        %1089 = vmatprep.subr.bf16.mxu0 0
        %1090 = vmatpush1.bf16.xpose.msra.mxu0 0
        %1091 = vmatprep.subr.bf16.mxu0 0
        %1092 = vmatpush1.bf16.xpose.msra.mxu0 0
        %1093 = vmatprep.subr.bf16.mxu0 0
        %1094 = vmatpush1.bf16.xpose.msra.mxu0 0
        %1095 = vmatprep.subr.bf16.mxu0 0
        %1096 = vmatpush1.bf16.xpose.msra.mxu0 0
        %1097 = vmatprep.subr.bf16.mxu0 0
        %1098 = vmatpush1.bf16.xpose.msra.mxu0 0
        %1099 = vmatprep.subr.bf16.mxu0 0
        %1100 = vmatpush1.bf16.xpose.msra.mxu0 0
        %1101 = vmatprep.subr.bf16.mxu0 0
        %1102 = vmatpush1.bf16.xpose.msra.mxu0 0
        %1103 = vmatprep.subr.bf16.mxu0 0
        %1104 = vmatpush1.bf16.xpose.msra.mxu0 0
        %1105 = vmatprep.subr.bf16.mxu0 0
        %1106 = vmatpush1.bf16.xpose.msra.mxu0 0
        %1107 = vmatprep.subr.bf16.mxu0 0
        %1108 = vmatpush1.bf16.xpose.msra.mxu0 0
        %1109 = vmatprep.subr.bf16.mxu0 0
        %1110 = vmatpush1.bf16.xpose.msra.mxu0 0
        %1111 = vmatprep.mubr.bf16.mxu0 0
        %1112 = vmatmul.mubr.bf16.gmra.mrb[0].mxu0 %v1074
        %v1113 = vpop.f32.mrb[0].mxu0
        %v1114 = vadd.f32 %v995, %v1113
        %v1115 = vpop.f32.mrb[0].mxu0
        %v1116 = vpop.f32.mrb[0].mxu0
        %v1117 = vpop.f32.mrb[0].mxu0
        %1118 = vdwg.mxu0
        %v1120 = vsel %vm1072, %v755, 0
        %v1123 = vsel %vm1072, %v815, 0
        %1125 = vmatprep.subr.bf16.mxu0 0
        %1126 = vmatpush1.bf16.xpose.msra.mxu0 %v1123
        %1127 = vmatprep.subr.bf16.mxu0 0
        %1128 = vmatpush1.bf16.xpose.msra.mxu0 0
        %1129 = vmatprep.subr.bf16.mxu0 0
        %1130 = vmatpush1.bf16.xpose.msra.mxu0 0
        %1131 = vmatprep.subr.bf16.mxu0 0
        %1132 = vmatpush1.bf16.xpose.msra.mxu0 0
        %1133 = vmatprep.subr.bf16.mxu0 0
        %1134 = vmatpush1.bf16.xpose.msra.mxu0 0
        %1135 = vmatprep.subr.bf16.mxu0 0
        %1136 = vmatpush1.bf16.xpose.msra.mxu0 0
        %1137 = vmatprep.subr.bf16.mxu0 0
        %1138 = vmatpush1.bf16.xpose.msra.mxu0 0
        %1139 = vmatprep.subr.bf16.mxu0 0
        %1140 = vmatpush1.bf16.xpose.msra.mxu0 0
        %1141 = vmatprep.subr.bf16.mxu0 0
        %1142 = vmatpush1.bf16.xpose.msra.mxu0 0
        %1143 = vmatprep.subr.bf16.mxu0 0
        %1144 = vmatpush1.bf16.xpose.msra.mxu0 0
        %1145 = vmatprep.subr.bf16.mxu0 0
        %1146 = vmatpush1.bf16.xpose.msra.mxu0 0
        %1147 = vmatprep.subr.bf16.mxu0 0
        %1148 = vmatpush1.bf16.xpose.msra.mxu0 0
        %1149 = vmatprep.subr.bf16.mxu0 0
        %1150 = vmatpush1.bf16.xpose.msra.mxu0 0
        %1151 = vmatprep.subr.bf16.mxu0 0
        %1152 = vmatpush1.bf16.xpose.msra.mxu0 0
        %1153 = vmatprep.subr.bf16.mxu0 0
        %1154 = vmatpush1.bf16.xpose.msra.mxu0 0
        %1155 = vmatprep.subr.bf16.mxu0 0
        %1156 = vmatpush1.bf16.xpose.msra.mxu0 0
        %1157 = vmatprep.mubr.bf16.mxu0 0
        %1158 = vmatmul.mubr.bf16.gmra.mrb[0].mxu0 %v1120
        %v1159 = vpop.f32.mrb[0].mxu0
        %v1160 = vadd.f32 %v999, %v1159
        %v1161 = vpop.f32.mrb[0].mxu0
        %v1162 = vpop.f32.mrb[0].mxu0
        %v1163 = vpop.f32.mrb[0].mxu0
        %1164 = vdwg.mxu0
        %v1166 = vsel %vm1072, %v756, 0
        %v1169 = vsel %vm1072, %v816, 0
        %1171 = vmatprep.subr.bf16.mxu0 0
        %1172 = vmatpush1.bf16.xpose.msra.mxu0 %v1169
        %1173 = vmatprep.subr.bf16.mxu0 0
        %1174 = vmatpush1.bf16.xpose.msra.mxu0 0
        %1175 = vmatprep.subr.bf16.mxu0 0
        %1176 = vmatpush1.bf16.xpose.msra.mxu0 0
        %1177 = vmatprep.subr.bf16.mxu0 0
        %1178 = vmatpush1.bf16.xpose.msra.mxu0 0
        %1179 = vmatprep.subr.bf16.mxu0 0
        %1180 = vmatpush1.bf16.xpose.msra.mxu0 0
        %1181 = vmatprep.subr.bf16.mxu0 0
        %1182 = vmatpush1.bf16.xpose.msra.mxu0 0
        %1183 = vmatprep.subr.bf16.mxu0 0
        %1184 = vmatpush1.bf16.xpose.msra.mxu0 0
        %1185 = vmatprep.subr.bf16.mxu0 0
        %1186 = vmatpush1.bf16.xpose.msra.mxu0 0
        %1187 = vmatprep.subr.bf16.mxu0 0
        %1188 = vmatpush1.bf16.xpose.msra.mxu0 0
        %1189 = vmatprep.subr.bf16.mxu0 0
        %1190 = vmatpush1.bf16.xpose.msra.mxu0 0
        %1191 = vmatprep.subr.bf16.mxu0 0
        %1192 = vmatpush1.bf16.xpose.msra.mxu0 0
        %1193 = vmatprep.subr.bf16.mxu0 0
        %1194 = vmatpush1.bf16.xpose.msra.mxu0 0
        %1195 = vmatprep.subr.bf16.mxu0 0
        %1196 = vmatpush1.bf16.xpose.msra.mxu0 0
        %1197 = vmatprep.subr.bf16.mxu0 0
        %1198 = vmatpush1.bf16.xpose.msra.mxu0 0
        %1199 = vmatprep.subr.bf16.mxu0 0
        %1200 = vmatpush1.bf16.xpose.msra.mxu0 0
        %1201 = vmatprep.subr.bf16.mxu0 0
        %1202 = vmatpush1.bf16.xpose.msra.mxu0 0
        %1203 = vmatprep.mubr.bf16.mxu0 0
        %1204 = vmatmul.mubr.bf16.gmra.mrb[0].mxu0 %v1166
        %v1205 = vpop.f32.mrb[0].mxu0
        %v1206 = vadd.f32 %v1003, %v1205
        %v1207 = vpop.f32.mrb[0].mxu0
        %v1208 = vpop.f32.mrb[0].mxu0
        %v1209 = vpop.f32.mrb[0].mxu0
        %1210 = vdwg.mxu0
        %v1212 = vsel %vm1072, %v757, 0
        %v1215 = vsel %vm1072, %v817, 0
        %1217 = vmatprep.subr.bf16.mxu0 0
        %1218 = vmatpush1.bf16.xpose.msra.mxu0 %v1215
        %1219 = vmatprep.subr.bf16.mxu0 0
        %1220 = vmatpush1.bf16.xpose.msra.mxu0 0
        %1221 = vmatprep.subr.bf16.mxu0 0
        %1222 = vmatpush1.bf16.xpose.msra.mxu0 0
        %1223 = vmatprep.subr.bf16.mxu0 0
        %1224 = vmatpush1.bf16.xpose.msra.mxu0 0
        %1225 = vmatprep.subr.bf16.mxu0 0
        %1226 = vmatpush1.bf16.xpose.msra.mxu0 0
        %1227 = vmatprep.subr.bf16.mxu0 0
        %1228 = vmatpush1.bf16.xpose.msra.mxu0 0
        %1229 = vmatprep.subr.bf16.mxu0 0
        %1230 = vmatpush1.bf16.xpose.msra.mxu0 0
        %1231 = vmatprep.subr.bf16.mxu0 0
        %1232 = vmatpush1.bf16.xpose.msra.mxu0 0
        %1233 = vmatprep.subr.bf16.mxu0 0
        %1234 = vmatpush1.bf16.xpose.msra.mxu0 0
        %1235 = vmatprep.subr.bf16.mxu0 0
        %1236 = vmatpush1.bf16.xpose.msra.mxu0 0
        %1237 = vmatprep.subr.bf16.mxu0 0
        %1238 = vmatpush1.bf16.xpose.msra.mxu0 0
        %1239 = vmatprep.subr.bf16.mxu0 0
        %1240 = vmatpush1.bf16.xpose.msra.mxu0 0
        %1241 = vmatprep.subr.bf16.mxu0 0
        %1242 = vmatpush1.bf16.xpose.msra.mxu0 0
        %1243 = vmatprep.subr.bf16.mxu0 0
        %1244 = vmatpush1.bf16.xpose.msra.mxu0 0
        %1245 = vmatprep.subr.bf16.mxu0 0
        %1246 = vmatpush1.bf16.xpose.msra.mxu0 0
        %1247 = vmatprep.subr.bf16.mxu0 0
        %1248 = vmatpush1.bf16.xpose.msra.mxu0 0
        %1249 = vmatprep.mubr.bf16.mxu0 0
        %1250 = vmatmul.mubr.bf16.gmra.mrb[0].mxu0 %v1212
        %v1251 = vpop.f32.mrb[0].mxu0
        %v1252 = vadd.f32 %v1007, %v1251
        %v1253 = vpop.f32.mrb[0].mxu0
        %v1254 = vpop.f32.mrb[0].mxu0
        %v1255 = vpop.f32.mrb[0].mxu0
        %1256 = vdwg.mxu0
        %v1258 = vsel %vm1072, %v758, 0
        %v1261 = vsel %vm1072, %v818, 0
        %1263 = vmatprep.subr.bf16.mxu0 0
        %1264 = vmatpush1.bf16.xpose.msra.mxu0 %v1261
        %1265 = vmatprep.subr.bf16.mxu0 0
        %1266 = vmatpush1.bf16.xpose.msra.mxu0 0
        %1267 = vmatprep.subr.bf16.mxu0 0
        %1268 = vmatpush1.bf16.xpose.msra.mxu0 0
        %1269 = vmatprep.subr.bf16.mxu0 0
        %1270 = vmatpush1.bf16.xpose.msra.mxu0 0
        %1271 = vmatprep.subr.bf16.mxu0 0
        %1272 = vmatpush1.bf16.xpose.msra.mxu0 0
        %1273 = vmatprep.subr.bf16.mxu0 0
        %1274 = vmatpush1.bf16.xpose.msra.mxu0 0
        %1275 = vmatprep.subr.bf16.mxu0 0
        %1276 = vmatpush1.bf16.xpose.msra.mxu0 0
        %1277 = vmatprep.subr.bf16.mxu0 0
        %1278 = vmatpush1.bf16.xpose.msra.mxu0 0
        %1279 = vmatprep.subr.bf16.mxu0 0
        %1280 = vmatpush1.bf16.xpose.msra.mxu0 0
        %1281 = vmatprep.subr.bf16.mxu0 0
        %1282 = vmatpush1.bf16.xpose.msra.mxu0 0
        %1283 = vmatprep.subr.bf16.mxu0 0
        %1284 = vmatpush1.bf16.xpose.msra.mxu0 0
        %1285 = vmatprep.subr.bf16.mxu0 0
        %1286 = vmatpush1.bf16.xpose.msra.mxu0 0
        %1287 = vmatprep.subr.bf16.mxu0 0
        %1288 = vmatpush1.bf16.xpose.msra.mxu0 0
        %1289 = vmatprep.subr.bf16.mxu0 0
        %1290 = vmatpush1.bf16.xpose.msra.mxu0 0
        %1291 = vmatprep.subr.bf16.mxu0 0
        %1292 = vmatpush1.bf16.xpose.msra.mxu0 0
        %1293 = vmatprep.subr.bf16.mxu0 0
        %1294 = vmatpush1.bf16.xpose.msra.mxu0 0
        %1295 = vmatprep.mubr.bf16.mxu0 0
        %1296 = vmatmul.mubr.bf16.gmra.mrb[0].mxu0 %v1258
        %v1297 = vpop.f32.mrb[0].mxu0
        %v1298 = vadd.f32 %v1011, %v1297
        %v1299 = vpop.f32.mrb[0].mxu0
        %v1300 = vpop.f32.mrb[0].mxu0
        %v1301 = vpop.f32.mrb[0].mxu0
        %1302 = vdwg.mxu0
        %v1304 = vsel %vm1072, %v759, 0
        %v1307 = vsel %vm1072, %v819, 0
        %1309 = vmatprep.subr.bf16.mxu0 0
        %1310 = vmatpush1.bf16.xpose.msra.mxu0 %v1307
        %1311 = vmatprep.subr.bf16.mxu0 0
        %1312 = vmatpush1.bf16.xpose.msra.mxu0 0
        %1313 = vmatprep.subr.bf16.mxu0 0
        %1314 = vmatpush1.bf16.xpose.msra.mxu0 0
        %1315 = vmatprep.subr.bf16.mxu0 0
        %1316 = vmatpush1.bf16.xpose.msra.mxu0 0
        %1317 = vmatprep.subr.bf16.mxu0 0
        %1318 = vmatpush1.bf16.xpose.msra.mxu0 0
        %1319 = vmatprep.subr.bf16.mxu0 0
        %1320 = vmatpush1.bf16.xpose.msra.mxu0 0
        %1321 = vmatprep.subr.bf16.mxu0 0
        %1322 = vmatpush1.bf16.xpose.msra.mxu0 0
        %1323 = vmatprep.subr.bf16.mxu0 0
        %1324 = vmatpush1.bf16.xpose.msra.mxu0 0
        %1325 = vmatprep.subr.bf16.mxu0 0
        %1326 = vmatpush1.bf16.xpose.msra.mxu0 0
        %1327 = vmatprep.subr.bf16.mxu0 0
        %1328 = vmatpush1.bf16.xpose.msra.mxu0 0
        %1329 = vmatprep.subr.bf16.mxu0 0
        %1330 = vmatpush1.bf16.xpose.msra.mxu0 0
        %1331 = vmatprep.subr.bf16.mxu0 0
        %1332 = vmatpush1.bf16.xpose.msra.mxu0 0
        %1333 = vmatprep.subr.bf16.mxu0 0
        %1334 = vmatpush1.bf16.xpose.msra.mxu0 0
        %1335 = vmatprep.subr.bf16.mxu0 0
        %1336 = vmatpush1.bf16.xpose.msra.mxu0 0
        %1337 = vmatprep.subr.bf16.mxu0 0
        %1338 = vmatpush1.bf16.xpose.msra.mxu0 0
        %1339 = vmatprep.subr.bf16.mxu0 0
        %1340 = vmatpush1.bf16.xpose.msra.mxu0 0
        %1341 = vmatprep.mubr.bf16.mxu0 0
        %1342 = vmatmul.mubr.bf16.gmra.mrb[0].mxu0 %v1304
        %v1343 = vpop.f32.mrb[0].mxu0
        %v1344 = vadd.f32 %v1015, %v1343
        %v1345 = vpop.f32.mrb[0].mxu0
        %v1346 = vpop.f32.mrb[0].mxu0
        %v1347 = vpop.f32.mrb[0].mxu0
        %1348 = vdwg.mxu0
        %v1350 = vsel %vm1072, %v760, 0
        %v1353 = vsel %vm1072, %v820, 0
        %1355 = vmatprep.subr.bf16.mxu0 0
        %1356 = vmatpush1.bf16.xpose.msra.mxu0 %v1353
        %1357 = vmatprep.subr.bf16.mxu0 0
        %1358 = vmatpush1.bf16.xpose.msra.mxu0 0
        %1359 = vmatprep.subr.bf16.mxu0 0
        %1360 = vmatpush1.bf16.xpose.msra.mxu0 0
        %1361 = vmatprep.subr.bf16.mxu0 0
        %1362 = vmatpush1.bf16.xpose.msra.mxu0 0
        %1363 = vmatprep.subr.bf16.mxu0 0
        %1364 = vmatpush1.bf16.xpose.msra.mxu0 0
        %1365 = vmatprep.subr.bf16.mxu0 0
        %1366 = vmatpush1.bf16.xpose.msra.mxu0 0
        %1367 = vmatprep.subr.bf16.mxu0 0
        %1368 = vmatpush1.bf16.xpose.msra.mxu0 0
        %1369 = vmatprep.subr.bf16.mxu0 0
        %1370 = vmatpush1.bf16.xpose.msra.mxu0 0
        %1371 = vmatprep.subr.bf16.mxu0 0
        %1372 = vmatpush1.bf16.xpose.msra.mxu0 0
        %1373 = vmatprep.subr.bf16.mxu0 0
        %1374 = vmatpush1.bf16.xpose.msra.mxu0 0
        %1375 = vmatprep.subr.bf16.mxu0 0
        %1376 = vmatpush1.bf16.xpose.msra.mxu0 0
        %1377 = vmatprep.subr.bf16.mxu0 0
        %1378 = vmatpush1.bf16.xpose.msra.mxu0 0
        %1379 = vmatprep.subr.bf16.mxu0 0
        %1380 = vmatpush1.bf16.xpose.msra.mxu0 0
        %1381 = vmatprep.subr.bf16.mxu0 0
        %1382 = vmatpush1.bf16.xpose.msra.mxu0 0
        %1383 = vmatprep.subr.bf16.mxu0 0
        %1384 = vmatpush1.bf16.xpose.msra.mxu0 0
        %1385 = vmatprep.subr.bf16.mxu0 0
        %1386 = vmatpush1.bf16.xpose.msra.mxu0 0
        %1387 = vmatprep.mubr.bf16.mxu0 0
        %1388 = vmatmul.mubr.bf16.gmra.mrb[0].mxu0 %v1350
        %v1389 = vpop.f32.mrb[0].mxu0
        %v1390 = vadd.f32 %v1019, %v1389
        %v1391 = vpop.f32.mrb[0].mxu0
        %v1392 = vpop.f32.mrb[0].mxu0
        %v1393 = vpop.f32.mrb[0].mxu0
        %1394 = vdwg.mxu0
        %v1396 = vsel %vm1072, %v761, 0
        %v1399 = vsel %vm1072, %v821, 0
        %1401 = vmatprep.subr.bf16.mxu0 0
        %1402 = vmatpush1.bf16.xpose.msra.mxu0 %v1399
        %1403 = vmatprep.subr.bf16.mxu0 0
        %1404 = vmatpush1.bf16.xpose.msra.mxu0 0
        %1405 = vmatprep.subr.bf16.mxu0 0
        %1406 = vmatpush1.bf16.xpose.msra.mxu0 0
        %1407 = vmatprep.subr.bf16.mxu0 0
        %1408 = vmatpush1.bf16.xpose.msra.mxu0 0
        %1409 = vmatprep.subr.bf16.mxu0 0
        %1410 = vmatpush1.bf16.xpose.msra.mxu0 0
        %1411 = vmatprep.subr.bf16.mxu0 0
        %1412 = vmatpush1.bf16.xpose.msra.mxu0 0
        %1413 = vmatprep.subr.bf16.mxu0 0
        %1414 = vmatpush1.bf16.xpose.msra.mxu0 0
        %1415 = vmatprep.subr.bf16.mxu0 0
        %1416 = vmatpush1.bf16.xpose.msra.mxu0 0
        %1417 = vmatprep.subr.bf16.mxu0 0
        %1418 = vmatpush1.bf16.xpose.msra.mxu0 0
        %1419 = vmatprep.subr.bf16.mxu0 0
        %1420 = vmatpush1.bf16.xpose.msra.mxu0 0
        %1421 = vmatprep.subr.bf16.mxu0 0
        %1422 = vmatpush1.bf16.xpose.msra.mxu0 0
        %1423 = vmatprep.subr.bf16.mxu0 0
        %1424 = vmatpush1.bf16.xpose.msra.mxu0 0
        %1425 = vmatprep.subr.bf16.mxu0 0
        %1426 = vmatpush1.bf16.xpose.msra.mxu0 0
        %1427 = vmatprep.subr.bf16.mxu0 0
        %1428 = vmatpush1.bf16.xpose.msra.mxu0 0
        %1429 = vmatprep.subr.bf16.mxu0 0
        %1430 = vmatpush1.bf16.xpose.msra.mxu0 0
        %1431 = vmatprep.subr.bf16.mxu0 0
        %1432 = vmatpush1.bf16.xpose.msra.mxu0 0
        %1433 = vmatprep.mubr.bf16.mxu0 0
        %1434 = vmatmul.mubr.bf16.gmra.mrb[0].mxu0 %v1396
        %v1435 = vpop.f32.mrb[0].mxu0
        %v1436 = vadd.f32 %v1023, %v1435
        %v1437 = vpop.f32.mrb[0].mxu0
        %v1438 = vpop.f32.mrb[0].mxu0
        %v1439 = vpop.f32.mrb[0].mxu0
        %1440 = vdwg.mxu0
        %v1442 = vsel %vm1072, %v762, 0
        %v1445 = vsel %vm1072, %v822, 0
        %1447 = vmatprep.subr.bf16.mxu0 0
        %1448 = vmatpush1.bf16.xpose.msra.mxu0 %v1445
        %1449 = vmatprep.subr.bf16.mxu0 0
        %1450 = vmatpush1.bf16.xpose.msra.mxu0 0
        %1451 = vmatprep.subr.bf16.mxu0 0
        %1452 = vmatpush1.bf16.xpose.msra.mxu0 0
        %1453 = vmatprep.subr.bf16.mxu0 0
        %1454 = vmatpush1.bf16.xpose.msra.mxu0 0
        %1455 = vmatprep.subr.bf16.mxu0 0
        %1456 = vmatpush1.bf16.xpose.msra.mxu0 0
        %1457 = vmatprep.subr.bf16.mxu0 0
        %1458 = vmatpush1.bf16.xpose.msra.mxu0 0
        %1459 = vmatprep.subr.bf16.mxu0 0
        %1460 = vmatpush1.bf16.xpose.msra.mxu0 0
        %1461 = vmatprep.subr.bf16.mxu0 0
        %1462 = vmatpush1.bf16.xpose.msra.mxu0 0
        %1463 = vmatprep.subr.bf16.mxu0 0
        %1464 = vmatpush1.bf16.xpose.msra.mxu0 0
        %1465 = vmatprep.subr.bf16.mxu0 0
        %1466 = vmatpush1.bf16.xpose.msra.mxu0 0
        %1467 = vmatprep.subr.bf16.mxu0 0
        %1468 = vmatpush1.bf16.xpose.msra.mxu0 0
        %1469 = vmatprep.subr.bf16.mxu0 0
        %1470 = vmatpush1.bf16.xpose.msra.mxu0 0
        %1471 = vmatprep.subr.bf16.mxu0 0
        %1472 = vmatpush1.bf16.xpose.msra.mxu0 0
        %1473 = vmatprep.subr.bf16.mxu0 0
        %1474 = vmatpush1.bf16.xpose.msra.mxu0 0
        %1475 = vmatprep.subr.bf16.mxu0 0
        %1476 = vmatpush1.bf16.xpose.msra.mxu0 0
        %1477 = vmatprep.subr.bf16.mxu0 0
        %1478 = vmatpush1.bf16.xpose.msra.mxu0 0
        %1479 = vmatprep.mubr.bf16.mxu0 0
        %1480 = vmatmul.mubr.bf16.gmra.mrb[0].mxu0 %v1442
        %v1481 = vpop.f32.mrb[0].mxu0
        %v1482 = vadd.f32 %v1027, %v1481
        %v1483 = vpop.f32.mrb[0].mxu0
        %v1484 = vpop.f32.mrb[0].mxu0
        %v1485 = vpop.f32.mrb[0].mxu0
        %1486 = vdwg.mxu0
        %v1488 = vsel %vm1072, %v763, 0
        %v1491 = vsel %vm1072, %v823, 0
        %1493 = vmatprep.subr.bf16.mxu0 0
        %1494 = vmatpush1.bf16.xpose.msra.mxu0 %v1491
        %1495 = vmatprep.subr.bf16.mxu0 0
        %1496 = vmatpush1.bf16.xpose.msra.mxu0 0
        %1497 = vmatprep.subr.bf16.mxu0 0
        %1498 = vmatpush1.bf16.xpose.msra.mxu0 0
        %1499 = vmatprep.subr.bf16.mxu0 0
        %1500 = vmatpush1.bf16.xpose.msra.mxu0 0
        %1501 = vmatprep.subr.bf16.mxu0 0
        %1502 = vmatpush1.bf16.xpose.msra.mxu0 0
        %1503 = vmatprep.subr.bf16.mxu0 0
        %1504 = vmatpush1.bf16.xpose.msra.mxu0 0
        %1505 = vmatprep.subr.bf16.mxu0 0
        %1506 = vmatpush1.bf16.xpose.msra.mxu0 0
        %1507 = vmatprep.subr.bf16.mxu0 0
        %1508 = vmatpush1.bf16.xpose.msra.mxu0 0
        %1509 = vmatprep.subr.bf16.mxu0 0
        %1510 = vmatpush1.bf16.xpose.msra.mxu0 0
        %1511 = vmatprep.subr.bf16.mxu0 0
        %1512 = vmatpush1.bf16.xpose.msra.mxu0 0
        %1513 = vmatprep.subr.bf16.mxu0 0
        %1514 = vmatpush1.bf16.xpose.msra.mxu0 0
        %1515 = vmatprep.subr.bf16.mxu0 0
        %1516 = vmatpush1.bf16.xpose.msra.mxu0 0
        %1517 = vmatprep.subr.bf16.mxu0 0
        %1518 = vmatpush1.bf16.xpose.msra.mxu0 0
        %1519 = vmatprep.subr.bf16.mxu0 0
        %1520 = vmatpush1.bf16.xpose.msra.mxu0 0
        %1521 = vmatprep.subr.bf16.mxu0 0
        %1522 = vmatpush1.bf16.xpose.msra.mxu0 0
        %1523 = vmatprep.subr.bf16.mxu0 0
        %1524 = vmatpush1.bf16.xpose.msra.mxu0 0
        %1525 = vmatprep.mubr.bf16.mxu0 0
        %1526 = vmatmul.mubr.bf16.gmra.mrb[0].mxu0 %v1488
        %v1527 = vpop.f32.mrb[0].mxu0
        %v1528 = vadd.f32 %v1031, %v1527
        %v1529 = vpop.f32.mrb[0].mxu0
        %v1530 = vpop.f32.mrb[0].mxu0
        %v1531 = vpop.f32.mrb[0].mxu0
        %1532 = vdwg.mxu0
        %v1534 = vsel %vm1072, %v764, 0
        %v1537 = vsel %vm1072, %v824, 0
        %1539 = vmatprep.subr.bf16.mxu0 0
        %1540 = vmatpush1.bf16.xpose.msra.mxu0 %v1537
        %1541 = vmatprep.subr.bf16.mxu0 0
        %1542 = vmatpush1.bf16.xpose.msra.mxu0 0
        %1543 = vmatprep.subr.bf16.mxu0 0
        %1544 = vmatpush1.bf16.xpose.msra.mxu0 0
        %1545 = vmatprep.subr.bf16.mxu0 0
        %1546 = vmatpush1.bf16.xpose.msra.mxu0 0
        %1547 = vmatprep.subr.bf16.mxu0 0
        %1548 = vmatpush1.bf16.xpose.msra.mxu0 0
        %1549 = vmatprep.subr.bf16.mxu0 0
        %1550 = vmatpush1.bf16.xpose.msra.mxu0 0
        %1551 = vmatprep.subr.bf16.mxu0 0
        %1552 = vmatpush1.bf16.xpose.msra.mxu0 0
        %1553 = vmatprep.subr.bf16.mxu0 0
        %1554 = vmatpush1.bf16.xpose.msra.mxu0 0
        %1555 = vmatprep.subr.bf16.mxu0 0
        %1556 = vmatpush1.bf16.xpose.msra.mxu0 0
        %1557 = vmatprep.subr.bf16.mxu0 0
        %1558 = vmatpush1.bf16.xpose.msra.mxu0 0
        %1559 = vmatprep.subr.bf16.mxu0 0
        %1560 = vmatpush1.bf16.xpose.msra.mxu0 0
        %1561 = vmatprep.subr.bf16.mxu0 0
        %1562 = vmatpush1.bf16.xpose.msra.mxu0 0
        %1563 = vmatprep.subr.bf16.mxu0 0
        %1564 = vmatpush1.bf16.xpose.msra.mxu0 0
        %1565 = vmatprep.subr.bf16.mxu0 0
        %1566 = vmatpush1.bf16.xpose.msra.mxu0 0
        %1567 = vmatprep.subr.bf16.mxu0 0
        %1568 = vmatpush1.bf16.xpose.msra.mxu0 0
        %1569 = vmatprep.subr.bf16.mxu0 0
        %1570 = vmatpush1.bf16.xpose.msra.mxu0 0
        %1571 = vmatprep.mubr.bf16.mxu0 0
        %1572 = vmatmul.mubr.bf16.gmra.mrb[0].mxu0 %v1534
        %v1573 = vpop.f32.mrb[0].mxu0
        %v1574 = vadd.f32 %v1035, %v1573
        %v1575 = vpop.f32.mrb[0].mxu0
        %v1576 = vpop.f32.mrb[0].mxu0
        %v1577 = vpop.f32.mrb[0].mxu0
        %1578 = vdwg.mxu0
        %v1580 = vsel %vm1072, %v765, 0
        %v1583 = vsel %vm1072, %v825, 0
        %1585 = vmatprep.subr.bf16.mxu0 0
        %1586 = vmatpush1.bf16.xpose.msra.mxu0 %v1583
        %1587 = vmatprep.subr.bf16.mxu0 0
        %1588 = vmatpush1.bf16.xpose.msra.mxu0 0
        %1589 = vmatprep.subr.bf16.mxu0 0
        %1590 = vmatpush1.bf16.xpose.msra.mxu0 0
        %1591 = vmatprep.subr.bf16.mxu0 0
        %1592 = vmatpush1.bf16.xpose.msra.mxu0 0
        %1593 = vmatprep.subr.bf16.mxu0 0
        %1594 = vmatpush1.bf16.xpose.msra.mxu0 0
        %1595 = vmatprep.subr.bf16.mxu0 0
        %1596 = vmatpush1.bf16.xpose.msra.mxu0 0
        %1597 = vmatprep.subr.bf16.mxu0 0
        %1598 = vmatpush1.bf16.xpose.msra.mxu0 0
        %1599 = vmatprep.subr.bf16.mxu0 0
        %1600 = vmatpush1.bf16.xpose.msra.mxu0 0
        %1601 = vmatprep.subr.bf16.mxu0 0
        %1602 = vmatpush1.bf16.xpose.msra.mxu0 0
        %1603 = vmatprep.subr.bf16.mxu0 0
        %1604 = vmatpush1.bf16.xpose.msra.mxu0 0
        %1605 = vmatprep.subr.bf16.mxu0 0
        %1606 = vmatpush1.bf16.xpose.msra.mxu0 0
        %1607 = vmatprep.subr.bf16.mxu0 0
        %1608 = vmatpush1.bf16.xpose.msra.mxu0 0
        %1609 = vmatprep.subr.bf16.mxu0 0
        %1610 = vmatpush1.bf16.xpose.msra.mxu0 0
        %1611 = vmatprep.subr.bf16.mxu0 0
        %1612 = vmatpush1.bf16.xpose.msra.mxu0 0
        %1613 = vmatprep.subr.bf16.mxu0 0
        %1614 = vmatpush1.bf16.xpose.msra.mxu0 0
        %1615 = vmatprep.subr.bf16.mxu0 0
        %1616 = vmatpush1.bf16.xpose.msra.mxu0 0
        %1617 = vmatprep.mubr.bf16.mxu0 0
        %1618 = vmatmul.mubr.bf16.gmra.mrb[0].mxu0 %v1580
        %v1619 = vpop.f32.mrb[0].mxu0
        %v1620 = vadd.f32 %v1039, %v1619
        %v1621 = vpop.f32.mrb[0].mxu0
        %v1622 = vpop.f32.mrb[0].mxu0
        %v1623 = vpop.f32.mrb[0].mxu0
        %1624 = vdwg.mxu0
        %v1626 = vsel %vm1072, %v766, 0
        %v1629 = vsel %vm1072, %v826, 0
        %1631 = vmatprep.subr.bf16.mxu0 0
        %1632 = vmatpush1.bf16.xpose.msra.mxu0 %v1629
        %1633 = vmatprep.subr.bf16.mxu0 0
        %1634 = vmatpush1.bf16.xpose.msra.mxu0 0
        %1635 = vmatprep.subr.bf16.mxu0 0
        %1636 = vmatpush1.bf16.xpose.msra.mxu0 0
        %1637 = vmatprep.subr.bf16.mxu0 0
        %1638 = vmatpush1.bf16.xpose.msra.mxu0 0
        %1639 = vmatprep.subr.bf16.mxu0 0
        %1640 = vmatpush1.bf16.xpose.msra.mxu0 0
        %1641 = vmatprep.subr.bf16.mxu0 0
        %1642 = vmatpush1.bf16.xpose.msra.mxu0 0
        %1643 = vmatprep.subr.bf16.mxu0 0
        %1644 = vmatpush1.bf16.xpose.msra.mxu0 0
        %1645 = vmatprep.subr.bf16.mxu0 0
        %1646 = vmatpush1.bf16.xpose.msra.mxu0 0
        %1647 = vmatprep.subr.bf16.mxu0 0
        %1648 = vmatpush1.bf16.xpose.msra.mxu0 0
        %1649 = vmatprep.subr.bf16.mxu0 0
        %1650 = vmatpush1.bf16.xpose.msra.mxu0 0
        %1651 = vmatprep.subr.bf16.mxu0 0
        %1652 = vmatpush1.bf16.xpose.msra.mxu0 0
        %1653 = vmatprep.subr.bf16.mxu0 0
        %1654 = vmatpush1.bf16.xpose.msra.mxu0 0
        %1655 = vmatprep.subr.bf16.mxu0 0
        %1656 = vmatpush1.bf16.xpose.msra.mxu0 0
        %1657 = vmatprep.subr.bf16.mxu0 0
        %1658 = vmatpush1.bf16.xpose.msra.mxu0 0
        %1659 = vmatprep.subr.bf16.mxu0 0
        %1660 = vmatpush1.bf16.xpose.msra.mxu0 0
        %1661 = vmatprep.subr.bf16.mxu0 0
        %1662 = vmatpush1.bf16.xpose.msra.mxu0 0
        %1663 = vmatprep.mubr.bf16.mxu0 0
        %1664 = vmatmul.mubr.bf16.gmra.mrb[0].mxu0 %v1626
        %v1665 = vpop.f32.mrb[0].mxu0
        %v1666 = vadd.f32 %v1043, %v1665
        %v1667 = vpop.f32.mrb[0].mxu0
        %v1668 = vpop.f32.mrb[0].mxu0
        %v1669 = vpop.f32.mrb[0].mxu0
        %1670 = vdwg.mxu0
        %v1672 = vsel %vm1072, %v767, 0
        %v1675 = vsel %vm1072, %v827, 0
        %1677 = vmatprep.subr.bf16.mxu0 0
        %1678 = vmatpush1.bf16.xpose.msra.mxu0 %v1675
        %1679 = vmatprep.subr.bf16.mxu0 0
        %1680 = vmatpush1.bf16.xpose.msra.mxu0 0
        %1681 = vmatprep.subr.bf16.mxu0 0
        %1682 = vmatpush1.bf16.xpose.msra.mxu0 0
        %1683 = vmatprep.subr.bf16.mxu0 0
        %1684 = vmatpush1.bf16.xpose.msra.mxu0 0
        %1685 = vmatprep.subr.bf16.mxu0 0
        %1686 = vmatpush1.bf16.xpose.msra.mxu0 0
        %1687 = vmatprep.subr.bf16.mxu0 0
        %1688 = vmatpush1.bf16.xpose.msra.mxu0 0
        %1689 = vmatprep.subr.bf16.mxu0 0
        %1690 = vmatpush1.bf16.xpose.msra.mxu0 0
        %1691 = vmatprep.subr.bf16.mxu0 0
        %1692 = vmatpush1.bf16.xpose.msra.mxu0 0
        %1693 = vmatprep.subr.bf16.mxu0 0
        %1694 = vmatpush1.bf16.xpose.msra.mxu0 0
        %1695 = vmatprep.subr.bf16.mxu0 0
        %1696 = vmatpush1.bf16.xpose.msra.mxu0 0
        %1697 = vmatprep.subr.bf16.mxu0 0
        %1698 = vmatpush1.bf16.xpose.msra.mxu0 0
        %1699 = vmatprep.subr.bf16.mxu0 0
        %1700 = vmatpush1.bf16.xpose.msra.mxu0 0
        %1701 = vmatprep.subr.bf16.mxu0 0
        %1702 = vmatpush1.bf16.xpose.msra.mxu0 0
        %1703 = vmatprep.subr.bf16.mxu0 0
        %1704 = vmatpush1.bf16.xpose.msra.mxu0 0
        %1705 = vmatprep.subr.bf16.mxu0 0
        %1706 = vmatpush1.bf16.xpose.msra.mxu0 0
        %1707 = vmatprep.subr.bf16.mxu0 0
        %1708 = vmatpush1.bf16.xpose.msra.mxu0 0
        %1709 = vmatprep.mubr.bf16.mxu0 0
        %1710 = vmatmul.mubr.bf16.gmra.mrb[0].mxu0 %v1672
        %v1711 = vpop.f32.mrb[0].mxu0
        %v1712 = vadd.f32 %v1047, %v1711
        %v1713 = vpop.f32.mrb[0].mxu0
        %v1714 = vpop.f32.mrb[0].mxu0
        %v1715 = vpop.f32.mrb[0].mxu0
        %1716 = vdwg.mxu0
        %v1718 = vsel %vm1072, %v768, 0
        %v1721 = vsel %vm1072, %v828, 0
        %1723 = vmatprep.subr.bf16.mxu0 0
        %1724 = vmatpush1.bf16.xpose.msra.mxu0 %v1721
        %1725 = vmatprep.subr.bf16.mxu0 0
        %1726 = vmatpush1.bf16.xpose.msra.mxu0 0
        %1727 = vmatprep.subr.bf16.mxu0 0
        %1728 = vmatpush1.bf16.xpose.msra.mxu0 0
        %1729 = vmatprep.subr.bf16.mxu0 0
        %1730 = vmatpush1.bf16.xpose.msra.mxu0 0
        %1731 = vmatprep.subr.bf16.mxu0 0
        %1732 = vmatpush1.bf16.xpose.msra.mxu0 0
        %1733 = vmatprep.subr.bf16.mxu0 0
        %1734 = vmatpush1.bf16.xpose.msra.mxu0 0
        %1735 = vmatprep.subr.bf16.mxu0 0
        %1736 = vmatpush1.bf16.xpose.msra.mxu0 0
        %1737 = vmatprep.subr.bf16.mxu0 0
        %1738 = vmatpush1.bf16.xpose.msra.mxu0 0
        %1739 = vmatprep.subr.bf16.mxu0 0
        %1740 = vmatpush1.bf16.xpose.msra.mxu0 0
        %1741 = vmatprep.subr.bf16.mxu0 0
        %1742 = vmatpush1.bf16.xpose.msra.mxu0 0
        %1743 = vmatprep.subr.bf16.mxu0 0
        %1744 = vmatpush1.bf16.xpose.msra.mxu0 0
        %1745 = vmatprep.subr.bf16.mxu0 0
        %1746 = vmatpush1.bf16.xpose.msra.mxu0 0
        %1747 = vmatprep.subr.bf16.mxu0 0
        %1748 = vmatpush1.bf16.xpose.msra.mxu0 0
        %1749 = vmatprep.subr.bf16.mxu0 0
        %1750 = vmatpush1.bf16.xpose.msra.mxu0 0
        %1751 = vmatprep.subr.bf16.mxu0 0
        %1752 = vmatpush1.bf16.xpose.msra.mxu0 0
        %1753 = vmatprep.subr.bf16.mxu0 0
        %1754 = vmatpush1.bf16.xpose.msra.mxu0 0
        %1755 = vmatprep.mubr.bf16.mxu0 0
        %1756 = vmatmul.mubr.bf16.gmra.mrb[0].mxu0 %v1718
        %v1757 = vpop.f32.mrb[0].mxu0
        %v1758 = vadd.f32 %v1051, %v1757
        %v1759 = vpop.f32.mrb[0].mxu0
        %v1760 = vpop.f32.mrb[0].mxu0
        %v1761 = vpop.f32.mrb[0].mxu0
        %1762 = vdwg.mxu0
        %v1764 = vsel %vm1072, %v769, 0
        %v1767 = vsel %vm1072, %v829, 0
        %1769 = vmatprep.subr.bf16.mxu0 0
        %1770 = vmatpush1.bf16.xpose.msra.mxu0 %v1767
        %1771 = vmatprep.subr.bf16.mxu0 0
        %1772 = vmatpush1.bf16.xpose.msra.mxu0 0
        %1773 = vmatprep.subr.bf16.mxu0 0
        %1774 = vmatpush1.bf16.xpose.msra.mxu0 0
        %1775 = vmatprep.subr.bf16.mxu0 0
        %1776 = vmatpush1.bf16.xpose.msra.mxu0 0
        %1777 = vmatprep.subr.bf16.mxu0 0
        %1778 = vmatpush1.bf16.xpose.msra.mxu0 0
        %1779 = vmatprep.subr.bf16.mxu0 0
        %1780 = vmatpush1.bf16.xpose.msra.mxu0 0
        %1781 = vmatprep.subr.bf16.mxu0 0
        %1782 = vmatpush1.bf16.xpose.msra.mxu0 0
        %1783 = vmatprep.subr.bf16.mxu0 0
        %1784 = vmatpush1.bf16.xpose.msra.mxu0 0
        %1785 = vmatprep.subr.bf16.mxu0 0
        %1786 = vmatpush1.bf16.xpose.msra.mxu0 0
        %1787 = vmatprep.subr.bf16.mxu0 0
        %1788 = vmatpush1.bf16.xpose.msra.mxu0 0
        %1789 = vmatprep.subr.bf16.mxu0 0
        %1790 = vmatpush1.bf16.xpose.msra.mxu0 0
        %1791 = vmatprep.subr.bf16.mxu0 0
        %1792 = vmatpush1.bf16.xpose.msra.mxu0 0
        %1793 = vmatprep.subr.bf16.mxu0 0
        %1794 = vmatpush1.bf16.xpose.msra.mxu0 0
        %1795 = vmatprep.subr.bf16.mxu0 0
        %1796 = vmatpush1.bf16.xpose.msra.mxu0 0
        %1797 = vmatprep.subr.bf16.mxu0 0
        %1798 = vmatpush1.bf16.xpose.msra.mxu0 0
        %1799 = vmatprep.subr.bf16.mxu0 0
        %1800 = vmatpush1.bf16.xpose.msra.mxu0 0
        %1801 = vmatprep.mubr.bf16.mxu0 0
        %1802 = vmatmul.mubr.bf16.gmra.mrb[0].mxu0 %v1764
        %v1803 = vpop.f32.mrb[0].mxu0
        %v1804 = vadd.f32 %v1055, %v1803
        %v1805 = vpop.f32.mrb[0].mxu0
        %v1806 = vpop.f32.mrb[0].mxu0
        %v1807 = vpop.f32.mrb[0].mxu0
        %1808 = vdwg.mxu0
        %vm1809 = vcmask 64512
        %v1810 = vsel %vm1809, %v1114, -inf
        %1811 = vmax.xlane.f32.xlu0 %v1810
        %v1812 = vpop.xlane.xlu0 %1811
        %v1813 = vsel %vm1809, %v1160, -inf
        %1814 = vmax.xlane.f32.xlu0 %v1813
        %v1815 = vpop.xlane.xlu0 %1814
        %v1816 = vsel %vm1809, %v1206, -inf
        %1817 = vmax.xlane.f32.xlu0 %v1816
        %v1818 = vpop.xlane.xlu0 %1817
        %v1819 = vsel %vm1809, %v1252, -inf
        %1820 = vmax.xlane.f32.xlu0 %v1819
        %v1821 = vpop.xlane.xlu0 %1820
        %v1822 = vsel %vm1809, %v1298, -inf
        %1823 = vmax.xlane.f32.xlu0 %v1822
        %v1824 = vpop.xlane.xlu0 %1823
        %v1825 = vsel %vm1809, %v1344, -inf
        %1826 = vmax.xlane.f32.xlu0 %v1825
        %v1827 = vpop.xlane.xlu0 %1826
        %v1828 = vsel %vm1809, %v1390, -inf
        %1829 = vmax.xlane.f32.xlu0 %v1828
        %v1830 = vpop.xlane.xlu0 %1829
        %v1831 = vsel %vm1809, %v1436, -inf
        %1832 = vmax.xlane.f32.xlu0 %v1831
        %v1833 = vpop.xlane.xlu0 %1832
        %v1834 = vsel %vm1809, %v1482, -inf
        %1835 = vmax.xlane.f32.xlu0 %v1834
        %v1836 = vpop.xlane.xlu0 %1835
        %v1837 = vsel %vm1809, %v1528, -inf
        %1838 = vmax.xlane.f32.xlu0 %v1837
        %v1839 = vpop.xlane.xlu0 %1838
        %v1840 = vsel %vm1809, %v1574, -inf
        %1841 = vmax.xlane.f32.xlu0 %v1840
        %v1842 = vpop.xlane.xlu0 %1841
        %v1843 = vsel %vm1809, %v1620, -inf
        %1844 = vmax.xlane.f32.xlu0 %v1843
        %v1845 = vpop.xlane.xlu0 %1844
        %v1846 = vsel %vm1809, %v1666, -inf
        %1847 = vmax.xlane.f32.xlu0 %v1846
        %v1848 = vpop.xlane.xlu0 %1847
        %v1849 = vsel %vm1809, %v1712, -inf
        %1850 = vmax.xlane.f32.xlu0 %v1849
        %v1851 = vpop.xlane.xlu0 %1850
        %v1852 = vsel %vm1809, %v1758, -inf
        %1853 = vmax.xlane.f32.xlu0 %v1852
        %v1854 = vpop.xlane.xlu0 %1853
        %v1855 = vsel %vm1809, %v1804, -inf
        %1856 = vmax.xlane.f32.xlu0 %v1855
        %v1857 = vpop.xlane.xlu0 %1856
        %v1858 = vsub.f32 %v1114, %v1812
        %v1859 = vsub.f32 %v1160, %v1815
        %v1860 = vsub.f32 %v1206, %v1818
        %v1861 = vsub.f32 %v1252, %v1821
        %v1862 = vsub.f32 %v1298, %v1824
        %v1863 = vsub.f32 %v1344, %v1827
        %v1864 = vsub.f32 %v1390, %v1830
        %v1865 = vsub.f32 %v1436, %v1833
        %v1866 = vsub.f32 %v1482, %v1836
        %v1867 = vsub.f32 %v1528, %v1839
        %v1868 = vsub.f32 %v1574, %v1842
        %v1869 = vsub.f32 %v1620, %v1845
        %v1870 = vsub.f32 %v1666, %v1848
        %v1871 = vsub.f32 %v1712, %v1851
        %v1872 = vsub.f32 %v1758, %v1854
        %v1873 = vsub.f32 %v1804, %v1857
        %v1874 = vmul.f32 %v1858, 1.442695
        %v1875 = vpow.pop %v1874
        %v1876 = vmul.f32 %v1859, 1.442695
        %v1877 = vpow.pop %v1876
        %v1878 = vmul.f32 %v1860, 1.442695
        %v1879 = vpow.pop %v1878
        %v1880 = vmul.f32 %v1861, 1.442695
        %v1881 = vpow.pop %v1880
        %v1882 = vmul.f32 %v1862, 1.442695
        %v1883 = vpow.pop %v1882
        %v1884 = vmul.f32 %v1863, 1.442695
        %v1885 = vpow.pop %v1884
        %v1886 = vmul.f32 %v1864, 1.442695
        %v1887 = vpow.pop %v1886
        %v1888 = vmul.f32 %v1865, 1.442695
        %v1889 = vpow.pop %v1888
        %v1890 = vmul.f32 %v1866, 1.442695
        %v1891 = vpow.pop %v1890
        %v1892 = vmul.f32 %v1867, 1.442695
        %v1893 = vpow.pop %v1892
        %v1894 = vmul.f32 %v1868, 1.442695
        %v1895 = vpow.pop %v1894
        %v1896 = vmul.f32 %v1869, 1.442695
        %v1897 = vpow.pop %v1896
        %v1898 = vmul.f32 %v1870, 1.442695
        %v1899 = vpow.pop %v1898
        %v1900 = vmul.f32 %v1871, 1.442695
        %v1901 = vpow.pop %v1900
        %v1902 = vmul.f32 %v1872, 1.442695
        %v1903 = vpow.pop %v1902
        %v1904 = vmul.f32 %v1873, 1.442695
        %v1905 = vpow.pop %v1904
        %v1906 = vsel %vm1809, %v1875, 0.0
        %1907 = vadd.xlane.f32.xlu0 %v1906
        %v1908 = vpop.xlane.xlu0 %1907
        %v1909 = vsel %vm1809, %v1877, 0.0
        %1910 = vadd.xlane.f32.xlu0 %v1909
        %v1911 = vpop.xlane.xlu0 %1910
        %v1912 = vsel %vm1809, %v1879, 0.0
        %1913 = vadd.xlane.f32.xlu0 %v1912
        %v1914 = vpop.xlane.xlu0 %1913
        %v1915 = vsel %vm1809, %v1881, 0.0
        %1916 = vadd.xlane.f32.xlu0 %v1915
        %v1917 = vpop.xlane.xlu0 %1916
        %v1918 = vsel %vm1809, %v1883, 0.0
        %1919 = vadd.xlane.f32.xlu0 %v1918
        %v1920 = vpop.xlane.xlu0 %1919
        %v1921 = vsel %vm1809, %v1885, 0.0
        %1922 = vadd.xlane.f32.xlu0 %v1921
        %v1923 = vpop.xlane.xlu0 %1922
        %v1924 = vsel %vm1809, %v1887, 0.0
        %1925 = vadd.xlane.f32.xlu0 %v1924
        %v1926 = vpop.xlane.xlu0 %1925
        %v1927 = vsel %vm1809, %v1889, 0.0
        %1928 = vadd.xlane.f32.xlu0 %v1927
        %v1929 = vpop.xlane.xlu0 %1928
        %v1930 = vsel %vm1809, %v1891, 0.0
        %1931 = vadd.xlane.f32.xlu0 %v1930
        %v1932 = vpop.xlane.xlu0 %1931
        %v1933 = vsel %vm1809, %v1893, 0.0
        %1934 = vadd.xlane.f32.xlu0 %v1933
        %v1935 = vpop.xlane.xlu0 %1934
        %v1936 = vsel %vm1809, %v1895, 0.0
        %1937 = vadd.xlane.f32.xlu0 %v1936
        %v1938 = vpop.xlane.xlu0 %1937
        %v1939 = vsel %vm1809, %v1897, 0.0
        %1940 = vadd.xlane.f32.xlu0 %v1939
        %v1941 = vpop.xlane.xlu0 %1940
        %v1942 = vsel %vm1809, %v1899, 0.0
        %1943 = vadd.xlane.f32.xlu0 %v1942
        %v1944 = vpop.xlane.xlu0 %1943
        %v1945 = vsel %vm1809, %v1901, 0.0
        %1946 = vadd.xlane.f32.xlu0 %v1945
        %v1947 = vpop.xlane.xlu0 %1946
        %v1948 = vsel %vm1809, %v1903, 0.0
        %1949 = vadd.xlane.f32.xlu0 %v1948
        %v1950 = vpop.xlane.xlu0 %1949
        %v1951 = vsel %vm1809, %v1905, 0.0
        %1952 = vadd.xlane.f32.xlu0 %v1951
        %v1953 = vpop.xlane.xlu0 %1952
        %v1954 = vrcp.pop %v1908
        %v1955 = vrcp.pop %v1911
        %v1956 = vrcp.pop %v1914
        %v1957 = vrcp.pop %v1917
        %v1958 = vrcp.pop %v1920
        %v1959 = vrcp.pop %v1923
        %v1960 = vrcp.pop %v1926
        %v1961 = vrcp.pop %v1929
        %v1962 = vrcp.pop %v1932
        %v1963 = vrcp.pop %v1935
        %v1964 = vrcp.pop %v1938
        %v1965 = vrcp.pop %v1941
        %v1966 = vrcp.pop %v1944
        %v1967 = vrcp.pop %v1947
        %v1968 = vrcp.pop %v1950
        %v1969 = vrcp.pop %v1953
        %v1970 = vmul.f32 %v1875, %v1954
        %v1971 = vmul.f32 %v1877, %v1955
        %v1972 = vmul.f32 %v1879, %v1956
        %v1973 = vmul.f32 %v1881, %v1957
        %v1974 = vmul.f32 %v1883, %v1958
        %v1975 = vmul.f32 %v1885, %v1959
        %v1976 = vmul.f32 %v1887, %v1960
        %v1977 = vmul.f32 %v1889, %v1961
        %v1978 = vmul.f32 %v1891, %v1962
        %v1979 = vmul.f32 %v1893, %v1963
        %v1980 = vmul.f32 %v1895, %v1964
        %v1981 = vmul.f32 %v1897, %v1965
        %v1982 = vmul.f32 %v1899, %v1966
        %v1983 = vmul.f32 %v1901, %v1967
        %v1984 = vmul.f32 %v1903, %v1968
        %v1985 = vmul.f32 %v1905, %v1969
        %v1986 = vpack.c.bf16 %v1970, %v1970
        %v1987 = vpack.c.bf16 %v1971, %v1971
        %v1988 = vpack.c.bf16 %v1972, %v1972
        %v1989 = vpack.c.bf16 %v1973, %v1973
        %v1990 = vpack.c.bf16 %v1974, %v1974
        %v1991 = vpack.c.bf16 %v1975, %v1975
        %v1992 = vpack.c.bf16 %v1976, %v1976
        %v1993 = vpack.c.bf16 %v1977, %v1977
        %v1994 = vpack.c.bf16 %v1978, %v1978
        %v1995 = vpack.c.bf16 %v1979, %v1979
        %v1996 = vpack.c.bf16 %v1980, %v1980
        %v1997 = vpack.c.bf16 %v1981, %v1981
        %v1998 = vpack.c.bf16 %v1982, %v1982
        %v1999 = vpack.c.bf16 %v1983, %v1983
        %v2000 = vpack.c.bf16 %v1984, %v1984
        %v2001 = vpack.c.bf16 %v1985, %v1985
        %v2003 = vsel %vm1809, %v1986, 0
        %vm2005 = vcmask 1043456
        %v2007 = vsel %vm2005, %v874, 0
        %2009 = vmatprep.subr.bf16.mxu0 0
        %2010 = vmatpush1.bf16.msra.mxu0 %v2007
        %2011 = vmatprep.subr.bf16.mxu0 0
        %2012 = vmatpush1.bf16.msra.mxu0 0
        %2013 = vmatprep.subr.bf16.mxu0 0
        %2014 = vmatpush1.bf16.msra.mxu0 0
        %2015 = vmatprep.subr.bf16.mxu0 0
        %2016 = vmatpush1.bf16.msra.mxu0 0
        %2017 = vmatprep.subr.bf16.mxu0 0
        %2018 = vmatpush1.bf16.msra.mxu0 0
        %2019 = vmatprep.subr.bf16.mxu0 0
        %2020 = vmatpush1.bf16.msra.mxu0 0
        %2021 = vmatprep.subr.bf16.mxu0 0
        %2022 = vmatpush1.bf16.msra.mxu0 0
        %2023 = vmatprep.subr.bf16.mxu0 0
        %2024 = vmatpush1.bf16.msra.mxu0 0
        %2025 = vmatprep.subr.bf16.mxu0 0
        %2026 = vmatpush1.bf16.msra.mxu0 0
        %2027 = vmatprep.subr.bf16.mxu0 0
        %2028 = vmatpush1.bf16.msra.mxu0 0
        %2029 = vmatprep.subr.bf16.mxu0 0
        %2030 = vmatpush1.bf16.msra.mxu0 0
        %2031 = vmatprep.subr.bf16.mxu0 0
        %2032 = vmatpush1.bf16.msra.mxu0 0
        %2033 = vmatprep.subr.bf16.mxu0 0
        %2034 = vmatpush1.bf16.msra.mxu0 0
        %2035 = vmatprep.subr.bf16.mxu0 0
        %2036 = vmatpush1.bf16.msra.mxu0 0
        %2037 = vmatprep.subr.bf16.mxu0 0
        %2038 = vmatpush1.bf16.msra.mxu0 0
        %2039 = vmatprep.subr.bf16.mxu0 0
        %2040 = vmatpush1.bf16.msra.mxu0 0
        %2041 = vmatprep.mubr.bf16.mxu0 0
        %2042 = vmatmul.mubr.bf16.gmra.mrb[0].mxu0 %v2003
        %v2043 = vpop.f32.mrb[0].mxu0
        %v2044 = vadd.f32 0.0, %v2043
        %v2045 = vpop.f32.mrb[0].mxu0
        %v2046 = vpop.f32.mrb[0].mxu0
        %v2047 = vpop.f32.mrb[0].mxu0
        %2048 = vdwg.mxu0
        %v2050 = vsel %vm1809, %v1987, 0
        %v2053 = vsel %vm2005, %v875, 0
        %2055 = vmatprep.subr.bf16.mxu0 0
        %2056 = vmatpush1.bf16.msra.mxu0 %v2053
        %2057 = vmatprep.subr.bf16.mxu0 0
        %2058 = vmatpush1.bf16.msra.mxu0 0
        %2059 = vmatprep.subr.bf16.mxu0 0
        %2060 = vmatpush1.bf16.msra.mxu0 0
        %2061 = vmatprep.subr.bf16.mxu0 0
        %2062 = vmatpush1.bf16.msra.mxu0 0
        %2063 = vmatprep.subr.bf16.mxu0 0
        %2064 = vmatpush1.bf16.msra.mxu0 0
        %2065 = vmatprep.subr.bf16.mxu0 0
        %2066 = vmatpush1.bf16.msra.mxu0 0
        %2067 = vmatprep.subr.bf16.mxu0 0
        %2068 = vmatpush1.bf16.msra.mxu0 0
        %2069 = vmatprep.subr.bf16.mxu0 0
        %2070 = vmatpush1.bf16.msra.mxu0 0
        %2071 = vmatprep.subr.bf16.mxu0 0
        %2072 = vmatpush1.bf16.msra.mxu0 0
        %2073 = vmatprep.subr.bf16.mxu0 0
        %2074 = vmatpush1.bf16.msra.mxu0 0
        %2075 = vmatprep.subr.bf16.mxu0 0
        %2076 = vmatpush1.bf16.msra.mxu0 0
        %2077 = vmatprep.subr.bf16.mxu0 0
        %2078 = vmatpush1.bf16.msra.mxu0 0
        %2079 = vmatprep.subr.bf16.mxu0 0
        %2080 = vmatpush1.bf16.msra.mxu0 0
        %2081 = vmatprep.subr.bf16.mxu0 0
        %2082 = vmatpush1.bf16.msra.mxu0 0
        %2083 = vmatprep.subr.bf16.mxu0 0
        %2084 = vmatpush1.bf16.msra.mxu0 0
        %2085 = vmatprep.subr.bf16.mxu0 0
        %2086 = vmatpush1.bf16.msra.mxu0 0
        %2087 = vmatprep.mubr.bf16.mxu0 0
        %2088 = vmatmul.mubr.bf16.gmra.mrb[0].mxu0 %v2050
        %v2089 = vpop.f32.mrb[0].mxu0
        %v2090 = vadd.f32 0.0, %v2089
        %v2091 = vpop.f32.mrb[0].mxu0
        %v2092 = vpop.f32.mrb[0].mxu0
        %v2093 = vpop.f32.mrb[0].mxu0
        %2094 = vdwg.mxu0
        %v2096 = vsel %vm1809, %v1988, 0
        %v2099 = vsel %vm2005, %v876, 0
        %2101 = vmatprep.subr.bf16.mxu0 0
        %2102 = vmatpush1.bf16.msra.mxu0 %v2099
        %2103 = vmatprep.subr.bf16.mxu0 0
        %2104 = vmatpush1.bf16.msra.mxu0 0
        %2105 = vmatprep.subr.bf16.mxu0 0
        %2106 = vmatpush1.bf16.msra.mxu0 0
        %2107 = vmatprep.subr.bf16.mxu0 0
        %2108 = vmatpush1.bf16.msra.mxu0 0
        %2109 = vmatprep.subr.bf16.mxu0 0
        %2110 = vmatpush1.bf16.msra.mxu0 0
        %2111 = vmatprep.subr.bf16.mxu0 0
        %2112 = vmatpush1.bf16.msra.mxu0 0
        %2113 = vmatprep.subr.bf16.mxu0 0
        %2114 = vmatpush1.bf16.msra.mxu0 0
        %2115 = vmatprep.subr.bf16.mxu0 0
        %2116 = vmatpush1.bf16.msra.mxu0 0
        %2117 = vmatprep.subr.bf16.mxu0 0
        %2118 = vmatpush1.bf16.msra.mxu0 0
        %2119 = vmatprep.subr.bf16.mxu0 0
        %2120 = vmatpush1.bf16.msra.mxu0 0
        %2121 = vmatprep.subr.bf16.mxu0 0
        %2122 = vmatpush1.bf16.msra.mxu0 0
        %2123 = vmatprep.subr.bf16.mxu0 0
        %2124 = vmatpush1.bf16.msra.mxu0 0
        %2125 = vmatprep.subr.bf16.mxu0 0
        %2126 = vmatpush1.bf16.msra.mxu0 0
        %2127 = vmatprep.subr.bf16.mxu0 0
        %2128 = vmatpush1.bf16.msra.mxu0 0
        %2129 = vmatprep.subr.bf16.mxu0 0
        %2130 = vmatpush1.bf16.msra.mxu0 0
        %2131 = vmatprep.subr.bf16.mxu0 0
        %2132 = vmatpush1.bf16.msra.mxu0 0
        %2133 = vmatprep.mubr.bf16.mxu0 0
        %2134 = vmatmul.mubr.bf16.gmra.mrb[0].mxu0 %v2096
        %v2135 = vpop.f32.mrb[0].mxu0
        %v2136 = vadd.f32 0.0, %v2135
        %v2137 = vpop.f32.mrb[0].mxu0
        %v2138 = vpop.f32.mrb[0].mxu0
        %v2139 = vpop.f32.mrb[0].mxu0
        %2140 = vdwg.mxu0
        %v2142 = vsel %vm1809, %v1989, 0
        %v2145 = vsel %vm2005, %v877, 0
        %2147 = vmatprep.subr.bf16.mxu0 0
        %2148 = vmatpush1.bf16.msra.mxu0 %v2145
        %2149 = vmatprep.subr.bf16.mxu0 0
        %2150 = vmatpush1.bf16.msra.mxu0 0
        %2151 = vmatprep.subr.bf16.mxu0 0
        %2152 = vmatpush1.bf16.msra.mxu0 0
        %2153 = vmatprep.subr.bf16.mxu0 0
        %2154 = vmatpush1.bf16.msra.mxu0 0
        %2155 = vmatprep.subr.bf16.mxu0 0
        %2156 = vmatpush1.bf16.msra.mxu0 0
        %2157 = vmatprep.subr.bf16.mxu0 0
        %2158 = vmatpush1.bf16.msra.mxu0 0
        %2159 = vmatprep.subr.bf16.mxu0 0
        %2160 = vmatpush1.bf16.msra.mxu0 0
        %2161 = vmatprep.subr.bf16.mxu0 0
        %2162 = vmatpush1.bf16.msra.mxu0 0
        %2163 = vmatprep.subr.bf16.mxu0 0
        %2164 = vmatpush1.bf16.msra.mxu0 0
        %2165 = vmatprep.subr.bf16.mxu0 0
        %2166 = vmatpush1.bf16.msra.mxu0 0
        %2167 = vmatprep.subr.bf16.mxu0 0
        %2168 = vmatpush1.bf16.msra.mxu0 0
        %2169 = vmatprep.subr.bf16.mxu0 0
        %2170 = vmatpush1.bf16.msra.mxu0 0
        %2171 = vmatprep.subr.bf16.mxu0 0
        %2172 = vmatpush1.bf16.msra.mxu0 0
        %2173 = vmatprep.subr.bf16.mxu0 0
        %2174 = vmatpush1.bf16.msra.mxu0 0
        %2175 = vmatprep.subr.bf16.mxu0 0
        %2176 = vmatpush1.bf16.msra.mxu0 0
        %2177 = vmatprep.subr.bf16.mxu0 0
        %2178 = vmatpush1.bf16.msra.mxu0 0
        %2179 = vmatprep.mubr.bf16.mxu0 0
        %2180 = vmatmul.mubr.bf16.gmra.mrb[0].mxu0 %v2142
        %v2181 = vpop.f32.mrb[0].mxu0
        %v2182 = vadd.f32 0.0, %v2181
        %v2183 = vpop.f32.mrb[0].mxu0
        %v2184 = vpop.f32.mrb[0].mxu0
        %v2185 = vpop.f32.mrb[0].mxu0
        %2186 = vdwg.mxu0
        %v2188 = vsel %vm1809, %v1990, 0
        %v2191 = vsel %vm2005, %v878, 0
        %2193 = vmatprep.subr.bf16.mxu0 0
        %2194 = vmatpush1.bf16.msra.mxu0 %v2191
        %2195 = vmatprep.subr.bf16.mxu0 0
        %2196 = vmatpush1.bf16.msra.mxu0 0
        %2197 = vmatprep.subr.bf16.mxu0 0
        %2198 = vmatpush1.bf16.msra.mxu0 0
        %2199 = vmatprep.subr.bf16.mxu0 0
        %2200 = vmatpush1.bf16.msra.mxu0 0
        %2201 = vmatprep.subr.bf16.mxu0 0
        %2202 = vmatpush1.bf16.msra.mxu0 0
        %2203 = vmatprep.subr.bf16.mxu0 0
        %2204 = vmatpush1.bf16.msra.mxu0 0
        %2205 = vmatprep.subr.bf16.mxu0 0
        %2206 = vmatpush1.bf16.msra.mxu0 0
        %2207 = vmatprep.subr.bf16.mxu0 0
        %2208 = vmatpush1.bf16.msra.mxu0 0
        %2209 = vmatprep.subr.bf16.mxu0 0
        %2210 = vmatpush1.bf16.msra.mxu0 0
        %2211 = vmatprep.subr.bf16.mxu0 0
        %2212 = vmatpush1.bf16.msra.mxu0 0
        %2213 = vmatprep.subr.bf16.mxu0 0
        %2214 = vmatpush1.bf16.msra.mxu0 0
        %2215 = vmatprep.subr.bf16.mxu0 0
        %2216 = vmatpush1.bf16.msra.mxu0 0
        %2217 = vmatprep.subr.bf16.mxu0 0
        %2218 = vmatpush1.bf16.msra.mxu0 0
        %2219 = vmatprep.subr.bf16.mxu0 0
        %2220 = vmatpush1.bf16.msra.mxu0 0
        %2221 = vmatprep.subr.bf16.mxu0 0
        %2222 = vmatpush1.bf16.msra.mxu0 0
        %2223 = vmatprep.subr.bf16.mxu0 0
        %2224 = vmatpush1.bf16.msra.mxu0 0
        %2225 = vmatprep.mubr.bf16.mxu0 0
        %2226 = vmatmul.mubr.bf16.gmra.mrb[0].mxu0 %v2188
        %v2227 = vpop.f32.mrb[0].mxu0
        %v2228 = vadd.f32 0.0, %v2227
        %v2229 = vpop.f32.mrb[0].mxu0
        %v2230 = vpop.f32.mrb[0].mxu0
        %v2231 = vpop.f32.mrb[0].mxu0
        %2232 = vdwg.mxu0
        %v2234 = vsel %vm1809, %v1991, 0
        %v2237 = vsel %vm2005, %v879, 0
        %2239 = vmatprep.subr.bf16.mxu0 0
        %2240 = vmatpush1.bf16.msra.mxu0 %v2237
        %2241 = vmatprep.subr.bf16.mxu0 0
        %2242 = vmatpush1.bf16.msra.mxu0 0
        %2243 = vmatprep.subr.bf16.mxu0 0
        %2244 = vmatpush1.bf16.msra.mxu0 0
        %2245 = vmatprep.subr.bf16.mxu0 0
        %2246 = vmatpush1.bf16.msra.mxu0 0
        %2247 = vmatprep.subr.bf16.mxu0 0
        %2248 = vmatpush1.bf16.msra.mxu0 0
        %2249 = vmatprep.subr.bf16.mxu0 0
        %2250 = vmatpush1.bf16.msra.mxu0 0
        %2251 = vmatprep.subr.bf16.mxu0 0
        %2252 = vmatpush1.bf16.msra.mxu0 0
        %2253 = vmatprep.subr.bf16.mxu0 0
        %2254 = vmatpush1.bf16.msra.mxu0 0
        %2255 = vmatprep.subr.bf16.mxu0 0
        %2256 = vmatpush1.bf16.msra.mxu0 0
        %2257 = vmatprep.subr.bf16.mxu0 0
        %2258 = vmatpush1.bf16.msra.mxu0 0
        %2259 = vmatprep.subr.bf16.mxu0 0
        %2260 = vmatpush1.bf16.msra.mxu0 0
        %2261 = vmatprep.subr.bf16.mxu0 0
        %2262 = vmatpush1.bf16.msra.mxu0 0
        %2263 = vmatprep.subr.bf16.mxu0 0
        %2264 = vmatpush1.bf16.msra.mxu0 0
        %2265 = vmatprep.subr.bf16.mxu0 0
        %2266 = vmatpush1.bf16.msra.mxu0 0
        %2267 = vmatprep.subr.bf16.mxu0 0
        %2268 = vmatpush1.bf16.msra.mxu0 0
        %2269 = vmatprep.subr.bf16.mxu0 0
        %2270 = vmatpush1.bf16.msra.mxu0 0
        %2271 = vmatprep.mubr.bf16.mxu0 0
        %2272 = vmatmul.mubr.bf16.gmra.mrb[0].mxu0 %v2234
        %v2273 = vpop.f32.mrb[0].mxu0
        %v2274 = vadd.f32 0.0, %v2273
        %v2275 = vpop.f32.mrb[0].mxu0
        %v2276 = vpop.f32.mrb[0].mxu0
        %v2277 = vpop.f32.mrb[0].mxu0
        %2278 = vdwg.mxu0
        %v2280 = vsel %vm1809, %v1992, 0
        %v2283 = vsel %vm2005, %v880, 0
        %2285 = vmatprep.subr.bf16.mxu0 0
        %2286 = vmatpush1.bf16.msra.mxu0 %v2283
        %2287 = vmatprep.subr.bf16.mxu0 0
        %2288 = vmatpush1.bf16.msra.mxu0 0
        %2289 = vmatprep.subr.bf16.mxu0 0
        %2290 = vmatpush1.bf16.msra.mxu0 0
        %2291 = vmatprep.subr.bf16.mxu0 0
        %2292 = vmatpush1.bf16.msra.mxu0 0
        %2293 = vmatprep.subr.bf16.mxu0 0
        %2294 = vmatpush1.bf16.msra.mxu0 0
        %2295 = vmatprep.subr.bf16.mxu0 0
        %2296 = vmatpush1.bf16.msra.mxu0 0
        %2297 = vmatprep.subr.bf16.mxu0 0
        %2298 = vmatpush1.bf16.msra.mxu0 0
        %2299 = vmatprep.subr.bf16.mxu0 0
        %2300 = vmatpush1.bf16.msra.mxu0 0
        %2301 = vmatprep.subr.bf16.mxu0 0
        %2302 = vmatpush1.bf16.msra.mxu0 0
        %2303 = vmatprep.subr.bf16.mxu0 0
        %2304 = vmatpush1.bf16.msra.mxu0 0
        %2305 = vmatprep.subr.bf16.mxu0 0
        %2306 = vmatpush1.bf16.msra.mxu0 0
        %2307 = vmatprep.subr.bf16.mxu0 0
        %2308 = vmatpush1.bf16.msra.mxu0 0
        %2309 = vmatprep.subr.bf16.mxu0 0
        %2310 = vmatpush1.bf16.msra.mxu0 0
        %2311 = vmatprep.subr.bf16.mxu0 0
        %2312 = vmatpush1.bf16.msra.mxu0 0
        %2313 = vmatprep.subr.bf16.mxu0 0
        %2314 = vmatpush1.bf16.msra.mxu0 0
        %2315 = vmatprep.subr.bf16.mxu0 0
        %2316 = vmatpush1.bf16.msra.mxu0 0
        %2317 = vmatprep.mubr.bf16.mxu0 0
        %2318 = vmatmul.mubr.bf16.gmra.mrb[0].mxu0 %v2280
        %v2319 = vpop.f32.mrb[0].mxu0
        %v2320 = vadd.f32 0.0, %v2319
        %v2321 = vpop.f32.mrb[0].mxu0
        %v2322 = vpop.f32.mrb[0].mxu0
        %v2323 = vpop.f32.mrb[0].mxu0
        %2324 = vdwg.mxu0
        %v2326 = vsel %vm1809, %v1993, 0
        %v2329 = vsel %vm2005, %v881, 0
        %2331 = vmatprep.subr.bf16.mxu0 0
        %2332 = vmatpush1.bf16.msra.mxu0 %v2329
        %2333 = vmatprep.subr.bf16.mxu0 0
        %2334 = vmatpush1.bf16.msra.mxu0 0
        %2335 = vmatprep.subr.bf16.mxu0 0
        %2336 = vmatpush1.bf16.msra.mxu0 0
        %2337 = vmatprep.subr.bf16.mxu0 0
        %2338 = vmatpush1.bf16.msra.mxu0 0
        %2339 = vmatprep.subr.bf16.mxu0 0
        %2340 = vmatpush1.bf16.msra.mxu0 0
        %2341 = vmatprep.subr.bf16.mxu0 0
        %2342 = vmatpush1.bf16.msra.mxu0 0
        %2343 = vmatprep.subr.bf16.mxu0 0
        %2344 = vmatpush1.bf16.msra.mxu0 0
        %2345 = vmatprep.subr.bf16.mxu0 0
        %2346 = vmatpush1.bf16.msra.mxu0 0
        %2347 = vmatprep.subr.bf16.mxu0 0
        %2348 = vmatpush1.bf16.msra.mxu0 0
        %2349 = vmatprep.subr.bf16.mxu0 0
        %2350 = vmatpush1.bf16.msra.mxu0 0
        %2351 = vmatprep.subr.bf16.mxu0 0
        %2352 = vmatpush1.bf16.msra.mxu0 0
        %2353 = vmatprep.subr.bf16.mxu0 0
        %2354 = vmatpush1.bf16.msra.mxu0 0
        %2355 = vmatprep.subr.bf16.mxu0 0
        %2356 = vmatpush1.bf16.msra.mxu0 0
        %2357 = vmatprep.subr.bf16.mxu0 0
        %2358 = vmatpush1.bf16.msra.mxu0 0
        %2359 = vmatprep.subr.bf16.mxu0 0
        %2360 = vmatpush1.bf16.msra.mxu0 0
        %2361 = vmatprep.subr.bf16.mxu0 0
        %2362 = vmatpush1.bf16.msra.mxu0 0
        %2363 = vmatprep.mubr.bf16.mxu0 0
        %2364 = vmatmul.mubr.bf16.gmra.mrb[0].mxu0 %v2326
        %v2365 = vpop.f32.mrb[0].mxu0
        %v2366 = vadd.f32 0.0, %v2365
        %v2367 = vpop.f32.mrb[0].mxu0
        %v2368 = vpop.f32.mrb[0].mxu0
        %v2369 = vpop.f32.mrb[0].mxu0
        %2370 = vdwg.mxu0
        %v2372 = vsel %vm1809, %v1994, 0
        %v2375 = vsel %vm2005, %v882, 0
        %2377 = vmatprep.subr.bf16.mxu0 0
        %2378 = vmatpush1.bf16.msra.mxu0 %v2375
        %2379 = vmatprep.subr.bf16.mxu0 0
        %2380 = vmatpush1.bf16.msra.mxu0 0
        %2381 = vmatprep.subr.bf16.mxu0 0
        %2382 = vmatpush1.bf16.msra.mxu0 0
        %2383 = vmatprep.subr.bf16.mxu0 0
        %2384 = vmatpush1.bf16.msra.mxu0 0
        %2385 = vmatprep.subr.bf16.mxu0 0
        %2386 = vmatpush1.bf16.msra.mxu0 0
        %2387 = vmatprep.subr.bf16.mxu0 0
        %2388 = vmatpush1.bf16.msra.mxu0 0
        %2389 = vmatprep.subr.bf16.mxu0 0
        %2390 = vmatpush1.bf16.msra.mxu0 0
        %2391 = vmatprep.subr.bf16.mxu0 0
        %2392 = vmatpush1.bf16.msra.mxu0 0
        %2393 = vmatprep.subr.bf16.mxu0 0
        %2394 = vmatpush1.bf16.msra.mxu0 0
        %2395 = vmatprep.subr.bf16.mxu0 0
        %2396 = vmatpush1.bf16.msra.mxu0 0
        %2397 = vmatprep.subr.bf16.mxu0 0
        %2398 = vmatpush1.bf16.msra.mxu0 0
        %2399 = vmatprep.subr.bf16.mxu0 0
        %2400 = vmatpush1.bf16.msra.mxu0 0
        %2401 = vmatprep.subr.bf16.mxu0 0
        %2402 = vmatpush1.bf16.msra.mxu0 0
        %2403 = vmatprep.subr.bf16.mxu0 0
        %2404 = vmatpush1.bf16.msra.mxu0 0
        %2405 = vmatprep.subr.bf16.mxu0 0
        %2406 = vmatpush1.bf16.msra.mxu0 0
        %2407 = vmatprep.subr.bf16.mxu0 0
        %2408 = vmatpush1.bf16.msra.mxu0 0
        %2409 = vmatprep.mubr.bf16.mxu0 0
        %2410 = vmatmul.mubr.bf16.gmra.mrb[0].mxu0 %v2372
        %v2411 = vpop.f32.mrb[0].mxu0
        %v2412 = vadd.f32 0.0, %v2411
        %v2413 = vpop.f32.mrb[0].mxu0
        %v2414 = vpop.f32.mrb[0].mxu0
        %v2415 = vpop.f32.mrb[0].mxu0
        %2416 = vdwg.mxu0
        %v2418 = vsel %vm1809, %v1995, 0
        %v2421 = vsel %vm2005, %v883, 0
        %2423 = vmatprep.subr.bf16.mxu0 0
        %2424 = vmatpush1.bf16.msra.mxu0 %v2421
        %2425 = vmatprep.subr.bf16.mxu0 0
        %2426 = vmatpush1.bf16.msra.mxu0 0
        %2427 = vmatprep.subr.bf16.mxu0 0
        %2428 = vmatpush1.bf16.msra.mxu0 0
        %2429 = vmatprep.subr.bf16.mxu0 0
        %2430 = vmatpush1.bf16.msra.mxu0 0
        %2431 = vmatprep.subr.bf16.mxu0 0
        %2432 = vmatpush1.bf16.msra.mxu0 0
        %2433 = vmatprep.subr.bf16.mxu0 0
        %2434 = vmatpush1.bf16.msra.mxu0 0
        %2435 = vmatprep.subr.bf16.mxu0 0
        %2436 = vmatpush1.bf16.msra.mxu0 0
        %2437 = vmatprep.subr.bf16.mxu0 0
        %2438 = vmatpush1.bf16.msra.mxu0 0
        %2439 = vmatprep.subr.bf16.mxu0 0
        %2440 = vmatpush1.bf16.msra.mxu0 0
        %2441 = vmatprep.subr.bf16.mxu0 0
        %2442 = vmatpush1.bf16.msra.mxu0 0
        %2443 = vmatprep.subr.bf16.mxu0 0
        %2444 = vmatpush1.bf16.msra.mxu0 0
        %2445 = vmatprep.subr.bf16.mxu0 0
        %2446 = vmatpush1.bf16.msra.mxu0 0
        %2447 = vmatprep.subr.bf16.mxu0 0
        %2448 = vmatpush1.bf16.msra.mxu0 0
        %2449 = vmatprep.subr.bf16.mxu0 0
        %2450 = vmatpush1.bf16.msra.mxu0 0
        %2451 = vmatprep.subr.bf16.mxu0 0
        %2452 = vmatpush1.bf16.msra.mxu0 0
        %2453 = vmatprep.subr.bf16.mxu0 0
        %2454 = vmatpush1.bf16.msra.mxu0 0
        %2455 = vmatprep.mubr.bf16.mxu0 0
        %2456 = vmatmul.mubr.bf16.gmra.mrb[0].mxu0 %v2418
        %v2457 = vpop.f32.mrb[0].mxu0
        %v2458 = vadd.f32 0.0, %v2457
        %v2459 = vpop.f32.mrb[0].mxu0
        %v2460 = vpop.f32.mrb[0].mxu0
        %v2461 = vpop.f32.mrb[0].mxu0
        %2462 = vdwg.mxu0
        %v2464 = vsel %vm1809, %v1996, 0
        %v2467 = vsel %vm2005, %v884, 0
        %2469 = vmatprep.subr.bf16.mxu0 0
        %2470 = vmatpush1.bf16.msra.mxu0 %v2467
        %2471 = vmatprep.subr.bf16.mxu0 0
        %2472 = vmatpush1.bf16.msra.mxu0 0
        %2473 = vmatprep.subr.bf16.mxu0 0
        %2474 = vmatpush1.bf16.msra.mxu0 0
        %2475 = vmatprep.subr.bf16.mxu0 0
        %2476 = vmatpush1.bf16.msra.mxu0 0
        %2477 = vmatprep.subr.bf16.mxu0 0
        %2478 = vmatpush1.bf16.msra.mxu0 0
        %2479 = vmatprep.subr.bf16.mxu0 0
        %2480 = vmatpush1.bf16.msra.mxu0 0
        %2481 = vmatprep.subr.bf16.mxu0 0
        %2482 = vmatpush1.bf16.msra.mxu0 0
        %2483 = vmatprep.subr.bf16.mxu0 0
        %2484 = vmatpush1.bf16.msra.mxu0 0
        %2485 = vmatprep.subr.bf16.mxu0 0
        %2486 = vmatpush1.bf16.msra.mxu0 0
        %2487 = vmatprep.subr.bf16.mxu0 0
        %2488 = vmatpush1.bf16.msra.mxu0 0
        %2489 = vmatprep.subr.bf16.mxu0 0
        %2490 = vmatpush1.bf16.msra.mxu0 0
        %2491 = vmatprep.subr.bf16.mxu0 0
        %2492 = vmatpush1.bf16.msra.mxu0 0
        %2493 = vmatprep.subr.bf16.mxu0 0
        %2494 = vmatpush1.bf16.msra.mxu0 0
        %2495 = vmatprep.subr.bf16.mxu0 0
        %2496 = vmatpush1.bf16.msra.mxu0 0
        %2497 = vmatprep.subr.bf16.mxu0 0
        %2498 = vmatpush1.bf16.msra.mxu0 0
        %2499 = vmatprep.subr.bf16.mxu0 0
        %2500 = vmatpush1.bf16.msra.mxu0 0
        %2501 = vmatprep.mubr.bf16.mxu0 0
        %2502 = vmatmul.mubr.bf16.gmra.mrb[0].mxu0 %v2464
        %v2503 = vpop.f32.mrb[0].mxu0
        %v2504 = vadd.f32 0.0, %v2503
        %v2505 = vpop.f32.mrb[0].mxu0
        %v2506 = vpop.f32.mrb[0].mxu0
        %v2507 = vpop.f32.mrb[0].mxu0
        %2508 = vdwg.mxu0
        %v2510 = vsel %vm1809, %v1997, 0
        %v2513 = vsel %vm2005, %v885, 0
        %2515 = vmatprep.subr.bf16.mxu0 0
        %2516 = vmatpush1.bf16.msra.mxu0 %v2513
        %2517 = vmatprep.subr.bf16.mxu0 0
        %2518 = vmatpush1.bf16.msra.mxu0 0
        %2519 = vmatprep.subr.bf16.mxu0 0
        %2520 = vmatpush1.bf16.msra.mxu0 0
        %2521 = vmatprep.subr.bf16.mxu0 0
        %2522 = vmatpush1.bf16.msra.mxu0 0
        %2523 = vmatprep.subr.bf16.mxu0 0
        %2524 = vmatpush1.bf16.msra.mxu0 0
        %2525 = vmatprep.subr.bf16.mxu0 0
        %2526 = vmatpush1.bf16.msra.mxu0 0
        %2527 = vmatprep.subr.bf16.mxu0 0
        %2528 = vmatpush1.bf16.msra.mxu0 0
        %2529 = vmatprep.subr.bf16.mxu0 0
        %2530 = vmatpush1.bf16.msra.mxu0 0
        %2531 = vmatprep.subr.bf16.mxu0 0
        %2532 = vmatpush1.bf16.msra.mxu0 0
        %2533 = vmatprep.subr.bf16.mxu0 0
        %2534 = vmatpush1.bf16.msra.mxu0 0
        %2535 = vmatprep.subr.bf16.mxu0 0
        %2536 = vmatpush1.bf16.msra.mxu0 0
        %2537 = vmatprep.subr.bf16.mxu0 0
        %2538 = vmatpush1.bf16.msra.mxu0 0
        %2539 = vmatprep.subr.bf16.mxu0 0
        %2540 = vmatpush1.bf16.msra.mxu0 0
        %2541 = vmatprep.subr.bf16.mxu0 0
        %2542 = vmatpush1.bf16.msra.mxu0 0
        %2543 = vmatprep.subr.bf16.mxu0 0
        %2544 = vmatpush1.bf16.msra.mxu0 0
        %2545 = vmatprep.subr.bf16.mxu0 0
        %2546 = vmatpush1.bf16.msra.mxu0 0
        %2547 = vmatprep.mubr.bf16.mxu0 0
        %2548 = vmatmul.mubr.bf16.gmra.mrb[0].mxu0 %v2510
        %v2549 = vpop.f32.mrb[0].mxu0
        %v2550 = vadd.f32 0.0, %v2549
        %v2551 = vpop.f32.mrb[0].mxu0
        %v2552 = vpop.f32.mrb[0].mxu0
        %v2553 = vpop.f32.mrb[0].mxu0
        %2554 = vdwg.mxu0
        %v2556 = vsel %vm1809, %v1998, 0
        %v2559 = vsel %vm2005, %v886, 0
        %2561 = vmatprep.subr.bf16.mxu0 0
        %2562 = vmatpush1.bf16.msra.mxu0 %v2559
        %2563 = vmatprep.subr.bf16.mxu0 0
        %2564 = vmatpush1.bf16.msra.mxu0 0
        %2565 = vmatprep.subr.bf16.mxu0 0
        %2566 = vmatpush1.bf16.msra.mxu0 0
        %2567 = vmatprep.subr.bf16.mxu0 0
        %2568 = vmatpush1.bf16.msra.mxu0 0
        %2569 = vmatprep.subr.bf16.mxu0 0
        %2570 = vmatpush1.bf16.msra.mxu0 0
        %2571 = vmatprep.subr.bf16.mxu0 0
        %2572 = vmatpush1.bf16.msra.mxu0 0
        %2573 = vmatprep.subr.bf16.mxu0 0
        %2574 = vmatpush1.bf16.msra.mxu0 0
        %2575 = vmatprep.subr.bf16.mxu0 0
        %2576 = vmatpush1.bf16.msra.mxu0 0
        %2577 = vmatprep.subr.bf16.mxu0 0
        %2578 = vmatpush1.bf16.msra.mxu0 0
        %2579 = vmatprep.subr.bf16.mxu0 0
        %2580 = vmatpush1.bf16.msra.mxu0 0
        %2581 = vmatprep.subr.bf16.mxu0 0
        %2582 = vmatpush1.bf16.msra.mxu0 0
        %2583 = vmatprep.subr.bf16.mxu0 0
        %2584 = vmatpush1.bf16.msra.mxu0 0
        %2585 = vmatprep.subr.bf16.mxu0 0
        %2586 = vmatpush1.bf16.msra.mxu0 0
        %2587 = vmatprep.subr.bf16.mxu0 0
        %2588 = vmatpush1.bf16.msra.mxu0 0
        %2589 = vmatprep.subr.bf16.mxu0 0
        %2590 = vmatpush1.bf16.msra.mxu0 0
        %2591 = vmatprep.subr.bf16.mxu0 0
        %2592 = vmatpush1.bf16.msra.mxu0 0
        %2593 = vmatprep.mubr.bf16.mxu0 0
        %2594 = vmatmul.mubr.bf16.gmra.mrb[0].mxu0 %v2556
        %v2595 = vpop.f32.mrb[0].mxu0
        %v2596 = vadd.f32 0.0, %v2595
        %v2597 = vpop.f32.mrb[0].mxu0
        %v2598 = vpop.f32.mrb[0].mxu0
        %v2599 = vpop.f32.mrb[0].mxu0
        %2600 = vdwg.mxu0
        %v2602 = vsel %vm1809, %v1999, 0
        %v2605 = vsel %vm2005, %v887, 0
        %2607 = vmatprep.subr.bf16.mxu0 0
        %2608 = vmatpush1.bf16.msra.mxu0 %v2605
        %2609 = vmatprep.subr.bf16.mxu0 0
        %2610 = vmatpush1.bf16.msra.mxu0 0
        %2611 = vmatprep.subr.bf16.mxu0 0
        %2612 = vmatpush1.bf16.msra.mxu0 0
        %2613 = vmatprep.subr.bf16.mxu0 0
        %2614 = vmatpush1.bf16.msra.mxu0 0
        %2615 = vmatprep.subr.bf16.mxu0 0
        %2616 = vmatpush1.bf16.msra.mxu0 0
        %2617 = vmatprep.subr.bf16.mxu0 0
        %2618 = vmatpush1.bf16.msra.mxu0 0
        %2619 = vmatprep.subr.bf16.mxu0 0
        %2620 = vmatpush1.bf16.msra.mxu0 0
        %2621 = vmatprep.subr.bf16.mxu0 0
        %2622 = vmatpush1.bf16.msra.mxu0 0
        %2623 = vmatprep.subr.bf16.mxu0 0
        %2624 = vmatpush1.bf16.msra.mxu0 0
        %2625 = vmatprep.subr.bf16.mxu0 0
        %2626 = vmatpush1.bf16.msra.mxu0 0
        %2627 = vmatprep.subr.bf16.mxu0 0
        %2628 = vmatpush1.bf16.msra.mxu0 0
        %2629 = vmatprep.subr.bf16.mxu0 0
        %2630 = vmatpush1.bf16.msra.mxu0 0
        %2631 = vmatprep.subr.bf16.mxu0 0
        %2632 = vmatpush1.bf16.msra.mxu0 0
        %2633 = vmatprep.subr.bf16.mxu0 0
        %2634 = vmatpush1.bf16.msra.mxu0 0
        %2635 = vmatprep.subr.bf16.mxu0 0
        %2636 = vmatpush1.bf16.msra.mxu0 0
        %2637 = vmatprep.subr.bf16.mxu0 0
        %2638 = vmatpush1.bf16.msra.mxu0 0
        %2639 = vmatprep.mubr.bf16.mxu0 0
        %2640 = vmatmul.mubr.bf16.gmra.mrb[0].mxu0 %v2602
        %v2641 = vpop.f32.mrb[0].mxu0
        %v2642 = vadd.f32 0.0, %v2641
        %v2643 = vpop.f32.mrb[0].mxu0
        %v2644 = vpop.f32.mrb[0].mxu0
        %v2645 = vpop.f32.mrb[0].mxu0
        %2646 = vdwg.mxu0
        %v2648 = vsel %vm1809, %v2000, 0
        %v2651 = vsel %vm2005, %v888, 0
        %2653 = vmatprep.subr.bf16.mxu0 0
        %2654 = vmatpush1.bf16.msra.mxu0 %v2651
        %2655 = vmatprep.subr.bf16.mxu0 0
        %2656 = vmatpush1.bf16.msra.mxu0 0
        %2657 = vmatprep.subr.bf16.mxu0 0
        %2658 = vmatpush1.bf16.msra.mxu0 0
        %2659 = vmatprep.subr.bf16.mxu0 0
        %2660 = vmatpush1.bf16.msra.mxu0 0
        %2661 = vmatprep.subr.bf16.mxu0 0
        %2662 = vmatpush1.bf16.msra.mxu0 0
        %2663 = vmatprep.subr.bf16.mxu0 0
        %2664 = vmatpush1.bf16.msra.mxu0 0
        %2665 = vmatprep.subr.bf16.mxu0 0
        %2666 = vmatpush1.bf16.msra.mxu0 0
        %2667 = vmatprep.subr.bf16.mxu0 0
        %2668 = vmatpush1.bf16.msra.mxu0 0
        %2669 = vmatprep.subr.bf16.mxu0 0
        %2670 = vmatpush1.bf16.msra.mxu0 0
        %2671 = vmatprep.subr.bf16.mxu0 0
        %2672 = vmatpush1.bf16.msra.mxu0 0
        %2673 = vmatprep.subr.bf16.mxu0 0
        %2674 = vmatpush1.bf16.msra.mxu0 0
        %2675 = vmatprep.subr.bf16.mxu0 0
        %2676 = vmatpush1.bf16.msra.mxu0 0
        %2677 = vmatprep.subr.bf16.mxu0 0
        %2678 = vmatpush1.bf16.msra.mxu0 0
        %2679 = vmatprep.subr.bf16.mxu0 0
        %2680 = vmatpush1.bf16.msra.mxu0 0
        %2681 = vmatprep.subr.bf16.mxu0 0
        %2682 = vmatpush1.bf16.msra.mxu0 0
        %2683 = vmatprep.subr.bf16.mxu0 0
        %2684 = vmatpush1.bf16.msra.mxu0 0
        %2685 = vmatprep.mubr.bf16.mxu0 0
        %2686 = vmatmul.mubr.bf16.gmra.mrb[0].mxu0 %v2648
        %v2687 = vpop.f32.mrb[0].mxu0
        %v2688 = vadd.f32 0.0, %v2687
        %v2689 = vpop.f32.mrb[0].mxu0
        %v2690 = vpop.f32.mrb[0].mxu0
        %v2691 = vpop.f32.mrb[0].mxu0
        %2692 = vdwg.mxu0
        %v2694 = vsel %vm1809, %v2001, 0
        %v2697 = vsel %vm2005, %v889, 0
        %2699 = vmatprep.subr.bf16.mxu0 0
        %2700 = vmatpush1.bf16.msra.mxu0 %v2697
        %2701 = vmatprep.subr.bf16.mxu0 0
        %2702 = vmatpush1.bf16.msra.mxu0 0
        %2703 = vmatprep.subr.bf16.mxu0 0
        %2704 = vmatpush1.bf16.msra.mxu0 0
        %2705 = vmatprep.subr.bf16.mxu0 0
        %2706 = vmatpush1.bf16.msra.mxu0 0
        %2707 = vmatprep.subr.bf16.mxu0 0
        %2708 = vmatpush1.bf16.msra.mxu0 0
        %2709 = vmatprep.subr.bf16.mxu0 0
        %2710 = vmatpush1.bf16.msra.mxu0 0
        %2711 = vmatprep.subr.bf16.mxu0 0
        %2712 = vmatpush1.bf16.msra.mxu0 0
        %2713 = vmatprep.subr.bf16.mxu0 0
        %2714 = vmatpush1.bf16.msra.mxu0 0
        %2715 = vmatprep.subr.bf16.mxu0 0
        %2716 = vmatpush1.bf16.msra.mxu0 0
        %2717 = vmatprep.subr.bf16.mxu0 0
        %2718 = vmatpush1.bf16.msra.mxu0 0
        %2719 = vmatprep.subr.bf16.mxu0 0
        %2720 = vmatpush1.bf16.msra.mxu0 0
        %2721 = vmatprep.subr.bf16.mxu0 0
        %2722 = vmatpush1.bf16.msra.mxu0 0
        %2723 = vmatprep.subr.bf16.mxu0 0
        %2724 = vmatpush1.bf16.msra.mxu0 0
        %2725 = vmatprep.subr.bf16.mxu0 0
        %2726 = vmatpush1.bf16.msra.mxu0 0
        %2727 = vmatprep.subr.bf16.mxu0 0
        %2728 = vmatpush1.bf16.msra.mxu0 0
        %2729 = vmatprep.subr.bf16.mxu0 0
        %2730 = vmatpush1.bf16.msra.mxu0 0
        %2731 = vmatprep.mubr.bf16.mxu0 0
        %2732 = vmatmul.mubr.bf16.gmra.mrb[0].mxu0 %v2694
        %v2733 = vpop.f32.mrb[0].mxu0
        %v2734 = vadd.f32 0.0, %v2733
        %v2735 = vpop.f32.mrb[0].mxu0
        %v2736 = vpop.f32.mrb[0].mxu0
        %v2737 = vpop.f32.mrb[0].mxu0
        %2738 = vdwg.mxu0
        %2741 = vrot.lane.b32.xlu0 %v2136, 16
        %v2742 = vpop.permute.xlu0 %2741
        %2743 = vrot.lane.b32.xlu0 %v2182, 16
        %v2744 = vpop.permute.xlu0 %2743
        %2749 = vrot.lane.b32.xlu0 %v2228, 32
        %v2750 = vpop.permute.xlu0 %2749
        %2751 = vrot.lane.b32.xlu0 %v2274, 32
        %v2752 = vpop.permute.xlu0 %2751
        %2757 = vrot.lane.b32.xlu0 %v2320, 48
        %v2758 = vpop.permute.xlu0 %2757
        %2759 = vrot.lane.b32.xlu0 %v2366, 48
        %v2760 = vpop.permute.xlu0 %2759
        %2765 = vrot.lane.b32.xlu0 %v2412, 64
        %v2766 = vpop.permute.xlu0 %2765
        %2767 = vrot.lane.b32.xlu0 %v2458, 64
        %v2768 = vpop.permute.xlu0 %2767
        %2773 = vrot.lane.b32.xlu0 %v2504, 80
        %v2774 = vpop.permute.xlu0 %2773
        %2775 = vrot.lane.b32.xlu0 %v2550, 80
        %v2776 = vpop.permute.xlu0 %2775
        %2781 = vrot.lane.b32.xlu0 %v2596, 96
        %v2782 = vpop.permute.xlu0 %2781
        %2783 = vrot.lane.b32.xlu0 %v2642, 96
        %v2784 = vpop.permute.xlu0 %2783
        %2789 = vrot.lane.b32.xlu0 %v2688, 112
        %v2790 = vpop.permute.xlu0 %2789
        %2791 = vrot.lane.b32.xlu0 %v2734, 112
        %v2792 = vpop.permute.xlu0 %2791
        %v2795 = vsel %vm1072, %v2044, %v2742
        %v2796 = vsel %vm1072, %v2090, %v2744
        %vm2797 = vcmask 261120
        %v2798 = vsel %vm2797, %v2795, %v2750
        %v2799 = vsel %vm2797, %v2796, %v2752
        %vm2800 = vcmask 392192
        %v2801 = vsel %vm2800, %v2798, %v2758
        %v2802 = vsel %vm2800, %v2799, %v2760
        %vm2803 = vcmask 523264
        %v2804 = vsel %vm2803, %v2801, %v2766
        %v2805 = vsel %vm2803, %v2802, %v2768
        %vm2806 = vcmask 654336
        %v2807 = vsel %vm2806, %v2804, %v2774
        %v2808 = vsel %vm2806, %v2805, %v2776
        %vm2809 = vcmask 785408
        %v2810 = vsel %vm2809, %v2807, %v2782
        %v2811 = vsel %vm2809, %v2808, %v2784
        %vm2812 = vcmask 916480
        %v2813 = vsel %vm2812, %v2810, %v2790
        %v2814 = vsel %vm2812, %v2811, %v2792
        %v2815 = vpack.c.bf16 %v2814, %v2813
        %v2816 = vld [vmem:[%s364] sm:$0xf]
        %v2817 = vld [vmem:[%s364 + $0x4] sm:$0xf]
        %v2818 = vld [vmem:[%s364 + $0x8] sm:$0xf]
        %v2819 = vld [vmem:[%s364 + $0xc] sm:$0xf]
        %v2820 = vld [vmem:[%s364 + $0x10] sm:$0xf]
        %v2821 = vld [vmem:[%s364 + $0x14] sm:$0xf]
        %v2822 = vld [vmem:[%s364 + $0x18] sm:$0xf]
        %v2823 = vld [vmem:[%s364 + $0x1c] sm:$0xf]
        %v2824 = vld [vmem:[%s364 + $0x20] sm:$0xf]
        %v2825 = vld [vmem:[%s364 + $0x24] sm:$0xf]
        %v2826 = vld [vmem:[%s364 + $0x28] sm:$0xf]
        %v2827 = vld [vmem:[%s364 + $0x2c] sm:$0xf]
        %v2828 = vld [vmem:[%s364 + $0x30] sm:$0xf]
        %v2829 = vld [vmem:[%s364 + $0x34] sm:$0xf]
        %v2830 = vld [vmem:[%s364 + $0x38] sm:$0xf]
        %v2831 = vld [vmem:[%s364 + $0x3c] sm:$0xf]
        %v2832 = vlaneseq
        %v2833 = vshrl.u32 %v2832, 7
        %v2834 = vsub.s32 1, %v2833
        %v2835 = vrot.slane %v448, %v2834
        %v2852 = vunpack.c.l.b16 %v2816
        %v2853 = vunpack.c.l.b16 %v2817
        %v2854 = vunpack.c.l.b16 %v2818
        %v2855 = vunpack.c.l.b16 %v2819
        %v2856 = vunpack.c.l.b16 %v2820
        %v2857 = vunpack.c.l.b16 %v2821
        %v2858 = vunpack.c.l.b16 %v2822
        %v2859 = vunpack.c.l.b16 %v2823
        %v2860 = vunpack.c.l.b16 %v2824
        %v2861 = vunpack.c.l.b16 %v2825
        %v2862 = vunpack.c.l.b16 %v2826
        %v2863 = vunpack.c.l.b16 %v2827
        %v2864 = vunpack.c.l.b16 %v2828
        %v2865 = vunpack.c.l.b16 %v2829
        %v2866 = vunpack.c.l.b16 %v2830
        %v2867 = vunpack.c.l.b16 %v2831
        %v2868 = vpack.c.b16 %v2853, %v2852
        %v2869 = vpack.c.b16 %v2855, %v2854
        %v2870 = vpack.c.b16 %v2857, %v2856
        %v2871 = vpack.c.b16 %v2859, %v2858
        %v2872 = vpack.c.b16 %v2861, %v2860
        %v2873 = vpack.c.b16 %v2863, %v2862
        %v2874 = vpack.c.b16 %v2865, %v2864
        %v2875 = vpack.c.b16 %v2867, %v2866
        %2884 = vmatprep.subr.bf16.mxu0 0
        %2885 = vmatpush1.bf16.msra.mxu0 %v2868
        %2886 = vmatprep.subr.bf16.mxu0 0
        %2887 = vmatpush1.bf16.msra.mxu0 %v2869
        %2888 = vmatprep.subr.bf16.mxu0 0
        %2889 = vmatpush1.bf16.msra.mxu0 %v2870
        %2890 = vmatprep.subr.bf16.mxu0 0
        %2891 = vmatpush1.bf16.msra.mxu0 %v2871
        %2892 = vmatprep.subr.bf16.mxu0 0
        %2893 = vmatpush1.bf16.msra.mxu0 %v2872
        %2894 = vmatprep.subr.bf16.mxu0 0
        %2895 = vmatpush1.bf16.msra.mxu0 %v2873
        %2896 = vmatprep.subr.bf16.mxu0 0
        %2897 = vmatpush1.bf16.msra.mxu0 %v2874
        %2898 = vmatprep.subr.bf16.mxu0 0
        %2899 = vmatpush1.bf16.msra.mxu0 %v2875
        %2900 = vmatprep.subr.bf16.mxu0 0
        %2901 = vmatpush1.bf16.msra.mxu0 0
        %2902 = vmatprep.subr.bf16.mxu0 0
        %2903 = vmatpush1.bf16.msra.mxu0 0
        %2904 = vmatprep.subr.bf16.mxu0 0
        %2905 = vmatpush1.bf16.msra.mxu0 0
        %2906 = vmatprep.subr.bf16.mxu0 0
        %2907 = vmatpush1.bf16.msra.mxu0 0
        %2908 = vmatprep.subr.bf16.mxu0 0
        %2909 = vmatpush1.bf16.msra.mxu0 0
        %2910 = vmatprep.subr.bf16.mxu0 0
        %2911 = vmatpush1.bf16.msra.mxu0 0
        %2912 = vmatprep.subr.bf16.mxu0 0
        %2913 = vmatpush1.bf16.msra.mxu0 0
        %2914 = vmatprep.subr.bf16.mxu0 0
        %2915 = vmatpush1.bf16.msra.mxu0 0
        %2916 = vmatprep.mubr.bf16.mxu0 0
        %2917 = vmatmul.mubr.bf16.gmra.mrb[0].mxu0 %v2815
        %v2918 = vpop.f32.mrb[0].mxu0
        %v2919 = vadd.f32 %v2835, %v2918
        %v2920 = vpop.f32.mrb[0].mxu0
        %v2921 = vpop.f32.mrb[0].mxu0
        %v2922 = vadd.f32 %v2835, %v2921
        %v2923 = vpop.f32.mrb[0].mxu0
        %2924 = vdwg.mxu0
        %v2925 = vadd.f32 %v446, %v2919
        %v2926 = vadd.f32 %v447, %v2922
        %2927 = vadd.xlane.f32.xlu0 %v2925
        %v2928 = vpop.xlane.xlu0 %2927
        %2929 = vadd.xlane.f32.xlu0 %v2926
        %v2930 = vpop.xlane.xlu0 %2929
        %v2931 = vrcp.pop 128.0
        %v2932 = vmul.f32 %v2928, %v2931
        %v2933 = vmul.f32 %v2930, %v2931
        %v2934 = vsub.f32 %v2925, %v2932
        %v2935 = vsub.f32 %v2926, %v2933
        %v2936 = vmul.f32 %v2934, %v2934
        %v2937 = vmul.f32 %v2935, %v2935
        %2938 = vadd.xlane.f32.xlu0 %v2936
        %v2939 = vpop.xlane.xlu0 %2938
        %2940 = vadd.xlane.f32.xlu0 %v2937
        %v2941 = vpop.xlane.xlu0 %2940
        %v2942 = vmul.f32 %v2939, %v2931
        %v2943 = vmul.f32 %v2941, %v2931
        %v2944 = vadd.f32 %v2942, 1e-05
        %v2945 = vadd.f32 %v2943, 1e-05
        %v2946 = vrsqrt.pop %v2944
        %v2947 = vrsqrt.pop %v2945
        %v2948 = vmul.f32 %v2934, %v2946
        %v2949 = vmul.f32 %v2935, %v2947
        %v2950 = vlaneseq
        %v2951 = vshrl.u32 %v2950, 7
        %v2952 = vsub.s32 2, %v2951
        %v2953 = vrot.slane %v448, %v2952
        %v2954 = vmul.f32 %v2948, %v2953
        %v2955 = vmul.f32 %v2949, %v2953
        %v2956 = vlaneseq
        %v2957 = vshrl.u32 %v2956, 7
        %v2958 = vsub.s32 3, %v2957
        %v2959 = vrot.slane %v448, %v2958
        %v2960 = vadd.f32 %v2954, %v2959
        %v2961 = vadd.f32 %v2955, %v2959
        %v2962 = vpack.c.bf16 %v2961, %v2960
        %v2963 = vld [vmem:[%s373] sm:$0xff]
        %v2964 = vld [vmem:[%s373 + $0x8] sm:$0xff]
        %v2965 = vld [vmem:[%s373 + $0x10] sm:$0xff]
        %v2966 = vld [vmem:[%s373 + $0x18] sm:$0xff]
        %v2967 = vld [vmem:[%s373 + $0x20] sm:$0xff]
        %v2968 = vld [vmem:[%s373 + $0x28] sm:$0xff]
        %v2969 = vld [vmem:[%s373 + $0x30] sm:$0xff]
        %v2970 = vld [vmem:[%s373 + $0x38] sm:$0xff]
        %v2971 = vld [vmem:[%s373 + $0x40] sm:$0xff]
        %v2972 = vld [vmem:[%s373 + $0x48] sm:$0xff]
        %v2973 = vld [vmem:[%s373 + $0x50] sm:$0xff]
        %v2974 = vld [vmem:[%s373 + $0x58] sm:$0xff]
        %v2975 = vld [vmem:[%s373 + $0x60] sm:$0xff]
        %v2976 = vld [vmem:[%s373 + $0x68] sm:$0xff]
        %v2977 = vld [vmem:[%s373 + $0x70] sm:$0xff]
        %v2978 = vld [vmem:[%s373 + $0x78] sm:$0xff]
        %v2979 = vlaneseq
        %v2980 = vshrl.u32 %v2979, 7
        %v2981 = vsub.s32 4, %v2980
        %v2982 = vrot.slane %v448, %v2981
        %v2983 = vlaneseq
        %v2984 = vshrl.u32 %v2983, 7
        %v2985 = vsub.s32 4, %v2984
        %v2986 = vrot.slane %v449, %v2985
        %v3003 = vunpack.c.l.b16 %v2963
        %v3004 = vunpack.c.h.b16 %v2963
        %v3005 = vunpack.c.l.b16 %v2964
        %v3006 = vunpack.c.h.b16 %v2964
        %v3007 = vunpack.c.l.b16 %v2965
        %v3008 = vunpack.c.h.b16 %v2965
        %v3009 = vunpack.c.l.b16 %v2966
        %v3010 = vunpack.c.h.b16 %v2966
        %v3011 = vunpack.c.l.b16 %v2967
        %v3012 = vunpack.c.h.b16 %v2967
        %v3013 = vunpack.c.l.b16 %v2968
        %v3014 = vunpack.c.h.b16 %v2968
        %v3015 = vunpack.c.l.b16 %v2969
        %v3016 = vunpack.c.h.b16 %v2969
        %v3017 = vunpack.c.l.b16 %v2970
        %v3018 = vunpack.c.h.b16 %v2970
        %v3019 = vunpack.c.l.b16 %v2971
        %v3020 = vunpack.c.h.b16 %v2971
        %v3021 = vunpack.c.l.b16 %v2972
        %v3022 = vunpack.c.h.b16 %v2972
        %v3023 = vunpack.c.l.b16 %v2973
        %v3024 = vunpack.c.h.b16 %v2973
        %v3025 = vunpack.c.l.b16 %v2974
        %v3026 = vunpack.c.h.b16 %v2974
        %v3027 = vunpack.c.l.b16 %v2975
        %v3028 = vunpack.c.h.b16 %v2975
        %v3029 = vunpack.c.l.b16 %v2976
        %v3030 = vunpack.c.h.b16 %v2976
        %v3031 = vunpack.c.l.b16 %v2977
        %v3032 = vunpack.c.h.b16 %v2977
        %v3033 = vunpack.c.l.b16 %v2978
        %v3034 = vunpack.c.h.b16 %v2978
        %v3035 = vpack.c.b16 %v3005, %v3003
        %v3036 = vpack.c.b16 %v3006, %v3004
        %v3037 = vpack.c.b16 %v3009, %v3007
        %v3038 = vpack.c.b16 %v3010, %v3008
        %v3039 = vpack.c.b16 %v3013, %v3011
        %v3040 = vpack.c.b16 %v3014, %v3012
        %v3041 = vpack.c.b16 %v3017, %v3015
        %v3042 = vpack.c.b16 %v3018, %v3016
        %v3043 = vpack.c.b16 %v3021, %v3019
        %v3044 = vpack.c.b16 %v3022, %v3020
        %v3045 = vpack.c.b16 %v3025, %v3023
        %v3046 = vpack.c.b16 %v3026, %v3024
        %v3047 = vpack.c.b16 %v3029, %v3027
        %v3048 = vpack.c.b16 %v3030, %v3028
        %v3049 = vpack.c.b16 %v3033, %v3031
        %v3050 = vpack.c.b16 %v3034, %v3032
        %3067 = vmatprep.subr.bf16.mxu0 %v3036
        %3068 = vmatpush1.bf16.msra.mxu0 %v3035
        %3069 = vmatprep.subr.bf16.mxu0 %v3038
        %3070 = vmatpush1.bf16.msra.mxu0 %v3037
        %3071 = vmatprep.subr.bf16.mxu0 %v3040
        %3072 = vmatpush1.bf16.msra.mxu0 %v3039
        %3073 = vmatprep.subr.bf16.mxu0 %v3042
        %3074 = vmatpush1.bf16.msra.mxu0 %v3041
        %3075 = vmatprep.subr.bf16.mxu0 %v3044
        %3076 = vmatpush1.bf16.msra.mxu0 %v3043
        %3077 = vmatprep.subr.bf16.mxu0 %v3046
        %3078 = vmatpush1.bf16.msra.mxu0 %v3045
        %3079 = vmatprep.subr.bf16.mxu0 %v3048
        %3080 = vmatpush1.bf16.msra.mxu0 %v3047
        %3081 = vmatprep.subr.bf16.mxu0 %v3050
        %3082 = vmatpush1.bf16.msra.mxu0 %v3049
        %3083 = vmatprep.subr.bf16.mxu0 0
        %3084 = vmatpush1.bf16.msra.mxu0 0
        %3085 = vmatprep.subr.bf16.mxu0 0
        %3086 = vmatpush1.bf16.msra.mxu0 0
        %3087 = vmatprep.subr.bf16.mxu0 0
        %3088 = vmatpush1.bf16.msra.mxu0 0
        %3089 = vmatprep.subr.bf16.mxu0 0
        %3090 = vmatpush1.bf16.msra.mxu0 0
        %3091 = vmatprep.subr.bf16.mxu0 0
        %3092 = vmatpush1.bf16.msra.mxu0 0
        %3093 = vmatprep.subr.bf16.mxu0 0
        %3094 = vmatpush1.bf16.msra.mxu0 0
        %3095 = vmatprep.subr.bf16.mxu0 0
        %3096 = vmatpush1.bf16.msra.mxu0 0
        %3097 = vmatprep.subr.bf16.mxu0 0
        %3098 = vmatpush1.bf16.msra.mxu0 0
        %3099 = vmatprep.mubr.bf16.mxu0 0
        %3100 = vmatmul.mubr.bf16.gmra.mrb[0].mxu0 %v2962
        %v3101 = vpop.f32.mrb[0].mxu0
        %v3102 = vadd.f32 %v2982, %v3101
        %v3103 = vpop.f32.mrb[0].mxu0
        %v3104 = vadd.f32 %v2986, %v3103
        %v3105 = vpop.f32.mrb[0].mxu0
        %v3106 = vadd.f32 %v2982, %v3105
        %v3107 = vpop.f32.mrb[0].mxu0
        %v3108 = vadd.f32 %v2986, %v3107
        %3109 = vdwg.mxu0
        %v3110 = vmax.f32 %v3102, 0.0
        %v3111 = vmax.f32 %v3104, 0.0
        %v3112 = vmax.f32 %v3106, 0.0
        %v3113 = vmax.f32 %v3108, 0.0
        %v3114 = vpack.c.bf16 %v3112, %v3110
        %v3115 = vpack.c.bf16 %v3113, %v3111
        %v3116 = vld [vmem:[%s382] sm:$0xf]
        %v3117 = vld [vmem:[%s382 + $0x4] sm:$0xf]
        %v3118 = vld [vmem:[%s382 + $0x8] sm:$0xf]
        %v3119 = vld [vmem:[%s382 + $0xc] sm:$0xf]
        %v3120 = vld [vmem:[%s382 + $0x10] sm:$0xf]
        %v3121 = vld [vmem:[%s382 + $0x14] sm:$0xf]
        %v3122 = vld [vmem:[%s382 + $0x18] sm:$0xf]
        %v3123 = vld [vmem:[%s382 + $0x1c] sm:$0xf]
        %v3124 = vld [vmem:[%s382 + $0x20] sm:$0xf]
        %v3125 = vld [vmem:[%s382 + $0x24] sm:$0xf]
        %v3126 = vld [vmem:[%s382 + $0x28] sm:$0xf]
        %v3127 = vld [vmem:[%s382 + $0x2c] sm:$0xf]
        %v3128 = vld [vmem:[%s382 + $0x30] sm:$0xf]
        %v3129 = vld [vmem:[%s382 + $0x34] sm:$0xf]
        %v3130 = vld [vmem:[%s382 + $0x38] sm:$0xf]
        %v3131 = vld [vmem:[%s382 + $0x3c] sm:$0xf]
        %v3132 = vld [vmem:[%s382 + $0x40] sm:$0xf]
        %v3133 = vld [vmem:[%s382 + $0x44] sm:$0xf]
        %v3134 = vld [vmem:[%s382 + $0x48] sm:$0xf]
        %v3135 = vld [vmem:[%s382 + $0x4c] sm:$0xf]
        %v3136 = vld [vmem:[%s382 + $0x50] sm:$0xf]
        %v3137 = vld [vmem:[%s382 + $0x54] sm:$0xf]
        %v3138 = vld [vmem:[%s382 + $0x58] sm:$0xf]
        %v3139 = vld [vmem:[%s382 + $0x5c] sm:$0xf]
        %v3140 = vld [vmem:[%s382 + $0x60] sm:$0xf]
        %v3141 = vld [vmem:[%s382 + $0x64] sm:$0xf]
        %v3142 = vld [vmem:[%s382 + $0x68] sm:$0xf]
        %v3143 = vld [vmem:[%s382 + $0x6c] sm:$0xf]
        %v3144 = vld [vmem:[%s382 + $0x70] sm:$0xf]
        %v3145 = vld [vmem:[%s382 + $0x74] sm:$0xf]
        %v3146 = vld [vmem:[%s382 + $0x78] sm:$0xf]
        %v3147 = vld [vmem:[%s382 + $0x7c] sm:$0xf]
        %v3148 = vlaneseq
        %v3149 = vshrl.u32 %v3148, 7
        %v3150 = vsub.s32 5, %v3149
        %v3151 = vrot.slane %v448, %v3150
        %v3184 = vunpack.c.l.b16 %v3116
        %v3185 = vunpack.c.l.b16 %v3117
        %v3186 = vunpack.c.l.b16 %v3118
        %v3187 = vunpack.c.l.b16 %v3119
        %v3188 = vunpack.c.l.b16 %v3120
        %v3189 = vunpack.c.l.b16 %v3121
        %v3190 = vunpack.c.l.b16 %v3122
        %v3191 = vunpack.c.l.b16 %v3123
        %v3192 = vunpack.c.l.b16 %v3124
        %v3193 = vunpack.c.l.b16 %v3125
        %v3194 = vunpack.c.l.b16 %v3126
        %v3195 = vunpack.c.l.b16 %v3127
        %v3196 = vunpack.c.l.b16 %v3128
        %v3197 = vunpack.c.l.b16 %v3129
        %v3198 = vunpack.c.l.b16 %v3130
        %v3199 = vunpack.c.l.b16 %v3131
        %v3200 = vunpack.c.l.b16 %v3132
        %v3201 = vunpack.c.l.b16 %v3133
        %v3202 = vunpack.c.l.b16 %v3134
        %v3203 = vunpack.c.l.b16 %v3135
        %v3204 = vunpack.c.l.b16 %v3136
        %v3205 = vunpack.c.l.b16 %v3137
        %v3206 = vunpack.c.l.b16 %v3138
        %v3207 = vunpack.c.l.b16 %v3139
        %v3208 = vunpack.c.l.b16 %v3140
        %v3209 = vunpack.c.l.b16 %v3141
        %v3210 = vunpack.c.l.b16 %v3142
        %v3211 = vunpack.c.l.b16 %v3143
        %v3212 = vunpack.c.l.b16 %v3144
        %v3213 = vunpack.c.l.b16 %v3145
        %v3214 = vunpack.c.l.b16 %v3146
        %v3215 = vunpack.c.l.b16 %v3147
        %v3216 = vpack.c.b16 %v3185, %v3184
        %v3217 = vpack.c.b16 %v3187, %v3186
        %v3218 = vpack.c.b16 %v3189, %v3188
        %v3219 = vpack.c.b16 %v3191, %v3190
        %v3220 = vpack.c.b16 %v3193, %v3192
        %v3221 = vpack.c.b16 %v3195, %v3194
        %v3222 = vpack.c.b16 %v3197, %v3196
        %v3223 = vpack.c.b16 %v3199, %v3198
        %v3224 = vpack.c.b16 %v3201, %v3200
        %v3225 = vpack.c.b16 %v3203, %v3202
        %v3226 = vpack.c.b16 %v3205, %v3204
        %v3227 = vpack.c.b16 %v3207, %v3206
        %v3228 = vpack.c.b16 %v3209, %v3208
        %v3229 = vpack.c.b16 %v3211, %v3210
        %v3230 = vpack.c.b16 %v3213, %v3212
        %v3231 = vpack.c.b16 %v3215, %v3214
        %3248 = vmatprep.subr.bf16.mxu0 0
        %3249 = vmatpush1.bf16.msra.mxu0 %v3216
        %3250 = vmatprep.subr.bf16.mxu0 0
        %3251 = vmatpush1.bf16.msra.mxu0 %v3217
        %3252 = vmatprep.subr.bf16.mxu0 0
        %3253 = vmatpush1.bf16.msra.mxu0 %v3218
        %3254 = vmatprep.subr.bf16.mxu0 0
        %3255 = vmatpush1.bf16.msra.mxu0 %v3219
        %3256 = vmatprep.subr.bf16.mxu0 0
        %3257 = vmatpush1.bf16.msra.mxu0 %v3220
        %3258 = vmatprep.subr.bf16.mxu0 0
        %3259 = vmatpush1.bf16.msra.mxu0 %v3221
        %3260 = vmatprep.subr.bf16.mxu0 0
        %3261 = vmatpush1.bf16.msra.mxu0 %v3222
        %3262 = vmatprep.subr.bf16.mxu0 0
        %3263 = vmatpush1.bf16.msra.mxu0 %v3223
        %3264 = vmatprep.subr.bf16.mxu0 0
        %3265 = vmatpush1.bf16.msra.mxu0 %v3224
        %3266 = vmatprep.subr.bf16.mxu0 0
        %3267 = vmatpush1.bf16.msra.mxu0 %v3225
        %3268 = vmatprep.subr.bf16.mxu0 0
        %3269 = vmatpush1.bf16.msra.mxu0 %v3226
        %3270 = vmatprep.subr.bf16.mxu0 0
        %3271 = vmatpush1.bf16.msra.mxu0 %v3227
        %3272 = vmatprep.subr.bf16.mxu0 0
        %3273 = vmatpush1.bf16.msra.mxu0 %v3228
        %3274 = vmatprep.subr.bf16.mxu0 0
        %3275 = vmatpush1.bf16.msra.mxu0 %v3229
        %3276 = vmatprep.subr.bf16.mxu0 0
        %3277 = vmatpush1.bf16.msra.mxu0 %v3230
        %3278 = vmatprep.subr.bf16.mxu0 0
        %3279 = vmatpush1.bf16.msra.mxu0 %v3231
        %3280 = vmatprep.mubr.bf16.mxu0 %v3115
        %3281 = vmatmul.mubr.bf16.gmra.mrb[0].mxu0 %v3114
        %v3282 = vpop.f32.mrb[0].mxu0
        %v3283 = vadd.f32 %v3151, %v3282
        %v3284 = vpop.f32.mrb[0].mxu0
        %v3285 = vpop.f32.mrb[0].mxu0
        %v3286 = vadd.f32 %v3151, %v3285
        %v3287 = vpop.f32.mrb[0].mxu0
        %3288 = vdwg.mxu0
        %v3289 = vadd.f32 %v2960, %v3283
        %v3290 = vadd.f32 %v2961, %v3286
        %3291 = vadd.xlane.f32.xlu0 %v3289
        %v3292 = vpop.xlane.xlu0 %3291
        %3293 = vadd.xlane.f32.xlu0 %v3290
        %v3294 = vpop.xlane.xlu0 %3293
        %v3295 = vmul.f32 %v3292, %v2931
        %v3296 = vmul.f32 %v3294, %v2931
        %v3297 = vsub.f32 %v3289, %v3295
        %v3298 = vsub.f32 %v3290, %v3296
        %v3299 = vmul.f32 %v3297, %v3297
        %v3300 = vmul.f32 %v3298, %v3298
        %3301 = vadd.xlane.f32.xlu0 %v3299
        %v3302 = vpop.xlane.xlu0 %3301
        %3303 = vadd.xlane.f32.xlu0 %v3300
        %v3304 = vpop.xlane.xlu0 %3303
        %v3305 = vmul.f32 %v3302, %v2931
        %v3306 = vmul.f32 %v3304, %v2931
        %v3307 = vadd.f32 %v3305, 1e-05
        %v3308 = vadd.f32 %v3306, 1e-05
        %v3309 = vrsqrt.pop %v3307
        %v3310 = vrsqrt.pop %v3308
        %v3311 = vmul.f32 %v3297, %v3309
        %v3312 = vmul.f32 %v3298, %v3310
        %v3313 = vlaneseq
        %v3314 = vshrl.u32 %v3313, 7
        %v3315 = vsub.s32 6, %v3314
        %v3316 = vrot.slane %v448, %v3315
        %v3317 = vmul.f32 %v3311, %v3316
        %v3318 = vmul.f32 %v3312, %v3316
        %v3319 = vlaneseq
        %v3320 = vshrl.u32 %v3319, 7
        %v3321 = vsub.s32 7, %v3320
        %v3322 = vrot.slane %v448, %v3321
        %v3323 = vadd.f32 %v3317, %v3322
        %v3324 = vadd.f32 %v3318, %v3322
        %3325 = vst [vmem:[#allocation2] sm:$0xff] %v3323
        %3326 = vst [vmem:[#allocation2 + $0x8] sm:$0xff] %v3324
        %p3327 = scmp.eq.s32.totalorder %s28, 5
        // Predicated region
        $region73: #{tpu_custom_call.1} parent=47 // pred_check
          %p3328 = pneg %p3327
        $region74: #{tpu_custom_call.1} parent=47 // pred_check_branch
          %3330 = sbr.rel (%p3328) target = $region76
        $region75: #{tpu_custom_call.1} parent=47 // pred_region
          %3331 = vst [vmem:[#allocation12] sm:$0xff] %v3323
          %3332 = vst [vmem:[#allocation12 + $0x8] sm:$0xff] %v3324
        $region76: #{tpu_custom_call.1} parent=47 // pred_fallthru
          _
        // Predicated region
        $region77: #{tpu_custom_call.1} parent=47 // pred_check
          %p3333 = pneg %p213
        $region78: #{tpu_custom_call.1} parent=47 // pred_check_branch
          %3335 = sbr.rel (%p3333) target = $region80
        $region79: #{tpu_custom_call.1} parent=47 // pred_region
          %s3337 = ssub.s32 256, 256
          %3338 = vsyncadd [#allocation5], %s3337
          %s3339 = sshll.u32 [#allocation12], 4
          %s3340 = int_to_ptr.vmem [resolvable:$true] %s3339
          %3345 = dma.vmem_to_hbm [thread:$0]  %s3340, 256, %s7, [#allocation5], 128, 128, 8
        $region80: #{tpu_custom_call.1} parent=47 // pred_fallthru
          _
        // Predicated region
        $region81: #{tpu_custom_call.1} parent=47 // pred_check
          %p3346 = pneg %p213
        $region82: #{tpu_custom_call.1} parent=47 // pred_check_branch
          %3348 = sbr.rel (%p3346) target = $region84
        $region83: #{tpu_custom_call.1} parent=47 // pred_region
          %3349 = dma.done [#allocation5], 256
        $region84: #{tpu_custom_call.1} parent=47 // pred_fallthru
          _
      $region48: #{tpu_custom_call.1} parent=5 // pred_fallthru
        _
      %p3350 = scmp.le.s32.totalorder 2, %s23
      // Predicated region
      $region85: #{tpu_custom_call.1} parent=5 // pred_check
        %p3351 = pneg %p3350
      $region86: #{tpu_custom_call.1} parent=5 // pred_check_branch
        %3353 = sbr.rel (%p3351) target = $region88
      $region87: #{tpu_custom_call.1} parent=5 // pred_region
        %s3354 = ssub.s32 %s23, 2
      $region88: #{tpu_custom_call.1} parent=5 // pred_fallthru
        _
    $region6: #{tpu_custom_call.1} parent=1 // loop_footer
      %s27 = sadd.s32 1, %s23
    $region7: #{tpu_custom_call.1} parent=1 // loop_footer_branch
      %22 = sbr.rel target = $region3
    $region8: #{tpu_custom_call.1} parent=1 // loop_exit
      _
    %3355 = vsyncpa [#allocation4], 1
    %s3356 = scalar_lea.sflag [#allocation4], 1
    %3357 = vsyncpa %s3356, 1
    %3358 = vsyncpa [#allocation7], 1
    %s3359 = scalar_lea.sflag [#allocation7], 1
    %3360 = vsyncpa %s3359, 1
    %3361 = vsyncpa [#allocation10], 1
    %s3362 = scalar_lea.sflag [#allocation10], 1
    %3363 = vsyncpa %s3362, 1
    %3364 = vsyncpa [#allocation5], 1
    %s3365 = scalar_lea.sflag [#allocation5], 1
    %3366 = vsyncpa %s3365, 1

</llo_original>
